<compile_context>
chip_gen: v7x
topology: tpu7x:2x2x1
jax: 0.10.0
libtpu: 0.0.40
codegen_flags: <defaults>
</compile_context>

<pallas_src>
import functools

import jax
import jax.numpy as jnp
from jax import lax
from jax.experimental import pallas as pl
from jax.experimental.pallas import tpu as pltpu


CFG = dict(vocab_size=64, type_vocab_size=2, max_position=16,
           hidden_size=32, num_heads=4, intermediate_size=64,
           num_hidden_layers=3)
LN_EPS = 1e-12


# ----------------------------------------------------------------------------
# Fused encoder kernel: one grid step == one full transformer layer.
# ----------------------------------------------------------------------------
def _layernorm(x, g, b, eps):
    mean = jnp.mean(x, axis=-1, keepdims=True)
    var = jnp.mean((x - mean) ** 2, axis=-1, keepdims=True)
    return (x - mean) * lax.rsqrt(var + eps) * g + b


def _encoder_kernel(emb_ref, bias_ref, mask_ref, emb_g_ref, emb_b_ref,
                    wqkv_ref, bqkv_ref, wo_ref, bo_ref, ln1_g_ref, ln1_b_ref,
                    w1_ref, b1_ref, w2_ref, b2_ref, ln2_g_ref, ln2_b_ref,
                    h_out_ref, pooled_ref, h_carry, pooled_acc,
                    *, num_heads, scale, eps, pooler, cumulative):
    """grid axis 0 = layer index ("arbitrary": sequential carry in VMEM).

    Step 0 also applies the embedding LayerNorm and zeroes the pooling
    accumulator. Every step runs: fused QKV matmul -> per-head attention
    (with the output projection wo fused in) -> add&LN -> FFN(GELU) -> add&LN,
    then accumulates the probe pooling. Outputs are written once, at the last
    layer.
    """
    l = pl.program_id(0)
    n_layers = pl.num_programs(0)

    B, S, H = h_carry.shape
    D = H // num_heads

    @pl.when(l == 0)
    def _():
        # Embedding LayerNorm fused into the first step (no extra launch, no
        # zeros-residual add).
        emb2 = emb_ref[...].reshape(B * S, H)
        h_carry[...] = _layernorm(emb2, emb_g_ref[...], emb_b_ref[...],
                                  eps).reshape(B, S, H)
        pooled_acc[...] = jnp.zeros_like(pooled_acc)

    x = h_carry[...]                      # (B, S, H), resident across layers
    x2 = x.reshape(B * S, H)

    # ---- fused QKV projection: one MXU pass with N = 3H lanes ----
    qkv = jnp.dot(x2, wqkv_ref[...],
                  preferred_element_type=jnp.float32) + bqkv_ref[...]

    # ---- attention: all batches per head in one batched einsum; the output
    #      projection is fused head-by-head (no concat, no XLA transposes) ----
    bias = bias_ref[...][:, None, :]      # (B, 1, S) additive mask
    wo = wo_ref[...]
    attn_out = bo_ref[...]                # (1, H) bias, broadcasts over rows
    for n in range(num_heads):            # static unroll; NH is small
        qh = qkv[:, n * D:(n + 1) * D].reshape(B, S, D)
        kh = qkv[:, H + n * D:H + (n + 1) * D].reshape(B, S, D)
        vh = qkv[:, 2 * H + n * D:2 * H + (n + 1) * D].reshape(B, S, D)
        s = jnp.einsum('bqd,bkd->bqk', qh, kh,
                       preferred_element_type=jnp.float32) * scale + bias
        s = s - jnp.max(s, axis=-1, keepdims=True)
        p = jnp.exp(s)
        p = p * pl.reciprocal(jnp.sum(p, axis=-1, keepdims=True), approx=True)
        ctx = jnp.einsum('bqk,bkd->bqd', p, vh,
                         preferred_element_type=jnp.float32)
        attn_out = attn_out + jnp.dot(ctx.reshape(B * S, D),
                                      wo[n * D:(n + 1) * D, :],
                                      preferred_element_type=jnp.float32)

    h1 = _layernorm(attn_out + x2, ln1_g_ref[...], ln1_b_ref[...], eps)

    # ---- FFN ----
    ffn = jnp.dot(h1, w1_ref[...],
                  preferred_element_type=jnp.float32) + b1_ref[...]
    # TODO(synk): HF/PyTorch BERT uses erf GELU; tanh-approx GELU used here
    # (guaranteed Mosaic lowering via EUP tanh), small systematic difference.
    ffn = jax.nn.gelu(ffn, approximate=True)
    ffn = jnp.dot(ffn, w2_ref[...],
                  preferred_element_type=jnp.float32) + b2_ref[...]
    h2 = _layernorm(ffn + h1, ln2_g_ref[...], ln2_b_ref[...], eps)

    h3 = h2.reshape(B, S, H)
    h_carry[...] = h3                     # carry to next layer (stays in VMEM)

    # ---- probe pooling, accumulated per layer (no (L,B,S,H) HBM stack) ----
    def accumulate():
        if pooler == 'cls':
            pooled_acc[...] += h3[:, 0, :]
        elif pooler == 'avg':
            # accumulate numerator only; divide once at the last layer
            pooled_acc[...] += jnp.sum(h3 * mask_ref[...][:, :, None], axis=1)
        else:
            pooled_acc[...] += h3

    if cumulative:
        accumulate()
    else:
        @pl.when(l == n_layers - 1)
        def _():
            accumulate()

    @pl.when(l == n_layers - 1)
    def _():
        h_out_ref[...] = h3
        if pooler == 'avg':
            den = jnp.sum(mask_ref[...], axis=-1, keepdims=True)   # (B, 1)
            pooled_ref[...] = pooled_acc[...] * pl.reciprocal(den, approx=True)
        else:
            pooled_ref[...] = pooled_acc[...]


def fused_encoder(emb, attn_bias, maskf, params, n_layers, *,
                  num_heads, pooler, cumulative, eps=LN_EPS):
    """Runs `n_layers` transformer layers + probe pooling in ONE pallas_call."""
    B, S, H = emb.shape
    I = params["w1"].shape[-1]
    D = H // num_heads
    scale = 1.0 / float(D) ** 0.5

    if pooler in ("cls", "avg"):
        pooled_shape = (B, H)
        pooled_spec = pl.BlockSpec((B, H), lambda l: (0, 0))
    else:
        pooled_shape = (B, S, H)
        pooled_spec = pl.BlockSpec((B, S, H), lambda l: (0, 0, 0))

    def per_layer(d1, d2):      # stacked per-layer weights; layer axis squeezed
        return pl.BlockSpec((None, d1, d2), lambda l: (l, 0, 0))

    def shared(shape):          # same full block every grid step
        nd = len(shape)
        return pl.BlockSpec(shape, lambda l, _nd=nd: (0,) * _nd)

    grid_spec = pltpu.PrefetchScalarGridSpec(
        num_scalar_prefetch=0,
        grid=(n_layers,),
        in_specs=[
            shared((B, S, H)),        # summed embeddings
            shared((B, S)),           # additive attention bias
            shared((B, S)),           # float attention mask (avg pooling)
            shared((1, H)),           # embedding LN gamma
            shared((1, H)),           # embedding LN beta
            per_layer(H, 3 * H),      # wqkv
            per_layer(1, 3 * H),      # bqkv
            per_layer(H, H),          # wo
            per_layer(1, H),          # bo
            per_layer(1, H),          # ln1 gamma
            per_layer(1, H),          # ln1 beta
            per_layer(H, I),          # w1
            per_layer(1, I),          # b1
            per_layer(I, H),          # w2
            per_layer(1, H),          # b2
            per_layer(1, H),          # ln2 gamma
            per_layer(1, H),          # ln2 beta
        ],
        out_specs=[
            shared((B, S, H)),        # final hidden state (hidden_states[n_layers])
            pooled_spec,              # probe-pooled result
        ],
        scratch_shapes=[
            pltpu.VMEM((B, S, H), jnp.float32),      # hidden-state carry
            pltpu.VMEM(pooled_shape, jnp.float32),   # pooling accumulator
        ],
    )

    kernel = functools.partial(_encoder_kernel, num_heads=num_heads,
                               scale=scale, eps=eps, pooler=pooler,
                               cumulative=cumulative)
    h_final, pooled = pl.pallas_call(
        kernel,
        grid_spec=grid_spec,
        out_shape=(jax.ShapeDtypeStruct((B, S, H), jnp.float32),
                   jax.ShapeDtypeStruct(pooled_shape, jnp.float32)),
        compiler_params=pltpu.CompilerParams(
            dimension_semantics=("arbitrary",)),   # layer axis = sequential carry
    )(emb, attn_bias, maskf,
      params["emb_ln_g"], params["emb_ln_b"],
      params["wqkv"][:n_layers], params["bqkv"][:n_layers],
      params["wo"][:n_layers], params["bo"][:n_layers],
      params["ln1_g"][:n_layers], params["ln1_b"][:n_layers],
      params["w1"][:n_layers], params["b1"][:n_layers],
      params["w2"][:n_layers], params["b2"][:n_layers],
      params["ln2_g"][:n_layers], params["ln2_b"][:n_layers])
    return h_final, pooled


# ----------------------------------------------------------------------------
# Synthetic mini-BERT parameters (stacked per-layer, pre-fused QKV weights)
# ----------------------------------------------------------------------------
def build_params(key, cfg):
    H, I, L = cfg["hidden_size"], cfg["intermediate_size"], cfg["num_hidden_layers"]

    def nrm(k, shape):
        return 0.02 * jax.random.normal(k, shape, dtype=jnp.float32)

    ks = iter(jax.random.split(key, 16))
    return dict(
        word_emb=nrm(next(ks), (cfg["vocab_size"], H)),
        pos_emb=nrm(next(ks), (cfg["max_position"], H)),
        type_emb=nrm(next(ks), (cfg["type_vocab_size"], H)),
        emb_ln_g=jnp.ones((1, H), jnp.float32),
        emb_ln_b=jnp.zeros((1, H), jnp.float32),
        # per-layer weights stacked on a leading layer axis -> one fused call
        wqkv=nrm(next(ks), (L, H, 3 * H)),
        bqkv=jnp.zeros((L, 1, 3 * H), jnp.float32),
        wo=nrm(next(ks), (L, H, H)),
        bo=jnp.zeros((L, 1, H), jnp.float32),
        ln1_g=jnp.ones((L, 1, H), jnp.float32),
        ln1_b=jnp.zeros((L, 1, H), jnp.float32),
        w1=nrm(next(ks), (L, H, I)),
        b1=jnp.zeros((L, 1, I), jnp.float32),
        w2=nrm(next(ks), (L, I, H)),
        b2=jnp.zeros((L, 1, H), jnp.float32),
        ln2_g=jnp.ones((L, 1, H), jnp.float32),
        ln2_b=jnp.zeros((L, 1, H), jnp.float32),
    )


def encoder_forward(params, cfg, input_ids, attention_mask, token_type_ids,
                    probe_layer, pooler=None, probe_type="cumulative_scoring"):
    """Mirrors Encoder.forward of the PyTorch module (synthetic weights).

    Only the first `probe_layer` layers influence the returned value, so only
    those layers are executed.
    """
    B, S = input_ids.shape
    assert 0 < probe_layer <= cfg["num_hidden_layers"]

    # embedding-table gathers are plain-JAX glue; the embedding LayerNorm is
    # fused into the encoder kernel's first grid step.
    positions = jnp.arange(S, dtype=jnp.int32)
    emb = (jnp.take(params["word_emb"], input_ids, axis=0)
           + jnp.take(params["pos_emb"], positions, axis=0)[None, :, :]
           + jnp.take(params["type_emb"], token_type_ids, axis=0))

    maskf = attention_mask.astype(jnp.float32)          # (B, S)
    attn_bias = (1.0 - maskf) * -1e9                    # additive mask, f32

    cumulative = (probe_type == "cumulative_scoring")
    h_final, pooled = fused_encoder(
        emb, attn_bias, maskf, params, probe_layer,
        num_heads=cfg["num_heads"], pooler=pooler, cumulative=cumulative)

    if not cumulative and pooler not in ("cls", "avg"):
        return h_final                                  # hidden_states[probe_layer]
    return pooled


# ----------------------------------------------------------------------------
# Pure-JAX reference (same math, un-fused) for a correctness cross-check
# ----------------------------------------------------------------------------
def reference_forward(params, cfg, input_ids, attention_mask, token_type_ids,
                      probe_layer, pooler=None, probe_type="cumulative_scoring"):
    B, S = input_ids.shape
    H, NH = cfg["hidden_size"], cfg["num_heads"]
    D = H // NH

    def ln(x, g, b):
        m = jnp.mean(x, axis=-1, keepdims=True)
        v = jnp.mean((x - m) ** 2, axis=-1, keepdims=True)
        return (x - m) / jnp.sqrt(v + LN_EPS) * g + b

    positions = jnp.arange(S)
    emb = (params["word_emb"][input_ids]
           + params["pos_emb"][positions][None]
           + params["type_emb"][token_type_ids])
    maskf = attention_mask.astype(jnp.float32)
    bias = (1.0 - maskf) * -1e9

    hs = [ln(emb, params["emb_ln_g"][0], params["emb_ln_b"][0])]
    for l in range(cfg["num_hidden_layers"]):
        x = hs[-1]
        qkv = x @ params["wqkv"][l] + params["bqkv"][l][0]
        q, k, v = jnp.split(qkv, 3, axis=-1)

        def heads(t):
            return t.reshape(B, S, NH, D).transpose(0, 2, 1, 3)

        s = jnp.einsum('bnqd,bnkd->bnqk', heads(q), heads(k)) / D ** 0.5
        s = s + bias[:, None, None, :]
        p = jax.nn.softmax(s, axis=-1)
        ctx = jnp.einsum('bnqk,bnkd->bnqd', p, heads(v))
        ctx = ctx.transpose(0, 2, 1, 3).reshape(B, S, H)
        attn = ctx @ params["wo"][l] + params["bo"][l][0]
        h1 = ln(attn + x, params["ln1_g"][l][0], params["ln1_b"][l][0])
        ffn = jax.nn.gelu(h1 @ params["w1"][l] + params["b1"][l][0],
                          approximate=True)
        ffn = ffn @ params["w2"][l] + params["b2"][l][0]
        hs.append(ln(ffn + h1, params["ln2_g"][l][0], params["ln2_b"][l][0]))

    if probe_type == "cumulative_scoring":
        if pooler == "cls":
            return sum(hs[i][:, 0, :] for i in range(1, probe_layer + 1))
        if pooler == "avg":
            return sum((hs[i] * maskf[:, :, None]).sum(1)
                       / maskf.sum(-1, keepdims=True)
                       for i in range(1, probe_layer + 1))
        return sum(hs[i] for i in range(1, probe_layer + 1))
    h = hs[probe_layer]
    if pooler == "cls":
        return h[:, 0, :]
    if pooler == "avg":
        return (h * maskf[:, :, None]).sum(1) / maskf.sum(-1, keepdims=True)
    return h


# ----------------------------------------------------------------------------
if __name__ == "__main__":
    key = jax.random.PRNGKey(0)
    pkey, ikey = jax.random.split(key)
    params = build_params(pkey, CFG)

    B, S = 2, 8
    input_ids = jax.random.randint(ikey, (B, S), 0, CFG["vocab_size"],
                                   dtype=jnp.int32)
    attention_mask = jnp.array([[1, 1, 1, 1, 1, 1, 1, 1],
                                [1, 1, 1, 1, 1, 0, 0, 0]], dtype=jnp.int32)
    token_type_ids = jnp.zeros((B, S), dtype=jnp.int32)

    cases = [
        dict(probe_layer=2, pooler="avg", probe_type="cumulative_scoring"),
        dict(probe_layer=3, pooler=None, probe_type="cumulative_scoring"),
        dict(probe_layer=3, pooler="cls", probe_type="single"),
        dict(probe_layer=2, pooler=None, probe_type="single"),
    ]
    for c in cases:
        out = encoder_forward(params, CFG, input_ids, attention_mask,
                              token_type_ids, **c)
        out = jax.block_until_ready(out)
        ref = reference_forward(params, CFG, input_ids, attention_mask,
                                token_type_ids, **c)
        assert out.shape == ref.shape, (c, out.shape, ref.shape)
        err = float(jnp.max(jnp.abs(out - ref)))
        assert err < 2e-2, f"mismatch for {c}: max abs err {err}"

    print("KERNEL_OK")
</pallas_src>

<mosaic_0001>
module attributes {stable_mosaic.version = 11 : i64} {
  func.func @_encoder_kernel(%arg0: i32, %arg1: memref<2x8x32xf32, #tpu.memory_space<vmem>>, %arg2: memref<2x8xf32, #tpu.memory_space<vmem>>, %arg3: memref<2x8xf32, #tpu.memory_space<vmem>>, %arg4: memref<1x32xf32, #tpu.memory_space<vmem>>, %arg5: memref<1x32xf32, #tpu.memory_space<vmem>>, %arg6: memref<1x32x96xf32, #tpu.memory_space<vmem>>, %arg7: memref<1x1x96xf32, #tpu.memory_space<vmem>>, %arg8: memref<1x32x32xf32, #tpu.memory_space<vmem>>, %arg9: memref<1x1x32xf32, #tpu.memory_space<vmem>>, %arg10: memref<1x1x32xf32, #tpu.memory_space<vmem>>, %arg11: memref<1x1x32xf32, #tpu.memory_space<vmem>>, %arg12: memref<1x32x64xf32, #tpu.memory_space<vmem>>, %arg13: memref<1x1x64xf32, #tpu.memory_space<vmem>>, %arg14: memref<1x64x32xf32, #tpu.memory_space<vmem>>, %arg15: memref<1x1x32xf32, #tpu.memory_space<vmem>>, %arg16: memref<1x1x32xf32, #tpu.memory_space<vmem>>, %arg17: memref<1x1x32xf32, #tpu.memory_space<vmem>>, %arg18: memref<2x8x32xf32, #tpu.memory_space<vmem>>, %arg19: memref<2x32xf32, #tpu.memory_space<vmem>>, %arg20: memref<2x8x32xf32, #tpu.memory_space<vmem>>, %arg21: memref<2x32xf32, #tpu.memory_space<vmem>>) attributes {dimension_semantics = [#tpu.dimension_semantics<arbitrary>], iteration_bounds = array<i64: 2>, scalar_prefetch = 0 : i64, scratch_operands = 2 : i64, tpu.core_type = #tpu.core_type<tc>, window_params = [{pipeline_mode = #tpu.pipeline_mode<synchronous>, transform_indices = @transform_0, window_bounds = array<i64: 2, 8, 32>}, {pipeline_mode = #tpu.pipeline_mode<synchronous>, transform_indices = @transform_1, window_bounds = array<i64: 2, 8>}, {pipeline_mode = #tpu.pipeline_mode<synchronous>, transform_indices = @transform_2, window_bounds = array<i64: 2, 8>}, {pipeline_mode = #tpu.pipeline_mode<synchronous>, transform_indices = @transform_3, window_bounds = array<i64: 1, 32>}, {pipeline_mode = #tpu.pipeline_mode<synchronous>, transform_indices = @transform_4, window_bounds = array<i64: 1, 32>}, {transform_indices = @transform_5, window_bounds = array<i64: 1, 32, 96>}, {transform_indices = @transform_6, window_bounds = array<i64: 1, 1, 96>}, {transform_indices = @transform_7, window_bounds = array<i64: 1, 32, 32>}, {transform_indices = @transform_8, window_bounds = array<i64: 1, 1, 32>}, {transform_indices = @transform_9, window_bounds = array<i64: 1, 1, 32>}, {transform_indices = @transform_10, window_bounds = array<i64: 1, 1, 32>}, {transform_indices = @transform_11, window_bounds = array<i64: 1, 32, 64>}, {transform_indices = @transform_12, window_bounds = array<i64: 1, 1, 64>}, {transform_indices = @transform_13, window_bounds = array<i64: 1, 64, 32>}, {transform_indices = @transform_14, window_bounds = array<i64: 1, 1, 32>}, {transform_indices = @transform_15, window_bounds = array<i64: 1, 1, 32>}, {transform_indices = @transform_16, window_bounds = array<i64: 1, 1, 32>}, {pipeline_mode = #tpu.pipeline_mode<synchronous>, transform_indices = @transform_17, window_bounds = array<i64: 2, 8, 32>}, {pipeline_mode = #tpu.pipeline_mode<synchronous>, transform_indices = @transform_18, window_bounds = array<i64: 2, 32>}]} {
    %c0_i32 = arith.constant 0 : i32
    %0 = arith.cmpi eq, %arg0, %c0_i32 : i32
    %1 = arith.extui %0 : i1 to i32
    %c0_i32_0 = arith.constant 0 : i32
    %2 = arith.cmpi ne, %1, %c0_i32_0 : i32
    scf.if %2 {
      %c0_92 = arith.constant 0 : index
      %c0_93 = arith.constant 0 : index
      %c0_94 = arith.constant 0 : index
      %217 = vector.load %arg1[%c0_92, %c0_93, %c0_94] : memref<2x8x32xf32, #tpu.memory_space<vmem>>, vector<2x8x32xf32>
      %218 = vector.shape_cast %217 : vector<2x8x32xf32> to vector<16x32xf32>
      %c0_95 = arith.constant 0 : index
      %c0_96 = arith.constant 0 : index
      %219 = vector.load %arg4[%c0_95, %c0_96] : memref<1x32xf32, #tpu.memory_space<vmem>>, vector<1x32xf32>
      %c0_97 = arith.constant 0 : index
      %c0_98 = arith.constant 0 : index
      %220 = vector.load %arg5[%c0_97, %c0_98] : memref<1x32xf32, #tpu.memory_space<vmem>>, vector<1x32xf32>
      %cst_99 = arith.constant dense<0.000000e+00> : vector<16xf32>
      %221 = vector.multi_reduction <add>, %218, %cst_99 [1] : vector<16x32xf32> to vector<16xf32>
      %222 = vector.shape_cast %221 : vector<16xf32> to vector<16x1xf32>
      %cst_100 = arith.constant 3.200000e+01 : f32
      %223 = vector.broadcast %cst_100 : f32 to vector<16x1xf32>
      %224 = arith.divf %222, %223 : vector<16x1xf32>
      %225 = vector.broadcast %224 : vector<16x1xf32> to vector<16x32xf32>
      %226 = arith.subf %218, %225 : vector<16x32xf32>
      %227 = arith.mulf %226, %226 : vector<16x32xf32>
      %cst_101 = arith.constant dense<0.000000e+00> : vector<16xf32>
      %228 = vector.multi_reduction <add>, %227, %cst_101 [1] : vector<16x32xf32> to vector<16xf32>
      %229 = vector.shape_cast %228 : vector<16xf32> to vector<16x1xf32>
      %cst_102 = arith.constant 3.200000e+01 : f32
      %230 = vector.broadcast %cst_102 : f32 to vector<16x1xf32>
      %231 = arith.divf %229, %230 : vector<16x1xf32>
      %232 = vector.broadcast %224 : vector<16x1xf32> to vector<16x32xf32>
      %233 = arith.subf %218, %232 : vector<16x32xf32>
      %cst_103 = arith.constant 9.99999996E-13 : f32
      %234 = vector.broadcast %cst_103 : f32 to vector<16x1xf32>
      %235 = arith.addf %231, %234 : vector<16x1xf32>
      %236 = math.rsqrt %235 : vector<16x1xf32>
      %237 = vector.broadcast %236 : vector<16x1xf32> to vector<16x32xf32>
      %238 = arith.mulf %233, %237 : vector<16x32xf32>
      %239 = vector.broadcast %219 : vector<1x32xf32> to vector<16x32xf32>
      %240 = arith.mulf %238, %239 : vector<16x32xf32>
      %241 = vector.broadcast %220 : vector<1x32xf32> to vector<16x32xf32>
      %242 = arith.addf %240, %241 : vector<16x32xf32>
      %243 = vector.shape_cast %242 : vector<16x32xf32> to vector<2x8x32xf32>
      %c0_104 = arith.constant 0 : index
      %c0_105 = arith.constant 0 : index
      %c0_106 = arith.constant 0 : index
      %244 = vector.load %arg20[%c0_104, %c0_105, %c0_106] : memref<2x8x32xf32, #tpu.memory_space<vmem>>, vector<2x8x32xf32>
      tpu.vector_store %arg20[%c0_104, %c0_105, %c0_106], %243 {strides = array<i32>} : memref<2x8x32xf32, #tpu.memory_space<vmem>>, vector<2x8x32xf32>,
      %cst_107 = arith.constant 0.000000e+00 : f32
      %245 = vector.broadcast %cst_107 : f32 to vector<2x32xf32>
      %c0_108 = arith.constant 0 : index
      %c0_109 = arith.constant 0 : index
      %246 = vector.load %arg21[%c0_108, %c0_109] : memref<2x32xf32, #tpu.memory_space<vmem>>, vector<2x32xf32>
      tpu.vector_store %arg21[%c0_108, %c0_109], %245 {strides = array<i32>} : memref<2x32xf32, #tpu.memory_space<vmem>>, vector<2x32xf32>,
    } else {
    }
    %c0 = arith.constant 0 : index
    %c0_1 = arith.constant 0 : index
    %c0_2 = arith.constant 0 : index
    %3 = vector.load %arg20[%c0, %c0_1, %c0_2] : memref<2x8x32xf32, #tpu.memory_space<vmem>>, vector<2x8x32xf32>
    %4 = vector.shape_cast %3 : vector<2x8x32xf32> to vector<16x32xf32>
    %c0_3 = arith.constant 0 : index
    %c0_4 = arith.constant 0 : index
    %c0_5 = arith.constant 0 : index
    %5 = vector.load %arg6[%c0_3, %c0_4, %c0_5] : memref<1x32x96xf32, #tpu.memory_space<vmem>>, vector<1x32x96xf32>
    %6 = vector.shape_cast %5 : vector<1x32x96xf32> to vector<32x96xf32>
    %cst = arith.constant dense<0.000000e+00> : vector<16x96xf32>
    %7 = tpu.matmul %4, %6, %cst {dimension_numbers = #tpu.dot_dimension_numbers<[1], [0], [0], [1], [0, 0, 1, 1], [], []>} : vector<16x32xf32>, vector<32x96xf32>, vector<16x96xf32> -> vector<16x96xf32>
    %c0_6 = arith.constant 0 : index
    %c0_7 = arith.constant 0 : index
    %c0_8 = arith.constant 0 : index
    %8 = vector.load %arg7[%c0_6, %c0_7, %c0_8] : memref<1x1x96xf32, #tpu.memory_space<vmem>>, vector<1x1x96xf32>
    %9 = vector.shape_cast %8 : vector<1x1x96xf32> to vector<1x96xf32>
    %10 = vector.broadcast %9 : vector<1x96xf32> to vector<16x96xf32>
    %11 = arith.addf %7, %10 : vector<16x96xf32>
    %c0_9 = arith.constant 0 : index
    %c0_10 = arith.constant 0 : index
    %12 = vector.load %arg2[%c0_9, %c0_10] : memref<2x8xf32, #tpu.memory_space<vmem>>, vector<2x8xf32>
    %13 = vector.shape_cast %12 : vector<2x8xf32> to vector<2x1x8xf32>
    %c0_11 = arith.constant 0 : index
    %c0_12 = arith.constant 0 : index
    %c0_13 = arith.constant 0 : index
    %14 = vector.load %arg8[%c0_11, %c0_12, %c0_13] : memref<1x32x32xf32, #tpu.memory_space<vmem>>, vector<1x32x32xf32>
    %15 = vector.shape_cast %14 : vector<1x32x32xf32> to vector<32x32xf32>
    %c0_14 = arith.constant 0 : index
    %c0_15 = arith.constant 0 : index
    %c0_16 = arith.constant 0 : index
    %16 = vector.load %arg9[%c0_14, %c0_15, %c0_16] : memref<1x1x32xf32, #tpu.memory_space<vmem>>, vector<1x1x32xf32>
    %17 = vector.shape_cast %16 : vector<1x1x32xf32> to vector<1x32xf32>
    %18 = vector.extract_strided_slice %11 {offsets = [0, 0], sizes = [16, 8], strides = [1, 1]} : vector<16x96xf32> to vector<16x8xf32>
    %19 = vector.shape_cast %18 : vector<16x8xf32> to vector<2x8x8xf32>
    %20 = vector.extract_strided_slice %11 {offsets = [0, 32], sizes = [16, 8], strides = [1, 1]} : vector<16x96xf32> to vector<16x8xf32>
    %21 = vector.shape_cast %20 : vector<16x8xf32> to vector<2x8x8xf32>
    %22 = vector.extract_strided_slice %11 {offsets = [0, 64], sizes = [16, 8], strides = [1, 1]} : vector<16x96xf32> to vector<16x8xf32>
    %23 = vector.shape_cast %22 : vector<16x8xf32> to vector<2x8x8xf32>
    "tpu.trace_start"() <{level = 10 : i32, message = "bqd,bkd->bqk"}> : () -> ()
    %cst_17 = arith.constant dense<0.000000e+00> : vector<2x8x8xf32>
    %24 = tpu.matmul %19, %21, %cst_17 {dimension_numbers = #tpu.dot_dimension_numbers<[2], [2], [1], [1], [0, 0, 0, 1, 1, 1], [0], [0]>} : vector<2x8x8xf32>, vector<2x8x8xf32>, vector<2x8x8xf32> -> vector<2x8x8xf32>
    "tpu.trace_stop"() : () -> ()
    %cst_18 = arith.constant 0.353553385 : f32
    %25 = vector.broadcast %cst_18 : f32 to vector<2x8x8xf32>
    %26 = arith.mulf %24, %25 : vector<2x8x8xf32>
    %27 = vector.broadcast %13 : vector<2x1x8xf32> to vector<2x8x8xf32>
    %28 = arith.addf %26, %27 : vector<2x8x8xf32>
    %cst_19 = arith.constant dense<0xFF800000> : vector<2x8xf32>
    %29 = vector.multi_reduction <maximumf>, %28, %cst_19 [2] : vector<2x8x8xf32> to vector<2x8xf32>
    %30 = vector.shape_cast %29 : vector<2x8xf32> to vector<2x8x1xf32>
    %31 = vector.broadcast %30 : vector<2x8x1xf32> to vector<2x8x8xf32>
    %32 = arith.subf %28, %31 : vector<2x8x8xf32>
    %33 = math.exp %32 : vector<2x8x8xf32>
    %cst_20 = arith.constant dense<0.000000e+00> : vector<2x8xf32>
    %34 = vector.multi_reduction <add>, %33, %cst_20 [2] : vector<2x8x8xf32> to vector<2x8xf32>
    %35 = vector.shape_cast %34 : vector<2x8xf32> to vector<2x8x1xf32>
    %36 = tpu.reciprocal %35 {approx = true} : vector<2x8x1xf32> -> vector<2x8x1xf32>
    %37 = vector.broadcast %36 : vector<2x8x1xf32> to vector<2x8x8xf32>
    %38 = arith.mulf %33, %37 : vector<2x8x8xf32>
    "tpu.trace_start"() <{level = 10 : i32, message = "bqk,bkd->bqd"}> : () -> ()
    %cst_21 = arith.constant dense<0.000000e+00> : vector<2x8x8xf32>
    %39 = tpu.matmul %38, %23, %cst_21 {dimension_numbers = #tpu.dot_dimension_numbers<[2], [1], [1], [2], [0, 0, 0, 1, 1, 2], [0], [0]>} : vector<2x8x8xf32>, vector<2x8x8xf32>, vector<2x8x8xf32> -> vector<2x8x8xf32>
    "tpu.trace_stop"() : () -> ()
    %40 = vector.shape_cast %39 : vector<2x8x8xf32> to vector<16x8xf32>
    %41 = vector.extract_strided_slice %15 {offsets = [0, 0], sizes = [8, 32], strides = [1, 1]} : vector<32x32xf32> to vector<8x32xf32>
    %cst_22 = arith.constant dense<0.000000e+00> : vector<16x32xf32>
    %42 = tpu.matmul %40, %41, %cst_22 {dimension_numbers = #tpu.dot_dimension_numbers<[1], [0], [0], [1], [0, 0, 1, 1], [], []>} : vector<16x8xf32>, vector<8x32xf32>, vector<16x32xf32> -> vector<16x32xf32>
    %43 = vector.broadcast %17 : vector<1x32xf32> to vector<16x32xf32>
    %44 = arith.addf %43, %42 : vector<16x32xf32>
    %45 = vector.extract_strided_slice %11 {offsets = [0, 8], sizes = [16, 8], strides = [1, 1]} : vector<16x96xf32> to vector<16x8xf32>
    %46 = vector.shape_cast %45 : vector<16x8xf32> to vector<2x8x8xf32>
    %47 = vector.extract_strided_slice %11 {offsets = [0, 40], sizes = [16, 8], strides = [1, 1]} : vector<16x96xf32> to vector<16x8xf32>
    %48 = vector.shape_cast %47 : vector<16x8xf32> to vector<2x8x8xf32>
    %49 = vector.extract_strided_slice %11 {offsets = [0, 72], sizes = [16, 8], strides = [1, 1]} : vector<16x96xf32> to vector<16x8xf32>
    %50 = vector.shape_cast %49 : vector<16x8xf32> to vector<2x8x8xf32>
    "tpu.trace_start"() <{level = 10 : i32, message = "bqd,bkd->bqk"}> : () -> ()
    %cst_23 = arith.constant dense<0.000000e+00> : vector<2x8x8xf32>
    %51 = tpu.matmul %46, %48, %cst_23 {dimension_numbers = #tpu.dot_dimension_numbers<[2], [2], [1], [1], [0, 0, 0, 1, 1, 1], [0], [0]>} : vector<2x8x8xf32>, vector<2x8x8xf32>, vector<2x8x8xf32> -> vector<2x8x8xf32>
    "tpu.trace_stop"() : () -> ()
    %cst_24 = arith.constant 0.353553385 : f32
    %52 = vector.broadcast %cst_24 : f32 to vector<2x8x8xf32>
    %53 = arith.mulf %51, %52 : vector<2x8x8xf32>
    %54 = vector.broadcast %13 : vector<2x1x8xf32> to vector<2x8x8xf32>
    %55 = arith.addf %53, %54 : vector<2x8x8xf32>
    %cst_25 = arith.constant dense<0xFF800000> : vector<2x8xf32>
    %56 = vector.multi_reduction <maximumf>, %55, %cst_25 [2] : vector<2x8x8xf32> to vector<2x8xf32>
    %57 = vector.shape_cast %56 : vector<2x8xf32> to vector<2x8x1xf32>
    %58 = vector.broadcast %57 : vector<2x8x1xf32> to vector<2x8x8xf32>
    %59 = arith.subf %55, %58 : vector<2x8x8xf32>
    %60 = math.exp %59 : vector<2x8x8xf32>
    %cst_26 = arith.constant dense<0.000000e+00> : vector<2x8xf32>
    %61 = vector.multi_reduction <add>, %60, %cst_26 [2] : vector<2x8x8xf32> to vector<2x8xf32>
    %62 = vector.shape_cast %61 : vector<2x8xf32> to vector<2x8x1xf32>
    %63 = tpu.reciprocal %62 {approx = true} : vector<2x8x1xf32> -> vector<2x8x1xf32>
    %64 = vector.broadcast %63 : vector<2x8x1xf32> to vector<2x8x8xf32>
    %65 = arith.mulf %60, %64 : vector<2x8x8xf32>
    "tpu.trace_start"() <{level = 10 : i32, message = "bqk,bkd->bqd"}> : () -> ()
    %cst_27 = arith.constant dense<0.000000e+00> : vector<2x8x8xf32>
    %66 = tpu.matmul %65, %50, %cst_27 {dimension_numbers = #tpu.dot_dimension_numbers<[2], [1], [1], [2], [0, 0, 0, 1, 1, 2], [0], [0]>} : vector<2x8x8xf32>, vector<2x8x8xf32>, vector<2x8x8xf32> -> vector<2x8x8xf32>
    "tpu.trace_stop"() : () -> ()
    %67 = vector.shape_cast %66 : vector<2x8x8xf32> to vector<16x8xf32>
    %68 = vector.extract_strided_slice %15 {offsets = [8, 0], sizes = [8, 32], strides = [1, 1]} : vector<32x32xf32> to vector<8x32xf32>
    %cst_28 = arith.constant dense<0.000000e+00> : vector<16x32xf32>
    %69 = tpu.matmul %67, %68, %cst_28 {dimension_numbers = #tpu.dot_dimension_numbers<[1], [0], [0], [1], [0, 0, 1, 1], [], []>} : vector<16x8xf32>, vector<8x32xf32>, vector<16x32xf32> -> vector<16x32xf32>
    %70 = arith.addf %44, %69 : vector<16x32xf32>
    %71 = vector.extract_strided_slice %11 {offsets = [0, 16], sizes = [16, 8], strides = [1, 1]} : vector<16x96xf32> to vector<16x8xf32>
    %72 = vector.shape_cast %71 : vector<16x8xf32> to vector<2x8x8xf32>
    %73 = vector.extract_strided_slice %11 {offsets = [0, 48], sizes = [16, 8], strides = [1, 1]} : vector<16x96xf32> to vector<16x8xf32>
    %74 = vector.shape_cast %73 : vector<16x8xf32> to vector<2x8x8xf32>
    %75 = vector.extract_strided_slice %11 {offsets = [0, 80], sizes = [16, 8], strides = [1, 1]} : vector<16x96xf32> to vector<16x8xf32>
    %76 = vector.shape_cast %75 : vector<16x8xf32> to vector<2x8x8xf32>
    "tpu.trace_start"() <{level = 10 : i32, message = "bqd,bkd->bqk"}> : () -> ()
    %cst_29 = arith.constant dense<0.000000e+00> : vector<2x8x8xf32>
    %77 = tpu.matmul %72, %74, %cst_29 {dimension_numbers = #tpu.dot_dimension_numbers<[2], [2], [1], [1], [0, 0, 0, 1, 1, 1], [0], [0]>} : vector<2x8x8xf32>, vector<2x8x8xf32>, vector<2x8x8xf32> -> vector<2x8x8xf32>
    "tpu.trace_stop"() : () -> ()
    %cst_30 = arith.constant 0.353553385 : f32
    %78 = vector.broadcast %cst_30 : f32 to vector<2x8x8xf32>
    %79 = arith.mulf %77, %78 : vector<2x8x8xf32>
    %80 = vector.broadcast %13 : vector<2x1x8xf32> to vector<2x8x8xf32>
    %81 = arith.addf %79, %80 : vector<2x8x8xf32>
    %cst_31 = arith.constant dense<0xFF800000> : vector<2x8xf32>
    %82 = vector.multi_reduction <maximumf>, %81, %cst_31 [2] : vector<2x8x8xf32> to vector<2x8xf32>
    %83 = vector.shape_cast %82 : vector<2x8xf32> to vector<2x8x1xf32>
    %84 = vector.broadcast %83 : vector<2x8x1xf32> to vector<2x8x8xf32>
    %85 = arith.subf %81, %84 : vector<2x8x8xf32>
    %86 = math.exp %85 : vector<2x8x8xf32>
    %cst_32 = arith.constant dense<0.000000e+00> : vector<2x8xf32>
    %87 = vector.multi_reduction <add>, %86, %cst_32 [2] : vector<2x8x8xf32> to vector<2x8xf32>
    %88 = vector.shape_cast %87 : vector<2x8xf32> to vector<2x8x1xf32>
    %89 = tpu.reciprocal %88 {approx = true} : vector<2x8x1xf32> -> vector<2x8x1xf32>
    %90 = vector.broadcast %89 : vector<2x8x1xf32> to vector<2x8x8xf32>
    %91 = arith.mulf %86, %90 : vector<2x8x8xf32>
    "tpu.trace_start"() <{level = 10 : i32, message = "bqk,bkd->bqd"}> : () -> ()
    %cst_33 = arith.constant dense<0.000000e+00> : vector<2x8x8xf32>
    %92 = tpu.matmul %91, %76, %cst_33 {dimension_numbers = #tpu.dot_dimension_numbers<[2], [1], [1], [2], [0, 0, 0, 1, 1, 2], [0], [0]>} : vector<2x8x8xf32>, vector<2x8x8xf32>, vector<2x8x8xf32> -> vector<2x8x8xf32>
    "tpu.trace_stop"() : () -> ()
    %93 = vector.shape_cast %92 : vector<2x8x8xf32> to vector<16x8xf32>
    %94 = vector.extract_strided_slice %15 {offsets = [16, 0], sizes = [8, 32], strides = [1, 1]} : vector<32x32xf32> to vector<8x32xf32>
    %cst_34 = arith.constant dense<0.000000e+00> : vector<16x32xf32>
    %95 = tpu.matmul %93, %94, %cst_34 {dimension_numbers = #tpu.dot_dimension_numbers<[1], [0], [0], [1], [0, 0, 1, 1], [], []>} : vector<16x8xf32>, vector<8x32xf32>, vector<16x32xf32> -> vector<16x32xf32>
    %96 = arith.addf %70, %95 : vector<16x32xf32>
    %97 = vector.extract_strided_slice %11 {offsets = [0, 24], sizes = [16, 8], strides = [1, 1]} : vector<16x96xf32> to vector<16x8xf32>
    %98 = vector.shape_cast %97 : vector<16x8xf32> to vector<2x8x8xf32>
    %99 = vector.extract_strided_slice %11 {offsets = [0, 56], sizes = [16, 8], strides = [1, 1]} : vector<16x96xf32> to vector<16x8xf32>
    %100 = vector.shape_cast %99 : vector<16x8xf32> to vector<2x8x8xf32>
    %101 = vector.extract_strided_slice %11 {offsets = [0, 88], sizes = [16, 8], strides = [1, 1]} : vector<16x96xf32> to vector<16x8xf32>
    %102 = vector.shape_cast %101 : vector<16x8xf32> to vector<2x8x8xf32>
    "tpu.trace_start"() <{level = 10 : i32, message = "bqd,bkd->bqk"}> : () -> ()
    %cst_35 = arith.constant dense<0.000000e+00> : vector<2x8x8xf32>
    %103 = tpu.matmul %98, %100, %cst_35 {dimension_numbers = #tpu.dot_dimension_numbers<[2], [2], [1], [1], [0, 0, 0, 1, 1, 1], [0], [0]>} : vector<2x8x8xf32>, vector<2x8x8xf32>, vector<2x8x8xf32> -> vector<2x8x8xf32>
    "tpu.trace_stop"() : () -> ()
    %cst_36 = arith.constant 0.353553385 : f32
    %104 = vector.broadcast %cst_36 : f32 to vector<2x8x8xf32>
    %105 = arith.mulf %103, %104 : vector<2x8x8xf32>
    %106 = vector.broadcast %13 : vector<2x1x8xf32> to vector<2x8x8xf32>
    %107 = arith.addf %105, %106 : vector<2x8x8xf32>
    %cst_37 = arith.constant dense<0xFF800000> : vector<2x8xf32>
    %108 = vector.multi_reduction <maximumf>, %107, %cst_37 [2] : vector<2x8x8xf32> to vector<2x8xf32>
    %109 = vector.shape_cast %108 : vector<2x8xf32> to vector<2x8x1xf32>
    %110 = vector.broadcast %109 : vector<2x8x1xf32> to vector<2x8x8xf32>
    %111 = arith.subf %107, %110 : vector<2x8x8xf32>
    %112 = math.exp %111 : vector<2x8x8xf32>
    %cst_38 = arith.constant dense<0.000000e+00> : vector<2x8xf32>
    %113 = vector.multi_reduction <add>, %112, %cst_38 [2] : vector<2x8x8xf32> to vector<2x8xf32>
    %114 = vector.shape_cast %113 : vector<2x8xf32> to vector<2x8x1xf32>
    %115 = tpu.reciprocal %114 {approx = true} : vector<2x8x1xf32> -> vector<2x8x1xf32>
    %116 = vector.broadcast %115 : vector<2x8x1xf32> to vector<2x8x8xf32>
    %117 = arith.mulf %112, %116 : vector<2x8x8xf32>
    "tpu.trace_start"() <{level = 10 : i32, message = "bqk,bkd->bqd"}> : () -> ()
    %cst_39 = arith.constant dense<0.000000e+00> : vector<2x8x8xf32>
    %118 = tpu.matmul %117, %102, %cst_39 {dimension_numbers = #tpu.dot_dimension_numbers<[2], [1], [1], [2], [0, 0, 0, 1, 1, 2], [0], [0]>} : vector<2x8x8xf32>, vector<2x8x8xf32>, vector<2x8x8xf32> -> vector<2x8x8xf32>
    "tpu.trace_stop"() : () -> ()
    %119 = vector.shape_cast %118 : vector<2x8x8xf32> to vector<16x8xf32>
    %120 = vector.extract_strided_slice %15 {offsets = [24, 0], sizes = [8, 32], strides = [1, 1]} : vector<32x32xf32> to vector<8x32xf32>
    %cst_40 = arith.constant dense<0.000000e+00> : vector<16x32xf32>
    %121 = tpu.matmul %119, %120, %cst_40 {dimension_numbers = #tpu.dot_dimension_numbers<[1], [0], [0], [1], [0, 0, 1, 1], [], []>} : vector<16x8xf32>, vector<8x32xf32>, vector<16x32xf32> -> vector<16x32xf32>
    %122 = arith.addf %96, %121 : vector<16x32xf32>
    %123 = arith.addf %122, %4 : vector<16x32xf32>
    %c0_41 = arith.constant 0 : index
    %c0_42 = arith.constant 0 : index
    %c0_43 = arith.constant 0 : index
    %124 = vector.load %arg10[%c0_41, %c0_42, %c0_43] : memref<1x1x32xf32, #tpu.memory_space<vmem>>, vector<1x1x32xf32>
    %125 = vector.shape_cast %124 : vector<1x1x32xf32> to vector<1x32xf32>
    %c0_44 = arith.constant 0 : index
    %c0_45 = arith.constant 0 : index
    %c0_46 = arith.constant 0 : index
    %126 = vector.load %arg11[%c0_44, %c0_45, %c0_46] : memref<1x1x32xf32, #tpu.memory_space<vmem>>, vector<1x1x32xf32>
    %127 = vector.shape_cast %126 : vector<1x1x32xf32> to vector<1x32xf32>
    %cst_47 = arith.constant dense<0.000000e+00> : vector<16xf32>
    %128 = vector.multi_reduction <add>, %123, %cst_47 [1] : vector<16x32xf32> to vector<16xf32>
    %129 = vector.shape_cast %128 : vector<16xf32> to vector<16x1xf32>
    %cst_48 = arith.constant 3.200000e+01 : f32
    %130 = vector.broadcast %cst_48 : f32 to vector<16x1xf32>
    %131 = arith.divf %129, %130 : vector<16x1xf32>
    %132 = vector.broadcast %131 : vector<16x1xf32> to vector<16x32xf32>
    %133 = arith.subf %123, %132 : vector<16x32xf32>
    %134 = arith.mulf %133, %133 : vector<16x32xf32>
    %cst_49 = arith.constant dense<0.000000e+00> : vector<16xf32>
    %135 = vector.multi_reduction <add>, %134, %cst_49 [1] : vector<16x32xf32> to vector<16xf32>
    %136 = vector.shape_cast %135 : vector<16xf32> to vector<16x1xf32>
    %cst_50 = arith.constant 3.200000e+01 : f32
    %137 = vector.broadcast %cst_50 : f32 to vector<16x1xf32>
    %138 = arith.divf %136, %137 : vector<16x1xf32>
    %139 = vector.broadcast %131 : vector<16x1xf32> to vector<16x32xf32>
    %140 = arith.subf %123, %139 : vector<16x32xf32>
    %cst_51 = arith.constant 9.99999996E-13 : f32
    %141 = vector.broadcast %cst_51 : f32 to vector<16x1xf32>
    %142 = arith.addf %138, %141 : vector<16x1xf32>
    %143 = math.rsqrt %142 : vector<16x1xf32>
    %144 = vector.broadcast %143 : vector<16x1xf32> to vector<16x32xf32>
    %145 = arith.mulf %140, %144 : vector<16x32xf32>
    %146 = vector.broadcast %125 : vector<1x32xf32> to vector<16x32xf32>
    %147 = arith.mulf %145, %146 : vector<16x32xf32>
    %148 = vector.broadcast %127 : vector<1x32xf32> to vector<16x32xf32>
    %149 = arith.addf %147, %148 : vector<16x32xf32>
    %c0_52 = arith.constant 0 : index
    %c0_53 = arith.constant 0 : index
    %c0_54 = arith.constant 0 : index
    %150 = vector.load %arg12[%c0_52, %c0_53, %c0_54] : memref<1x32x64xf32, #tpu.memory_space<vmem>>, vector<1x32x64xf32>
    %151 = vector.shape_cast %150 : vector<1x32x64xf32> to vector<32x64xf32>
    %cst_55 = arith.constant dense<0.000000e+00> : vector<16x64xf32>
    %152 = tpu.matmul %149, %151, %cst_55 {dimension_numbers = #tpu.dot_dimension_numbers<[1], [0], [0], [1], [0, 0, 1, 1], [], []>} : vector<16x32xf32>, vector<32x64xf32>, vector<16x64xf32> -> vector<16x64xf32>
    %c0_56 = arith.constant 0 : index
    %c0_57 = arith.constant 0 : index
    %c0_58 = arith.constant 0 : index
    %153 = vector.load %arg13[%c0_56, %c0_57, %c0_58] : memref<1x1x64xf32, #tpu.memory_space<vmem>>, vector<1x1x64xf32>
    %154 = vector.shape_cast %153 : vector<1x1x64xf32> to vector<1x64xf32>
    %155 = vector.broadcast %154 : vector<1x64xf32> to vector<16x64xf32>
    %156 = arith.addf %152, %155 : vector<16x64xf32>
    %157 = arith.mulf %156, %156 : vector<16x64xf32>
    %158 = arith.mulf %156, %157 : vector<16x64xf32>
    %cst_59 = arith.constant 4.471500e-02 : f32
    %159 = vector.broadcast %cst_59 : f32 to vector<16x64xf32>
    %160 = arith.mulf %159, %158 : vector<16x64xf32>
    %161 = arith.addf %156, %160 : vector<16x64xf32>
    %cst_60 = arith.constant 0.797884583 : f32
    %162 = vector.broadcast %cst_60 : f32 to vector<16x64xf32>
    %163 = arith.mulf %162, %161 : vector<16x64xf32>
    %164 = math.tanh %163 : vector<16x64xf32>
    %cst_61 = arith.constant 1.000000e+00 : f32
    %165 = vector.broadcast %cst_61 : f32 to vector<16x64xf32>
    %166 = arith.addf %165, %164 : vector<16x64xf32>
    %cst_62 = arith.constant 5.000000e-01 : f32
    %167 = vector.broadcast %cst_62 : f32 to vector<16x64xf32>
    %168 = arith.mulf %167, %166 : vector<16x64xf32>
    %169 = arith.mulf %156, %168 : vector<16x64xf32>
    %c0_63 = arith.constant 0 : index
    %c0_64 = arith.constant 0 : index
    %c0_65 = arith.constant 0 : index
    %170 = vector.load %arg14[%c0_63, %c0_64, %c0_65] : memref<1x64x32xf32, #tpu.memory_space<vmem>>, vector<1x64x32xf32>
    %171 = vector.shape_cast %170 : vector<1x64x32xf32> to vector<64x32xf32>
    %cst_66 = arith.constant dense<0.000000e+00> : vector<16x32xf32>
    %172 = tpu.matmul %169, %171, %cst_66 {dimension_numbers = #tpu.dot_dimension_numbers<[1], [0], [0], [1], [0, 0, 1, 1], [], []>} : vector<16x64xf32>, vector<64x32xf32>, vector<16x32xf32> -> vector<16x32xf32>
    %c0_67 = arith.constant 0 : index
    %c0_68 = arith.constant 0 : index
    %c0_69 = arith.constant 0 : index
    %173 = vector.load %arg15[%c0_67, %c0_68, %c0_69] : memref<1x1x32xf32, #tpu.memory_space<vmem>>, vector<1x1x32xf32>
    %174 = vector.shape_cast %173 : vector<1x1x32xf32> to vector<1x32xf32>
    %175 = vector.broadcast %174 : vector<1x32xf32> to vector<16x32xf32>
    %176 = arith.addf %172, %175 : vector<16x32xf32>
    %177 = arith.addf %176, %149 : vector<16x32xf32>
    %c0_70 = arith.constant 0 : index
    %c0_71 = arith.constant 0 : index
    %c0_72 = arith.constant 0 : index
    %178 = vector.load %arg16[%c0_70, %c0_71, %c0_72] : memref<1x1x32xf32, #tpu.memory_space<vmem>>, vector<1x1x32xf32>
    %179 = vector.shape_cast %178 : vector<1x1x32xf32> to vector<1x32xf32>
    %c0_73 = arith.constant 0 : index
    %c0_74 = arith.constant 0 : index
    %c0_75 = arith.constant 0 : index
    %180 = vector.load %arg17[%c0_73, %c0_74, %c0_75] : memref<1x1x32xf32, #tpu.memory_space<vmem>>, vector<1x1x32xf32>
    %181 = vector.shape_cast %180 : vector<1x1x32xf32> to vector<1x32xf32>
    %cst_76 = arith.constant dense<0.000000e+00> : vector<16xf32>
    %182 = vector.multi_reduction <add>, %177, %cst_76 [1] : vector<16x32xf32> to vector<16xf32>
    %183 = vector.shape_cast %182 : vector<16xf32> to vector<16x1xf32>
    %cst_77 = arith.constant 3.200000e+01 : f32
    %184 = vector.broadcast %cst_77 : f32 to vector<16x1xf32>
    %185 = arith.divf %183, %184 : vector<16x1xf32>
    %186 = vector.broadcast %185 : vector<16x1xf32> to vector<16x32xf32>
    %187 = arith.subf %177, %186 : vector<16x32xf32>
    %188 = arith.mulf %187, %187 : vector<16x32xf32>
    %cst_78 = arith.constant dense<0.000000e+00> : vector<16xf32>
    %189 = vector.multi_reduction <add>, %188, %cst_78 [1] : vector<16x32xf32> to vector<16xf32>
    %190 = vector.shape_cast %189 : vector<16xf32> to vector<16x1xf32>
    %cst_79 = arith.constant 3.200000e+01 : f32
    %191 = vector.broadcast %cst_79 : f32 to vector<16x1xf32>
    %192 = arith.divf %190, %191 : vector<16x1xf32>
    %193 = vector.broadcast %185 : vector<16x1xf32> to vector<16x32xf32>
    %194 = arith.subf %177, %193 : vector<16x32xf32>
    %cst_80 = arith.constant 9.99999996E-13 : f32
    %195 = vector.broadcast %cst_80 : f32 to vector<16x1xf32>
    %196 = arith.addf %192, %195 : vector<16x1xf32>
    %197 = math.rsqrt %196 : vector<16x1xf32>
    %198 = vector.broadcast %197 : vector<16x1xf32> to vector<16x32xf32>
    %199 = arith.mulf %194, %198 : vector<16x32xf32>
    %200 = vector.broadcast %179 : vector<1x32xf32> to vector<16x32xf32>
    %201 = arith.mulf %199, %200 : vector<16x32xf32>
    %202 = vector.broadcast %181 : vector<1x32xf32> to vector<16x32xf32>
    %203 = arith.addf %201, %202 : vector<16x32xf32>
    %204 = vector.shape_cast %203 : vector<16x32xf32> to vector<2x8x32xf32>
    %c0_81 = arith.constant 0 : index
    %c0_82 = arith.constant 0 : index
    %c0_83 = arith.constant 0 : index
    %205 = vector.load %arg20[%c0_81, %c0_82, %c0_83] : memref<2x8x32xf32, #tpu.memory_space<vmem>>, vector<2x8x32xf32>
    tpu.vector_store %arg20[%c0_81, %c0_82, %c0_83], %204 {strides = array<i32>} : memref<2x8x32xf32, #tpu.memory_space<vmem>>, vector<2x8x32xf32>,
    %c0_84 = arith.constant 0 : index
    %c0_85 = arith.constant 0 : index
    %206 = vector.load %arg21[%c0_84, %c0_85] : memref<2x32xf32, #tpu.memory_space<vmem>>, vector<2x32xf32>
    %c0_86 = arith.constant 0 : index
    %c0_87 = arith.constant 0 : index
    %207 = vector.load %arg3[%c0_86, %c0_87] : memref<2x8xf32, #tpu.memory_space<vmem>>, vector<2x8xf32>
    %208 = vector.shape_cast %207 : vector<2x8xf32> to vector<2x8x1xf32>
    %209 = vector.broadcast %208 : vector<2x8x1xf32> to vector<2x8x32xf32>
    %210 = arith.mulf %204, %209 : vector<2x8x32xf32>
    %cst_88 = arith.constant dense<0.000000e+00> : vector<2x32xf32>
    %211 = vector.multi_reduction <add>, %210, %cst_88 [1] : vector<2x8x32xf32> to vector<2x32xf32>
    %212 = arith.addf %206, %211 : vector<2x32xf32>
    %c0_89 = arith.constant 0 : index
    %c0_90 = arith.constant 0 : index
    %213 = vector.load %arg21[%c0_89, %c0_90] : memref<2x32xf32, #tpu.memory_space<vmem>>, vector<2x32xf32>
    tpu.vector_store %arg21[%c0_89, %c0_90], %212 {strides = array<i32>} : memref<2x32xf32, #tpu.memory_space<vmem>>, vector<2x32xf32>,
    %c1_i32 = arith.constant 1 : i32
    %214 = arith.cmpi eq, %arg0, %c1_i32 : i32
    %215 = arith.extui %214 : i1 to i32
    %c0_i32_91 = arith.constant 0 : i32
    %216 = arith.cmpi ne, %215, %c0_i32_91 : i32
    scf.if %216 {
      %c0_92 = arith.constant 0 : index
      %c0_93 = arith.constant 0 : index
      %c0_94 = arith.constant 0 : index
      %217 = vector.load %arg18[%c0_92, %c0_93, %c0_94] : memref<2x8x32xf32, #tpu.memory_space<vmem>>, vector<2x8x32xf32>
      tpu.vector_store %arg18[%c0_92, %c0_93, %c0_94], %204 {strides = array<i32>} : memref<2x8x32xf32, #tpu.memory_space<vmem>>, vector<2x8x32xf32>,
      %c0_95 = arith.constant 0 : index
      %c0_96 = arith.constant 0 : index
      %218 = vector.load %arg3[%c0_95, %c0_96] : memref<2x8xf32, #tpu.memory_space<vmem>>, vector<2x8xf32>
      %cst_97 = arith.constant dense<0.000000e+00> : vector<2xf32>
      %219 = vector.multi_reduction <add>, %218, %cst_97 [1] : vector<2x8xf32> to vector<2xf32>
      %220 = vector.shape_cast %219 : vector<2xf32> to vector<2x1xf32>
      %c0_98 = arith.constant 0 : index
      %c0_99 = arith.constant 0 : index
      %221 = vector.load %arg21[%c0_98, %c0_99] : memref<2x32xf32, #tpu.memory_space<vmem>>, vector<2x32xf32>
      %222 = tpu.reciprocal %220 {approx = true} : vector<2x1xf32> -> vector<2x1xf32>
      %223 = vector.broadcast %222 : vector<2x1xf32> to vector<2x32xf32>
      %224 = arith.mulf %221, %223 : vector<2x32xf32>
      %c0_100 = arith.constant 0 : index
      %c0_101 = arith.constant 0 : index
      %225 = vector.load %arg19[%c0_100, %c0_101] : memref<2x32xf32, #tpu.memory_space<vmem>>, vector<2x32xf32>
      tpu.vector_store %arg19[%c0_100, %c0_101], %224 {strides = array<i32>} : memref<2x32xf32, #tpu.memory_space<vmem>>, vector<2x32xf32>,
    } else {
    }
    return
  }
  func.func @transform_0(%arg0: i32) -> (i32, i32, i32) {
    %c0_i32 = arith.constant 0 : i32
    %c0_i32_0 = arith.constant 0 : i32
    %c0_i32_1 = arith.constant 0 : i32
    %c0_i32_2 = arith.constant 0 : i32
    return %c0_i32, %c0_i32_0, %c0_i32_1 : i32, i32, i32
  }
  func.func @transform_1(%arg0: i32) -> (i32, i32) {
    %c0_i32 = arith.constant 0 : i32
    %c0_i32_0 = arith.constant 0 : i32
    %c0_i32_1 = arith.constant 0 : i32
    return %c0_i32, %c0_i32_0 : i32, i32
  }
  func.func @transform_2(%arg0: i32) -> (i32, i32) {
    %c0_i32 = arith.constant 0 : i32
    %c0_i32_0 = arith.constant 0 : i32
    %c0_i32_1 = arith.constant 0 : i32
    return %c0_i32, %c0_i32_0 : i32, i32
  }
  func.func @transform_3(%arg0: i32) -> (i32, i32) {
    %c0_i32 = arith.constant 0 : i32
    %c0_i32_0 = arith.constant 0 : i32
    %c0_i32_1 = arith.constant 0 : i32
    return %c0_i32, %c0_i32_0 : i32, i32
  }
  func.func @transform_4(%arg0: i32) -> (i32, i32) {
    %c0_i32 = arith.constant 0 : i32
    %c0_i32_0 = arith.constant 0 : i32
    %c0_i32_1 = arith.constant 0 : i32
    return %c0_i32, %c0_i32_0 : i32, i32
  }
  func.func @transform_5(%arg0: i32) -> (i32, i32, i32) {
    %c0_i32 = arith.constant 0 : i32
    %c0_i32_0 = arith.constant 0 : i32
    %c0_i32_1 = arith.constant 0 : i32
    return %arg0, %c0_i32, %c0_i32_0 : i32, i32, i32
  }
  func.func @transform_6(%arg0: i32) -> (i32, i32, i32) {
    %c0_i32 = arith.constant 0 : i32
    %c0_i32_0 = arith.constant 0 : i32
    %c0_i32_1 = arith.constant 0 : i32
    return %arg0, %c0_i32, %c0_i32_0 : i32, i32, i32
  }
  func.func @transform_7(%arg0: i32) -> (i32, i32, i32) {
    %c0_i32 = arith.constant 0 : i32
    %c0_i32_0 = arith.constant 0 : i32
    %c0_i32_1 = arith.constant 0 : i32
    return %arg0, %c0_i32, %c0_i32_0 : i32, i32, i32
  }
  func.func @transform_8(%arg0: i32) -> (i32, i32, i32) {
    %c0_i32 = arith.constant 0 : i32
    %c0_i32_0 = arith.constant 0 : i32
    %c0_i32_1 = arith.constant 0 : i32
    return %arg0, %c0_i32, %c0_i32_0 : i32, i32, i32
  }
  func.func @transform_9(%arg0: i32) -> (i32, i32, i32) {
    %c0_i32 = arith.constant 0 : i32
    %c0_i32_0 = arith.constant 0 : i32
    %c0_i32_1 = arith.constant 0 : i32
    return %arg0, %c0_i32, %c0_i32_0 : i32, i32, i32
  }
  func.func @transform_10(%arg0: i32) -> (i32, i32, i32) {
    %c0_i32 = arith.constant 0 : i32
    %c0_i32_0 = arith.constant 0 : i32
    %c0_i32_1 = arith.constant 0 : i32
    return %arg0, %c0_i32, %c0_i32_0 : i32, i32, i32
  }
  func.func @transform_11(%arg0: i32) -> (i32, i32, i32) {
    %c0_i32 = arith.constant 0 : i32
    %c0_i32_0 = arith.constant 0 : i32
    %c0_i32_1 = arith.constant 0 : i32
    return %arg0, %c0_i32, %c0_i32_0 : i32, i32, i32
  }
  func.func @transform_12(%arg0: i32) -> (i32, i32, i32) {
    %c0_i32 = arith.constant 0 : i32
    %c0_i32_0 = arith.constant 0 : i32
    %c0_i32_1 = arith.constant 0 : i32
    return %arg0, %c0_i32, %c0_i32_0 : i32, i32, i32
  }
  func.func @transform_13(%arg0: i32) -> (i32, i32, i32) {
    %c0_i32 = arith.constant 0 : i32
    %c0_i32_0 = arith.constant 0 : i32
    %c0_i32_1 = arith.constant 0 : i32
    return %arg0, %c0_i32, %c0_i32_0 : i32, i32, i32
  }
  func.func @transform_14(%arg0: i32) -> (i32, i32, i32) {
    %c0_i32 = arith.constant 0 : i32
    %c0_i32_0 = arith.constant 0 : i32
    %c0_i32_1 = arith.constant 0 : i32
    return %arg0, %c0_i32, %c0_i32_0 : i32, i32, i32
  }
  func.func @transform_15(%arg0: i32) -> (i32, i32, i32) {
    %c0_i32 = arith.constant 0 : i32
    %c0_i32_0 = arith.constant 0 : i32
    %c0_i32_1 = arith.constant 0 : i32
    return %arg0, %c0_i32, %c0_i32_0 : i32, i32, i32
  }
  func.func @transform_16(%arg0: i32) -> (i32, i32, i32) {
    %c0_i32 = arith.constant 0 : i32
    %c0_i32_0 = arith.constant 0 : i32
    %c0_i32_1 = arith.constant 0 : i32
    return %arg0, %c0_i32, %c0_i32_0 : i32, i32, i32
  }
  func.func @transform_17(%arg0: i32) -> (i32, i32, i32) {
    %c0_i32 = arith.constant 0 : i32
    %c0_i32_0 = arith.constant 0 : i32
    %c0_i32_1 = arith.constant 0 : i32
    %c0_i32_2 = arith.constant 0 : i32
    return %c0_i32, %c0_i32_0, %c0_i32_1 : i32, i32, i32
  }
  func.func @transform_18(%arg0: i32) -> (i32, i32) {
    %c0_i32 = arith.constant 0 : i32
    %c0_i32_0 = arith.constant 0 : i32
    %c0_i32_1 = arith.constant 0 : i32
    return %c0_i32, %c0_i32_0 : i32, i32
  }
}

</mosaic_0001>

<llo_original>
// kernel: tpu_custom_call.1
$region0: #{tpu_custom_call.1}
  #allocation0 [shape = 'u32[]', space=smem, size = 0x4, offset = 0x4, fixed_abs, tag = 'smem constant byte address 0x4 - core index']
  #allocation1 [shape = 'u32[144,128]{1,0:T(1,128)}', space=vmem, size = 0x12000, scoped, tag = 'internal scratch']
  #allocation2 [shape = 'f32[2,8,32]{2,1,0:T(8,128)}', space=vmem, size = 0x2000, scoped, tag = 'scratch operand']
  #allocation3 [shape = 'f32[2,32]{1,0:T(2,128)}', space=vmem, size = 0x400, scoped, tag = 'scratch operand']
  %s0 = inlined_call_operand.hbm [shape: f32[2,8,32], index: 0, kind: input, shape index: {}]
  %s1 = inlined_call_operand.vmem [shape: f32[2,8], index: 1, kind: input, shape index: {}]
  %s2 = inlined_call_operand.vmem [shape: f32[2,8], index: 2, kind: input, shape index: {}]
  %s3 = inlined_call_operand.hbm [shape: f32[1,32], index: 3, kind: input, shape index: {}]
  %s4 = inlined_call_operand.hbm [shape: f32[1,32], index: 4, kind: input, shape index: {}]
  %s5 = inlined_call_operand.vmem [shape: f32[2,32,96], index: 5, kind: input, shape index: {}]
  %s6 = inlined_call_operand.vmem [shape: f32[2,1,96], index: 6, kind: input, shape index: {}]
  %s7 = inlined_call_operand.vmem [shape: f32[2,32,32], index: 7, kind: input, shape index: {}]
  %s8 = inlined_call_operand.vmem [shape: f32[2,1,32], index: 8, kind: input, shape index: {}]
  %s9 = inlined_call_operand.vmem [shape: f32[2,1,32], index: 9, kind: input, shape index: {}]
  %s10 = inlined_call_operand.vmem [shape: f32[2,1,32], index: 10, kind: input, shape index: {}]
  %s11 = inlined_call_operand.vmem [shape: f32[2,32,64], index: 11, kind: input, shape index: {}]
  %s12 = inlined_call_operand.vmem [shape: f32[2,1,64], index: 12, kind: input, shape index: {}]
  %s13 = inlined_call_operand.vmem [shape: f32[2,64,32], index: 13, kind: input, shape index: {}]
  %s14 = inlined_call_operand.vmem [shape: f32[2,1,32], index: 14, kind: input, shape index: {}]
  %s15 = inlined_call_operand.vmem [shape: f32[2,1,32], index: 15, kind: input, shape index: {}]
  %s16 = inlined_call_operand.vmem [shape: f32[2,1,32], index: 16, kind: input, shape index: {}]
  %s17 = inlined_call_operand.hbm [shape: f32[2,8,32], index: 17, kind: output, shape index: {0}]
  %s18 = inlined_call_operand.hbm [shape: f32[2,32], index: 18, kind: output, shape index: {1}]
  %19 = xla_tuple %s17, %s18
  %s20 = sld [smem:[#allocation0]]
  $region129: #{tpu_custom_call.1} parent=0
    _
  %s22 = ssub.s32 1, %s20
  %s23 = scalar_select 0, %s22, %s20
  $region1: #{tpu_custom_call.1} parent=0
    #allocation4 [shape = 'u8[8192]{0}', space=vmem, size = 0x2000, scoped, tag = 'input window, operand 0, single buffered']
    #allocation5 [shape = 's32[2]{0}', space=sflag, size = 0x8, scoped, tag = 'scoped memory for tpu_custom_call.1']
    #allocation6 [shape = 's32[2]{0}', space=sflag, size = 0x8, scoped, tag = 'scoped memory for tpu_custom_call.1']
    #allocation7 [shape = 'u8[512]{0}', space=vmem, size = 0x400, scoped, tag = 'input window, operand 3, single buffered']
    #allocation8 [shape = 's32[1]{0}', space=sflag, size = 0x4, scoped, tag = 'scoped memory for tpu_custom_call.1']
    #allocation9 [shape = 'u8[512]{0}', space=vmem, size = 0x400, scoped, tag = 'input window, operand 4, single buffered']
    #allocation10 [shape = 'u8[8192]{0}', space=vmem, size = 0x2000, scoped, tag = 'output window, operand 0, single buffered']
    #allocation11 [shape = 'u8[1024]{0}', space=vmem, size = 0x400, scoped, tag = 'output window, operand 1, single buffered']
    #allocation12 [shape = 's32[1]{0}', space=sflag, size = 0x4, scoped, tag = 'scoped memory for tpu_custom_call.1']
    %24 = vsyncpa [#allocation5], 0
    %25 = vsyncpa [#allocation8], 0
    %26 = vsyncpa [#allocation6], 0
    %27 = vsyncpa [#allocation12], 0
    loop: start=0, step=1, limit=4
    $region2: #{tpu_custom_call.1} parent=1 // loop_pre_header
      _
    $region3: #{tpu_custom_call.1} parent=1 // loop_header
      %s29 = sphi 0, %s33
      %p30 = scmp.ge.s32.totalorder %s29, 4
      %s37 = sphi 0, %s37
      %s39 = sphi 0, %s37
      %s40 = sphi 0, %s39
      %s54 = sphi 0, %s40
      %s58 = sphi 0, %s58
      %s60 = sphi 0, %s58
      %s61 = sphi 0, %s60
      %s75 = sphi 0, %s61
      %s79 = sphi 0, %s79
      %s81 = sphi 0, %s79
      %s82 = sphi 0, %s81
      %s96 = sphi 0, %s82
      %s100 = sphi 0, %s100
      %s102 = sphi 0, %s100
      %s103 = sphi 0, %s102
      %s117 = sphi 0, %s103
      %s121 = sphi 0, %s121
      %s123 = sphi 0, %s121
      %s124 = sphi 0, %s123
      %s138 = sphi 0, %s124
      %s144 = sphi 0, %s146
      %s147 = sphi 0, %s144
      %s148 = sphi 0, %s147
      %s164 = sphi 0, %s148
      %s170 = sphi 0, %s172
      %s173 = sphi 0, %s170
      %s174 = sphi 0, %s173
      %s190 = sphi 0, %s174
      %s196 = sphi 0, %s198
      %s199 = sphi 0, %s196
      %s200 = sphi 0, %s199
      %s216 = sphi 0, %s200
      %s222 = sphi 0, %s224
      %s225 = sphi 0, %s222
      %s226 = sphi 0, %s225
      %s242 = sphi 0, %s226
      %s248 = sphi 0, %s250
      %s251 = sphi 0, %s248
      %s252 = sphi 0, %s251
      %s268 = sphi 0, %s252
      %s274 = sphi 0, %s276
      %s277 = sphi 0, %s274
      %s278 = sphi 0, %s277
      %s294 = sphi 0, %s278
      %s300 = sphi 0, %s302
      %s303 = sphi 0, %s300
      %s304 = sphi 0, %s303
      %s320 = sphi 0, %s304
      %s326 = sphi 0, %s328
      %s329 = sphi 0, %s326
      %s330 = sphi 0, %s329
      %s346 = sphi 0, %s330
      %s352 = sphi 0, %s354
      %s355 = sphi 0, %s352
      %s356 = sphi 0, %s355
      %s372 = sphi 0, %s356
      %s378 = sphi 0, %s380
      %s381 = sphi 0, %s378
      %s382 = sphi 0, %s381
      %s398 = sphi 0, %s382
      %s404 = sphi 0, %s406
      %s407 = sphi 0, %s404
      %s408 = sphi 0, %s407
      %s424 = sphi 0, %s408
      %s430 = sphi 0, %s432
      %s433 = sphi 0, %s430
      %s434 = sphi 0, %s433
      %s450 = sphi 0, %s434
      %s454 = sphi 0, %s454
      %s456 = sphi 0, %s454
      %s457 = sphi 0, %s456
      %s471 = sphi 0, %s457
      %s475 = sphi 0, %s475
      %s477 = sphi 0, %s475
      %s478 = sphi 0, %s477
      %s492 = sphi 0, %s478
    $region4: #{tpu_custom_call.1} parent=1 // loop_header_branch
      %32 = sbr.rel (%p30) target = $region8
    $region5: #{tpu_custom_call.1} parent=1 // loop_body
      %s34 = ssub.s32 %s29, 1
      %s35 = ssub.s32 %s29, 2
      %s36 = sadd.s32 %s29, 1
      %s38 = sadd.s32 %s37, 1
      %p41 = scmp.eq.s32.totalorder %s29, 1
      %p42 = scmp.ne.s32.totalorder %s37, %s39
      %p43 = scmp.eq.s32.totalorder %s29, 0
      %p44 = por %p42, %p43
      %p45 = scmp.ne.s32.totalorder %s37, %s39
      %p46 = scmp.eq.s32.totalorder %s34, 1
      %p47 = por %p45, %p46
      %p48 = scmp.ne.s32.totalorder %s39, %s40
      %p49 = scmp.eq.s32.totalorder %s34, 0
      %p50 = por %p48, %p49
      %p51 = scmp.ne.s32.totalorder %s39, %s40
      %p52 = scmp.eq.s32.totalorder %s35, 1
      %p53 = por %p51, %p52
      %p55 = scmp.ne.s32.totalorder %s40, %s54
      %p56 = scmp.eq.s32.totalorder %s35, 0
      %p57 = por %p55, %p56
      %s59 = sadd.s32 %s58, 1
      %p62 = scmp.eq.s32.totalorder %s29, 1
      %p63 = scmp.ne.s32.totalorder %s58, %s60
      %p64 = scmp.eq.s32.totalorder %s29, 0
      %p65 = por %p63, %p64
      %p66 = scmp.ne.s32.totalorder %s58, %s60
      %p67 = scmp.eq.s32.totalorder %s34, 1
      %p68 = por %p66, %p67
      %p69 = scmp.ne.s32.totalorder %s60, %s61
      %p70 = scmp.eq.s32.totalorder %s34, 0
      %p71 = por %p69, %p70
      %p72 = scmp.ne.s32.totalorder %s60, %s61
      %p73 = scmp.eq.s32.totalorder %s35, 1
      %p74 = por %p72, %p73
      %p76 = scmp.ne.s32.totalorder %s61, %s75
      %p77 = scmp.eq.s32.totalorder %s35, 0
      %p78 = por %p76, %p77
      %s80 = sadd.s32 %s79, 1
      %p83 = scmp.eq.s32.totalorder %s29, 1
      %p84 = scmp.ne.s32.totalorder %s79, %s81
      %p85 = scmp.eq.s32.totalorder %s29, 0
      %p86 = por %p84, %p85
      %p87 = scmp.ne.s32.totalorder %s79, %s81
      %p88 = scmp.eq.s32.totalorder %s34, 1
      %p89 = por %p87, %p88
      %p90 = scmp.ne.s32.totalorder %s81, %s82
      %p91 = scmp.eq.s32.totalorder %s34, 0
      %p92 = por %p90, %p91
      %p93 = scmp.ne.s32.totalorder %s81, %s82
      %p94 = scmp.eq.s32.totalorder %s35, 1
      %p95 = por %p93, %p94
      %p97 = scmp.ne.s32.totalorder %s82, %s96
      %p98 = scmp.eq.s32.totalorder %s35, 0
      %p99 = por %p97, %p98
      %s101 = sadd.s32 %s100, 1
      %p104 = scmp.eq.s32.totalorder %s29, 1
      %p105 = scmp.ne.s32.totalorder %s100, %s102
      %p106 = scmp.eq.s32.totalorder %s29, 0
      %p107 = por %p105, %p106
      %p108 = scmp.ne.s32.totalorder %s100, %s102
      %p109 = scmp.eq.s32.totalorder %s34, 1
      %p110 = por %p108, %p109
      %p111 = scmp.ne.s32.totalorder %s102, %s103
      %p112 = scmp.eq.s32.totalorder %s34, 0
      %p113 = por %p111, %p112
      %p114 = scmp.ne.s32.totalorder %s102, %s103
      %p115 = scmp.eq.s32.totalorder %s35, 1
      %p116 = por %p114, %p115
      %p118 = scmp.ne.s32.totalorder %s103, %s117
      %p119 = scmp.eq.s32.totalorder %s35, 0
      %p120 = por %p118, %p119
      %s122 = sadd.s32 %s121, 1
      %p125 = scmp.eq.s32.totalorder %s29, 1
      %p126 = scmp.ne.s32.totalorder %s121, %s123
      %p127 = scmp.eq.s32.totalorder %s29, 0
      %p128 = por %p126, %p127
      %p129 = scmp.ne.s32.totalorder %s121, %s123
      %p130 = scmp.eq.s32.totalorder %s34, 1
      %p131 = por %p129, %p130
      %p132 = scmp.ne.s32.totalorder %s123, %s124
      %p133 = scmp.eq.s32.totalorder %s34, 0
      %p134 = por %p132, %p133
      %p135 = scmp.ne.s32.totalorder %s123, %s124
      %p136 = scmp.eq.s32.totalorder %s35, 1
      %p137 = por %p135, %p136
      %p139 = scmp.ne.s32.totalorder %s124, %s138
      %p140 = scmp.eq.s32.totalorder %s35, 0
      %p141 = por %p139, %p140
      %s142 = ssub.s32 %s29, %s36
      %p143 = scmp.eq.s32.totalorder %s142, 0
      %s145 = sadd.s32 %s144, 1
      %s146 = scalar_select %p143, %s144, %s145
      %p149 = pneg %p143
      %p150 = scmp.eq.s32.totalorder %s29, 1
      %p151 = por %p149, %p150
      %p152 = scmp.ne.s32.totalorder %s144, %s147
      %p153 = scmp.eq.s32.totalorder %s29, 0
      %p154 = por %p152, %p153
      %p155 = scmp.ne.s32.totalorder %s144, %s147
      %p156 = scmp.eq.s32.totalorder %s34, 1
      %p157 = por %p155, %p156
      %p158 = scmp.ne.s32.totalorder %s147, %s148
      %p159 = scmp.eq.s32.totalorder %s34, 0
      %p160 = por %p158, %p159
      %p161 = scmp.ne.s32.totalorder %s147, %s148
      %p162 = scmp.eq.s32.totalorder %s35, 1
      %p163 = por %p161, %p162
      %p165 = scmp.ne.s32.totalorder %s148, %s164
      %p166 = scmp.eq.s32.totalorder %s35, 0
      %p167 = por %p165, %p166
      %s168 = ssub.s32 %s29, %s36
      %p169 = scmp.eq.s32.totalorder %s168, 0
      %s171 = sadd.s32 %s170, 1
      %s172 = scalar_select %p169, %s170, %s171
      %p175 = pneg %p169
      %p176 = scmp.eq.s32.totalorder %s29, 1
      %p177 = por %p175, %p176
      %p178 = scmp.ne.s32.totalorder %s170, %s173
      %p179 = scmp.eq.s32.totalorder %s29, 0
      %p180 = por %p178, %p179
      %p181 = scmp.ne.s32.totalorder %s170, %s173
      %p182 = scmp.eq.s32.totalorder %s34, 1
      %p183 = por %p181, %p182
      %p184 = scmp.ne.s32.totalorder %s173, %s174
      %p185 = scmp.eq.s32.totalorder %s34, 0
      %p186 = por %p184, %p185
      %p187 = scmp.ne.s32.totalorder %s173, %s174
      %p188 = scmp.eq.s32.totalorder %s35, 1
      %p189 = por %p187, %p188
      %p191 = scmp.ne.s32.totalorder %s174, %s190
      %p192 = scmp.eq.s32.totalorder %s35, 0
      %p193 = por %p191, %p192
      %s194 = ssub.s32 %s29, %s36
      %p195 = scmp.eq.s32.totalorder %s194, 0
      %s197 = sadd.s32 %s196, 1
      %s198 = scalar_select %p195, %s196, %s197
      %p201 = pneg %p195
      %p202 = scmp.eq.s32.totalorder %s29, 1
      %p203 = por %p201, %p202
      %p204 = scmp.ne.s32.totalorder %s196, %s199
      %p205 = scmp.eq.s32.totalorder %s29, 0
      %p206 = por %p204, %p205
      %p207 = scmp.ne.s32.totalorder %s196, %s199
      %p208 = scmp.eq.s32.totalorder %s34, 1
      %p209 = por %p207, %p208
      %p210 = scmp.ne.s32.totalorder %s199, %s200
      %p211 = scmp.eq.s32.totalorder %s34, 0
      %p212 = por %p210, %p211
      %p213 = scmp.ne.s32.totalorder %s199, %s200
      %p214 = scmp.eq.s32.totalorder %s35, 1
      %p215 = por %p213, %p214
      %p217 = scmp.ne.s32.totalorder %s200, %s216
      %p218 = scmp.eq.s32.totalorder %s35, 0
      %p219 = por %p217, %p218
      %s220 = ssub.s32 %s29, %s36
      %p221 = scmp.eq.s32.totalorder %s220, 0
      %s223 = sadd.s32 %s222, 1
      %s224 = scalar_select %p221, %s222, %s223
      %p227 = pneg %p221
      %p228 = scmp.eq.s32.totalorder %s29, 1
      %p229 = por %p227, %p228
      %p230 = scmp.ne.s32.totalorder %s222, %s225
      %p231 = scmp.eq.s32.totalorder %s29, 0
      %p232 = por %p230, %p231
      %p233 = scmp.ne.s32.totalorder %s222, %s225
      %p234 = scmp.eq.s32.totalorder %s34, 1
      %p235 = por %p233, %p234
      %p236 = scmp.ne.s32.totalorder %s225, %s226
      %p237 = scmp.eq.s32.totalorder %s34, 0
      %p238 = por %p236, %p237
      %p239 = scmp.ne.s32.totalorder %s225, %s226
      %p240 = scmp.eq.s32.totalorder %s35, 1
      %p241 = por %p239, %p240
      %p243 = scmp.ne.s32.totalorder %s226, %s242
      %p244 = scmp.eq.s32.totalorder %s35, 0
      %p245 = por %p243, %p244
      %s246 = ssub.s32 %s29, %s36
      %p247 = scmp.eq.s32.totalorder %s246, 0
      %s249 = sadd.s32 %s248, 1
      %s250 = scalar_select %p247, %s248, %s249
      %p253 = pneg %p247
      %p254 = scmp.eq.s32.totalorder %s29, 1
      %p255 = por %p253, %p254
      %p256 = scmp.ne.s32.totalorder %s248, %s251
      %p257 = scmp.eq.s32.totalorder %s29, 0
      %p258 = por %p256, %p257
      %p259 = scmp.ne.s32.totalorder %s248, %s251
      %p260 = scmp.eq.s32.totalorder %s34, 1
      %p261 = por %p259, %p260
      %p262 = scmp.ne.s32.totalorder %s251, %s252
      %p263 = scmp.eq.s32.totalorder %s34, 0
      %p264 = por %p262, %p263
      %p265 = scmp.ne.s32.totalorder %s251, %s252
      %p266 = scmp.eq.s32.totalorder %s35, 1
      %p267 = por %p265, %p266
      %p269 = scmp.ne.s32.totalorder %s252, %s268
      %p270 = scmp.eq.s32.totalorder %s35, 0
      %p271 = por %p269, %p270
      %s272 = ssub.s32 %s29, %s36
      %p273 = scmp.eq.s32.totalorder %s272, 0
      %s275 = sadd.s32 %s274, 1
      %s276 = scalar_select %p273, %s274, %s275
      %p279 = pneg %p273
      %p280 = scmp.eq.s32.totalorder %s29, 1
      %p281 = por %p279, %p280
      %p282 = scmp.ne.s32.totalorder %s274, %s277
      %p283 = scmp.eq.s32.totalorder %s29, 0
      %p284 = por %p282, %p283
      %p285 = scmp.ne.s32.totalorder %s274, %s277
      %p286 = scmp.eq.s32.totalorder %s34, 1
      %p287 = por %p285, %p286
      %p288 = scmp.ne.s32.totalorder %s277, %s278
      %p289 = scmp.eq.s32.totalorder %s34, 0
      %p290 = por %p288, %p289
      %p291 = scmp.ne.s32.totalorder %s277, %s278
      %p292 = scmp.eq.s32.totalorder %s35, 1
      %p293 = por %p291, %p292
      %p295 = scmp.ne.s32.totalorder %s278, %s294
      %p296 = scmp.eq.s32.totalorder %s35, 0
      %p297 = por %p295, %p296
      %s298 = ssub.s32 %s29, %s36
      %p299 = scmp.eq.s32.totalorder %s298, 0
      %s301 = sadd.s32 %s300, 1
      %s302 = scalar_select %p299, %s300, %s301
      %p305 = pneg %p299
      %p306 = scmp.eq.s32.totalorder %s29, 1
      %p307 = por %p305, %p306
      %p308 = scmp.ne.s32.totalorder %s300, %s303
      %p309 = scmp.eq.s32.totalorder %s29, 0
      %p310 = por %p308, %p309
      %p311 = scmp.ne.s32.totalorder %s300, %s303
      %p312 = scmp.eq.s32.totalorder %s34, 1
      %p313 = por %p311, %p312
      %p314 = scmp.ne.s32.totalorder %s303, %s304
      %p315 = scmp.eq.s32.totalorder %s34, 0
      %p316 = por %p314, %p315
      %p317 = scmp.ne.s32.totalorder %s303, %s304
      %p318 = scmp.eq.s32.totalorder %s35, 1
      %p319 = por %p317, %p318
      %p321 = scmp.ne.s32.totalorder %s304, %s320
      %p322 = scmp.eq.s32.totalorder %s35, 0
      %p323 = por %p321, %p322
      %s324 = ssub.s32 %s29, %s36
      %p325 = scmp.eq.s32.totalorder %s324, 0
      %s327 = sadd.s32 %s326, 1
      %s328 = scalar_select %p325, %s326, %s327
      %p331 = pneg %p325
      %p332 = scmp.eq.s32.totalorder %s29, 1
      %p333 = por %p331, %p332
      %p334 = scmp.ne.s32.totalorder %s326, %s329
      %p335 = scmp.eq.s32.totalorder %s29, 0
      %p336 = por %p334, %p335
      %p337 = scmp.ne.s32.totalorder %s326, %s329
      %p338 = scmp.eq.s32.totalorder %s34, 1
      %p339 = por %p337, %p338
      %p340 = scmp.ne.s32.totalorder %s329, %s330
      %p341 = scmp.eq.s32.totalorder %s34, 0
      %p342 = por %p340, %p341
      %p343 = scmp.ne.s32.totalorder %s329, %s330
      %p344 = scmp.eq.s32.totalorder %s35, 1
      %p345 = por %p343, %p344
      %p347 = scmp.ne.s32.totalorder %s330, %s346
      %p348 = scmp.eq.s32.totalorder %s35, 0
      %p349 = por %p347, %p348
      %s350 = ssub.s32 %s29, %s36
      %p351 = scmp.eq.s32.totalorder %s350, 0
      %s353 = sadd.s32 %s352, 1
      %s354 = scalar_select %p351, %s352, %s353
      %p357 = pneg %p351
      %p358 = scmp.eq.s32.totalorder %s29, 1
      %p359 = por %p357, %p358
      %p360 = scmp.ne.s32.totalorder %s352, %s355
      %p361 = scmp.eq.s32.totalorder %s29, 0
      %p362 = por %p360, %p361
      %p363 = scmp.ne.s32.totalorder %s352, %s355
      %p364 = scmp.eq.s32.totalorder %s34, 1
      %p365 = por %p363, %p364
      %p366 = scmp.ne.s32.totalorder %s355, %s356
      %p367 = scmp.eq.s32.totalorder %s34, 0
      %p368 = por %p366, %p367
      %p369 = scmp.ne.s32.totalorder %s355, %s356
      %p370 = scmp.eq.s32.totalorder %s35, 1
      %p371 = por %p369, %p370
      %p373 = scmp.ne.s32.totalorder %s356, %s372
      %p374 = scmp.eq.s32.totalorder %s35, 0
      %p375 = por %p373, %p374
      %s376 = ssub.s32 %s29, %s36
      %p377 = scmp.eq.s32.totalorder %s376, 0
      %s379 = sadd.s32 %s378, 1
      %s380 = scalar_select %p377, %s378, %s379
      %p383 = pneg %p377
      %p384 = scmp.eq.s32.totalorder %s29, 1
      %p385 = por %p383, %p384
      %p386 = scmp.ne.s32.totalorder %s378, %s381
      %p387 = scmp.eq.s32.totalorder %s29, 0
      %p388 = por %p386, %p387
      %p389 = scmp.ne.s32.totalorder %s378, %s381
      %p390 = scmp.eq.s32.totalorder %s34, 1
      %p391 = por %p389, %p390
      %p392 = scmp.ne.s32.totalorder %s381, %s382
      %p393 = scmp.eq.s32.totalorder %s34, 0
      %p394 = por %p392, %p393
      %p395 = scmp.ne.s32.totalorder %s381, %s382
      %p396 = scmp.eq.s32.totalorder %s35, 1
      %p397 = por %p395, %p396
      %p399 = scmp.ne.s32.totalorder %s382, %s398
      %p400 = scmp.eq.s32.totalorder %s35, 0
      %p401 = por %p399, %p400
      %s402 = ssub.s32 %s29, %s36
      %p403 = scmp.eq.s32.totalorder %s402, 0
      %s405 = sadd.s32 %s404, 1
      %s406 = scalar_select %p403, %s404, %s405
      %p409 = pneg %p403
      %p410 = scmp.eq.s32.totalorder %s29, 1
      %p411 = por %p409, %p410
      %p412 = scmp.ne.s32.totalorder %s404, %s407
      %p413 = scmp.eq.s32.totalorder %s29, 0
      %p414 = por %p412, %p413
      %p415 = scmp.ne.s32.totalorder %s404, %s407
      %p416 = scmp.eq.s32.totalorder %s34, 1
      %p417 = por %p415, %p416
      %p418 = scmp.ne.s32.totalorder %s407, %s408
      %p419 = scmp.eq.s32.totalorder %s34, 0
      %p420 = por %p418, %p419
      %p421 = scmp.ne.s32.totalorder %s407, %s408
      %p422 = scmp.eq.s32.totalorder %s35, 1
      %p423 = por %p421, %p422
      %p425 = scmp.ne.s32.totalorder %s408, %s424
      %p426 = scmp.eq.s32.totalorder %s35, 0
      %p427 = por %p425, %p426
      %s428 = ssub.s32 %s29, %s36
      %p429 = scmp.eq.s32.totalorder %s428, 0
      %s431 = sadd.s32 %s430, 1
      %s432 = scalar_select %p429, %s430, %s431
      %p435 = pneg %p429
      %p436 = scmp.eq.s32.totalorder %s29, 1
      %p437 = por %p435, %p436
      %p438 = scmp.ne.s32.totalorder %s430, %s433
      %p439 = scmp.eq.s32.totalorder %s29, 0
      %p440 = por %p438, %p439
      %p441 = scmp.ne.s32.totalorder %s430, %s433
      %p442 = scmp.eq.s32.totalorder %s34, 1
      %p443 = por %p441, %p442
      %p444 = scmp.ne.s32.totalorder %s433, %s434
      %p445 = scmp.eq.s32.totalorder %s34, 0
      %p446 = por %p444, %p445
      %p447 = scmp.ne.s32.totalorder %s433, %s434
      %p448 = scmp.eq.s32.totalorder %s35, 1
      %p449 = por %p447, %p448
      %p451 = scmp.ne.s32.totalorder %s434, %s450
      %p452 = scmp.eq.s32.totalorder %s35, 0
      %p453 = por %p451, %p452
      %s455 = sadd.s32 %s454, 1
      %p458 = scmp.eq.s32.totalorder %s29, 1
      %p459 = scmp.ne.s32.totalorder %s454, %s456
      %p460 = scmp.eq.s32.totalorder %s29, 0
      %p461 = por %p459, %p460
      %p462 = scmp.ne.s32.totalorder %s454, %s456
      %p463 = scmp.eq.s32.totalorder %s34, 1
      %p464 = por %p462, %p463
      %p465 = scmp.ne.s32.totalorder %s456, %s457
      %p466 = scmp.eq.s32.totalorder %s34, 0
      %p467 = por %p465, %p466
      %p468 = scmp.ne.s32.totalorder %s456, %s457
      %p469 = scmp.eq.s32.totalorder %s35, 1
      %p470 = por %p468, %p469
      %p472 = scmp.ne.s32.totalorder %s457, %s471
      %p473 = scmp.eq.s32.totalorder %s35, 0
      %p474 = por %p472, %p473
      %s476 = sadd.s32 %s475, 1
      %p479 = scmp.eq.s32.totalorder %s29, 1
      %p480 = scmp.ne.s32.totalorder %s475, %s477
      %p481 = scmp.eq.s32.totalorder %s29, 0
      %p482 = por %p480, %p481
      %p483 = scmp.ne.s32.totalorder %s475, %s477
      %p484 = scmp.eq.s32.totalorder %s34, 1
      %p485 = por %p483, %p484
      %p486 = scmp.ne.s32.totalorder %s477, %s478
      %p487 = scmp.eq.s32.totalorder %s34, 0
      %p488 = por %p486, %p487
      %p489 = scmp.ne.s32.totalorder %s477, %s478
      %p490 = scmp.eq.s32.totalorder %s35, 1
      %p491 = por %p489, %p490
      %p493 = scmp.ne.s32.totalorder %s478, %s492
      %p494 = scmp.eq.s32.totalorder %s35, 0
      %p495 = por %p493, %p494
      %p496 = scmp.le.s32.totalorder 1, %s29
      %p497 = scmp.lt.s32.totalorder %s29, 3
      %p498 = pnand %p496, %p497
      %p499 = pneg %p498
      // Predicated region
      $region9: #{tpu_custom_call.1} parent=5 // pred_check
        _
      $region10: #{tpu_custom_call.1} parent=5 // pred_check_branch
        %501 = sbr.rel (%p498) target = $region12
      $region11: #{tpu_custom_call.1} parent=5 // pred_region
        %s502 = ssub.s32 %s29, 1
        // Predicated region
        $region13: #{tpu_custom_call.1} parent=11 // pred_check
          %p503 = pneg %p50
        $region14: #{tpu_custom_call.1} parent=11 // pred_check_branch
          %505 = sbr.rel (%p503) target = $region16
        $region15: #{tpu_custom_call.1} parent=11 // pred_region
          %s507 = ssub.s32 256, 256
          %508 = vsyncadd [#allocation5], %s507
          %s509 = sshll.u32 [#allocation4], 4
          %s510 = int_to_ptr.vmem [resolvable:$true] %s509
          %515 = dma.hbm_to_vmem [thread:$0]  %s0, 256, %s510, [#allocation5], 128, 128, 8
        $region16: #{tpu_custom_call.1} parent=11 // pred_fallthru
          _
        // Predicated region
        $region17: #{tpu_custom_call.1} parent=11 // pred_check
          %p516 = pneg %p71
        $region18: #{tpu_custom_call.1} parent=11 // pred_check_branch
          %518 = sbr.rel (%p516) target = $region20
        $region19: #{tpu_custom_call.1} parent=11 // pred_region
          _
        $region20: #{tpu_custom_call.1} parent=11 // pred_fallthru
          _
        // Predicated region
        $region21: #{tpu_custom_call.1} parent=11 // pred_check
          %p519 = pneg %p92
        $region22: #{tpu_custom_call.1} parent=11 // pred_check_branch
          %521 = sbr.rel (%p519) target = $region24
        $region23: #{tpu_custom_call.1} parent=11 // pred_region
          _
        $region24: #{tpu_custom_call.1} parent=11 // pred_fallthru
          _
        // Predicated region
        $region25: #{tpu_custom_call.1} parent=11 // pred_check
          %p522 = pneg %p113
        $region26: #{tpu_custom_call.1} parent=11 // pred_check_branch
          %524 = sbr.rel (%p522) target = $region28
        $region27: #{tpu_custom_call.1} parent=11 // pred_region
          %s526 = ssub.s32 16, 16
          %527 = vsyncadd [#allocation8], %s526
          %s529 = sshll.u32 [#allocation7], 4
          %s530 = int_to_ptr.vmem [resolvable:$true] %s529
          %532 = dma.hbm_to_vmem [thread:$0]  %s3, 16, %s530, [#allocation8]
        $region28: #{tpu_custom_call.1} parent=11 // pred_fallthru
          _
        // Predicated region
        $region29: #{tpu_custom_call.1} parent=11 // pred_check
          %p533 = pneg %p134
        $region30: #{tpu_custom_call.1} parent=11 // pred_check_branch
          %535 = sbr.rel (%p533) target = $region32
        $region31: #{tpu_custom_call.1} parent=11 // pred_region
          %s537 = ssub.s32 16, 16
          %538 = vsyncadd [#allocation8], %s537
          %s540 = sshll.u32 [#allocation9], 4
          %s541 = int_to_ptr.vmem [resolvable:$true] %s540
          %543 = dma.hbm_to_vmem [thread:$0]  %s4, 16, %s541, [#allocation8]
        $region32: #{tpu_custom_call.1} parent=11 // pred_fallthru
          _
      $region12: #{tpu_custom_call.1} parent=5 // pred_fallthru
        _
      %p544 = scmp.lt.s32.totalorder %s29, 2
      // Predicated region
      $region33: #{tpu_custom_call.1} parent=5 // pred_check
        %p545 = pneg %p544
      $region34: #{tpu_custom_call.1} parent=5 // pred_check_branch
        %547 = sbr.rel (%p545) target = $region36
      $region35: #{tpu_custom_call.1} parent=5 // pred_region
        // Predicated region
        $region37: #{tpu_custom_call.1} parent=35 // pred_check
          %p548 = pneg %p154
        $region38: #{tpu_custom_call.1} parent=35 // pred_check_branch
          %550 = sbr.rel (%p548) target = $region40
        $region39: #{tpu_custom_call.1} parent=35 // pred_region
          %p551 = scmp.lt.s32.totalorder %s29, 1
          %s552 = scalar_select %p551, %s29, 1
          %s553 = smul.addr %s552, 4
          %s554 = smul.addr %s553, 8
          %s555 = scalar_lea.vmem %s5, %s554
        $region40: #{tpu_custom_call.1} parent=35 // pred_fallthru
          _
        // Predicated region
        $region41: #{tpu_custom_call.1} parent=35 // pred_check
          %p556 = pneg %p180
        $region42: #{tpu_custom_call.1} parent=35 // pred_check_branch
          %558 = sbr.rel (%p556) target = $region44
        $region43: #{tpu_custom_call.1} parent=35 // pred_region
          %p559 = scmp.lt.s32.totalorder %s29, 1
          %s560 = scalar_select %p559, %s29, 1
          %s561 = scalar_lea.vmem %s6, %s560
        $region44: #{tpu_custom_call.1} parent=35 // pred_fallthru
          _
        // Predicated region
        $region45: #{tpu_custom_call.1} parent=35 // pred_check
          %p562 = pneg %p206
        $region46: #{tpu_custom_call.1} parent=35 // pred_check_branch
          %564 = sbr.rel (%p562) target = $region48
        $region47: #{tpu_custom_call.1} parent=35 // pred_region
          %p565 = scmp.lt.s32.totalorder %s29, 1
          %s566 = scalar_select %p565, %s29, 1
          %s567 = smul.addr %s566, 4
          %s568 = smul.addr %s567, 8
          %s569 = scalar_lea.vmem %s7, %s568
        $region48: #{tpu_custom_call.1} parent=35 // pred_fallthru
          _
        // Predicated region
        $region49: #{tpu_custom_call.1} parent=35 // pred_check
          %p570 = pneg %p232
        $region50: #{tpu_custom_call.1} parent=35 // pred_check_branch
          %572 = sbr.rel (%p570) target = $region52
        $region51: #{tpu_custom_call.1} parent=35 // pred_region
          %p573 = scmp.lt.s32.totalorder %s29, 1
          %s574 = scalar_select %p573, %s29, 1
          %s575 = scalar_lea.vmem %s8, %s574
        $region52: #{tpu_custom_call.1} parent=35 // pred_fallthru
          _
        // Predicated region
        $region53: #{tpu_custom_call.1} parent=35 // pred_check
          %p576 = pneg %p258
        $region54: #{tpu_custom_call.1} parent=35 // pred_check_branch
          %578 = sbr.rel (%p576) target = $region56
        $region55: #{tpu_custom_call.1} parent=35 // pred_region
          %p579 = scmp.lt.s32.totalorder %s29, 1
          %s580 = scalar_select %p579, %s29, 1
          %s581 = scalar_lea.vmem %s9, %s580
        $region56: #{tpu_custom_call.1} parent=35 // pred_fallthru
          _
        // Predicated region
        $region57: #{tpu_custom_call.1} parent=35 // pred_check
          %p582 = pneg %p284
        $region58: #{tpu_custom_call.1} parent=35 // pred_check_branch
          %584 = sbr.rel (%p582) target = $region60
        $region59: #{tpu_custom_call.1} parent=35 // pred_region
          %p585 = scmp.lt.s32.totalorder %s29, 1
          %s586 = scalar_select %p585, %s29, 1
          %s587 = scalar_lea.vmem %s10, %s586
        $region60: #{tpu_custom_call.1} parent=35 // pred_fallthru
          _
        // Predicated region
        $region61: #{tpu_custom_call.1} parent=35 // pred_check
          %p588 = pneg %p310
        $region62: #{tpu_custom_call.1} parent=35 // pred_check_branch
          %590 = sbr.rel (%p588) target = $region64
        $region63: #{tpu_custom_call.1} parent=35 // pred_region
          %p591 = scmp.lt.s32.totalorder %s29, 1
          %s592 = scalar_select %p591, %s29, 1
          %s593 = smul.addr %s592, 4
          %s594 = smul.addr %s593, 8
          %s595 = scalar_lea.vmem %s11, %s594
        $region64: #{tpu_custom_call.1} parent=35 // pred_fallthru
          _
        // Predicated region
        $region65: #{tpu_custom_call.1} parent=35 // pred_check
          %p596 = pneg %p336
        $region66: #{tpu_custom_call.1} parent=35 // pred_check_branch
          %598 = sbr.rel (%p596) target = $region68
        $region67: #{tpu_custom_call.1} parent=35 // pred_region
          %p599 = scmp.lt.s32.totalorder %s29, 1
          %s600 = scalar_select %p599, %s29, 1
          %s601 = scalar_lea.vmem %s12, %s600
        $region68: #{tpu_custom_call.1} parent=35 // pred_fallthru
          _
        // Predicated region
        $region69: #{tpu_custom_call.1} parent=35 // pred_check
          %p602 = pneg %p362
        $region70: #{tpu_custom_call.1} parent=35 // pred_check_branch
          %604 = sbr.rel (%p602) target = $region72
        $region71: #{tpu_custom_call.1} parent=35 // pred_region
          %p605 = scmp.lt.s32.totalorder %s29, 1
          %s606 = scalar_select %p605, %s29, 1
          %s607 = smul.addr %s606, 8
          %s608 = smul.addr %s607, 8
          %s609 = scalar_lea.vmem %s13, %s608
        $region72: #{tpu_custom_call.1} parent=35 // pred_fallthru
          _
        // Predicated region
        $region73: #{tpu_custom_call.1} parent=35 // pred_check
          %p610 = pneg %p388
        $region74: #{tpu_custom_call.1} parent=35 // pred_check_branch
          %612 = sbr.rel (%p610) target = $region76
        $region75: #{tpu_custom_call.1} parent=35 // pred_region
          %p613 = scmp.lt.s32.totalorder %s29, 1
          %s614 = scalar_select %p613, %s29, 1
          %s615 = scalar_lea.vmem %s14, %s614
        $region76: #{tpu_custom_call.1} parent=35 // pred_fallthru
          _
        // Predicated region
        $region77: #{tpu_custom_call.1} parent=35 // pred_check
          %p616 = pneg %p414
        $region78: #{tpu_custom_call.1} parent=35 // pred_check_branch
          %618 = sbr.rel (%p616) target = $region80
        $region79: #{tpu_custom_call.1} parent=35 // pred_region
          %p619 = scmp.lt.s32.totalorder %s29, 1
          %s620 = scalar_select %p619, %s29, 1
          %s621 = scalar_lea.vmem %s15, %s620
        $region80: #{tpu_custom_call.1} parent=35 // pred_fallthru
          _
        // Predicated region
        $region81: #{tpu_custom_call.1} parent=35 // pred_check
          %p622 = pneg %p440
        $region82: #{tpu_custom_call.1} parent=35 // pred_check_branch
          %624 = sbr.rel (%p622) target = $region84
        $region83: #{tpu_custom_call.1} parent=35 // pred_region
          %p625 = scmp.lt.s32.totalorder %s29, 1
          %s626 = scalar_select %p625, %s29, 1
          %s627 = scalar_lea.vmem %s16, %s626
        $region84: #{tpu_custom_call.1} parent=35 // pred_fallthru
          _
      $region36: #{tpu_custom_call.1} parent=5 // pred_fallthru
        _
      %p628 = scmp.le.s32.totalorder 1, %s29
      %p629 = scmp.lt.s32.totalorder %s29, 3
      %p630 = pnand %p628, %p629
      %p631 = pneg %p630
      // Predicated region
      $region85: #{tpu_custom_call.1} parent=5 // pred_check
        _
      $region86: #{tpu_custom_call.1} parent=5 // pred_check_branch
        %633 = sbr.rel (%p630) target = $region88
      $region87: #{tpu_custom_call.1} parent=5 // pred_region
        %s634 = ssub.s32 %s29, 1
        // Predicated region
        $region89: #{tpu_custom_call.1} parent=87 // pred_check
          %p635 = pneg %p50
        $region90: #{tpu_custom_call.1} parent=87 // pred_check_branch
          %637 = sbr.rel (%p635) target = $region92
        $region91: #{tpu_custom_call.1} parent=87 // pred_region
          %638 = dma.done [#allocation5], 256
        $region92: #{tpu_custom_call.1} parent=87 // pred_fallthru
          _
        // Predicated region
        $region93: #{tpu_custom_call.1} parent=87 // pred_check
          %p639 = pneg %p113
        $region94: #{tpu_custom_call.1} parent=87 // pred_check_branch
          %641 = sbr.rel (%p639) target = $region96
        $region95: #{tpu_custom_call.1} parent=87 // pred_region
          %642 = dma.done [#allocation8], 16
        $region96: #{tpu_custom_call.1} parent=87 // pred_fallthru
          _
        // Predicated region
        $region97: #{tpu_custom_call.1} parent=87 // pred_check
          %p643 = pneg %p134
        $region98: #{tpu_custom_call.1} parent=87 // pred_check_branch
          %645 = sbr.rel (%p643) target = $region100
        $region99: #{tpu_custom_call.1} parent=87 // pred_region
          %646 = dma.done [#allocation8], 16
        $region100: #{tpu_custom_call.1} parent=87 // pred_fallthru
          _
        %p647 = pneg %p50
        %p648 = pneg %p47
        %p649 = pneg %p71
        %p650 = pneg %p68
        %p651 = pneg %p92
        %p652 = pneg %p89
        %p653 = pneg %p113
        %p654 = pneg %p110
        %p655 = pneg %p134
        %p656 = pneg %p131
        %p657 = scmp.lt.s32.totalorder %s34, 1
        %s658 = scalar_select %p657, %s34, 1
        %s659 = smul.addr %s658, 4
        %s660 = smul.addr %s659, 8
        %s661 = scalar_lea.vmem %s5, %s660
        %p662 = pneg %p160
        %p663 = pneg %p157
        %p664 = scmp.lt.s32.totalorder %s34, 1
        %s665 = scalar_select %p664, %s34, 1
        %s666 = scalar_lea.vmem %s6, %s665
        %p667 = pneg %p186
        %p668 = pneg %p183
        %p669 = scmp.lt.s32.totalorder %s34, 1
        %s670 = scalar_select %p669, %s34, 1
        %s671 = smul.addr %s670, 4
        %s672 = smul.addr %s671, 8
        %s673 = scalar_lea.vmem %s7, %s672
        %p674 = pneg %p212
        %p675 = pneg %p209
        %p676 = scmp.lt.s32.totalorder %s34, 1
        %s677 = scalar_select %p676, %s34, 1
        %s678 = scalar_lea.vmem %s8, %s677
        %p679 = pneg %p238
        %p680 = pneg %p235
        %p681 = scmp.lt.s32.totalorder %s34, 1
        %s682 = scalar_select %p681, %s34, 1
        %s683 = scalar_lea.vmem %s9, %s682
        %p684 = pneg %p264
        %p685 = pneg %p261
        %p686 = scmp.lt.s32.totalorder %s34, 1
        %s687 = scalar_select %p686, %s34, 1
        %s688 = scalar_lea.vmem %s10, %s687
        %p689 = pneg %p290
        %p690 = pneg %p287
        %p691 = scmp.lt.s32.totalorder %s34, 1
        %s692 = scalar_select %p691, %s34, 1
        %s693 = smul.addr %s692, 4
        %s694 = smul.addr %s693, 8
        %s695 = scalar_lea.vmem %s11, %s694
        %p696 = pneg %p316
        %p697 = pneg %p313
        %p698 = scmp.lt.s32.totalorder %s34, 1
        %s699 = scalar_select %p698, %s34, 1
        %s700 = scalar_lea.vmem %s12, %s699
        %p701 = pneg %p342
        %p702 = pneg %p339
        %p703 = scmp.lt.s32.totalorder %s34, 1
        %s704 = scalar_select %p703, %s34, 1
        %s705 = smul.addr %s704, 8
        %s706 = smul.addr %s705, 8
        %s707 = scalar_lea.vmem %s13, %s706
        %p708 = pneg %p368
        %p709 = pneg %p365
        %p710 = scmp.lt.s32.totalorder %s34, 1
        %s711 = scalar_select %p710, %s34, 1
        %s712 = scalar_lea.vmem %s14, %s711
        %p713 = pneg %p394
        %p714 = pneg %p391
        %p715 = scmp.lt.s32.totalorder %s34, 1
        %s716 = scalar_select %p715, %s34, 1
        %s717 = scalar_lea.vmem %s15, %s716
        %p718 = pneg %p420
        %p719 = pneg %p417
        %p720 = scmp.lt.s32.totalorder %s34, 1
        %s721 = scalar_select %p720, %s34, 1
        %s722 = scalar_lea.vmem %s16, %s721
        %p723 = pneg %p446
        %p724 = pneg %p443
        %p725 = pneg %p467
        %p726 = pneg %p464
        %p727 = pneg %p488
        %p728 = pneg %p485
        %p729 = scmp.lt.s32.totalorder %s34, 1
        %s730 = scalar_select %p729, %s34, 1
        %s731 = smul.addr %s730, 4
        %s732 = smul.addr %s731, 8
        %s733 = scalar_lea.vmem %s5, %s732
        %p734 = scmp.lt.s32.totalorder %s34, 1
        %s735 = scalar_select %p734, %s34, 1
        %s736 = scalar_lea.vmem %s6, %s735
        %p737 = scmp.lt.s32.totalorder %s34, 1
        %s738 = scalar_select %p737, %s34, 1
        %s739 = smul.addr %s738, 4
        %s740 = smul.addr %s739, 8
        %s741 = scalar_lea.vmem %s7, %s740
        %p742 = scmp.lt.s32.totalorder %s34, 1
        %s743 = scalar_select %p742, %s34, 1
        %s744 = scalar_lea.vmem %s8, %s743
        %p745 = scmp.lt.s32.totalorder %s34, 1
        %s746 = scalar_select %p745, %s34, 1
        %s747 = scalar_lea.vmem %s9, %s746
        %p748 = scmp.lt.s32.totalorder %s34, 1
        %s749 = scalar_select %p748, %s34, 1
        %s750 = scalar_lea.vmem %s10, %s749
        %p751 = scmp.lt.s32.totalorder %s34, 1
        %s752 = scalar_select %p751, %s34, 1
        %s753 = smul.addr %s752, 4
        %s754 = smul.addr %s753, 8
        %s755 = scalar_lea.vmem %s11, %s754
        %p756 = scmp.lt.s32.totalorder %s34, 1
        %s757 = scalar_select %p756, %s34, 1
        %s758 = scalar_lea.vmem %s12, %s757
        %p759 = scmp.lt.s32.totalorder %s34, 1
        %s760 = scalar_select %p759, %s34, 1
        %s761 = smul.addr %s760, 8
        %s762 = smul.addr %s761, 8
        %s763 = scalar_lea.vmem %s13, %s762
        %p764 = scmp.lt.s32.totalorder %s34, 1
        %s765 = scalar_select %p764, %s34, 1
        %s766 = scalar_lea.vmem %s14, %s765
        %p767 = scmp.lt.s32.totalorder %s34, 1
        %s768 = scalar_select %p767, %s34, 1
        %s769 = scalar_lea.vmem %s15, %s768
        %p770 = scmp.lt.s32.totalorder %s34, 1
        %s771 = scalar_select %p770, %s34, 1
        %s772 = scalar_lea.vmem %s16, %s771
        %p773 = scmp.eq.s32.totalorder %s34, 0
        // Predicated region
        $region101: #{tpu_custom_call.1} parent=87 // pred_check
          %p774 = pneg %p773
        $region102: #{tpu_custom_call.1} parent=87 // pred_check_branch
          %776 = sbr.rel (%p774) target = $region104
        $region103: #{tpu_custom_call.1} parent=87 // pred_region
          %v777 = vld [vmem:[#allocation4] sm:$0xff]
          %v778 = vld [vmem:[#allocation4 + $0x8] sm:$0xff]
          %v779 = vld [vmem:[#allocation7] sm:$0x1]
          %v780 = vld [vmem:[#allocation9] sm:$0x1]
          %vm781 = vcmask 261120
          %v782 = vsel %vm781, %v777, 0.0
          %783 = vadd.xlane.f32.xlu0 %v782
          %v784 = vpop.xlane.xlu0 %783
          %v785 = vsel %vm781, %v778, 0.0
          %786 = vadd.xlane.f32.xlu0 %v785
          %v787 = vpop.xlane.xlu0 %786
          %v788 = vrcp.pop 32.0
          %v789 = vmul.f32 %v784, %v788
          %v790 = vmul.f32 %v787, %v788
          %v791 = vsub.f32 %v777, %v789
          %v792 = vsub.f32 %v778, %v790
          %v793 = vmul.f32 %v791, %v791
          %v794 = vmul.f32 %v792, %v792
          %v795 = vsel %vm781, %v793, 0.0
          %796 = vadd.xlane.f32.xlu0 %v795
          %v797 = vpop.xlane.xlu0 %796
          %v798 = vsel %vm781, %v794, 0.0
          %799 = vadd.xlane.f32.xlu0 %v798
          %v800 = vpop.xlane.xlu0 %799
          %v801 = vmul.f32 %v797, %v788
          %v802 = vmul.f32 %v800, %v788
          %v803 = vadd.f32 %v801, 1e-12
          %v804 = vadd.f32 %v802, 1e-12
          %v805 = vrsqrt.pop %v803
          %v806 = vrsqrt.pop %v804
          %v807 = vmul.f32 %v791, %v805
          %v808 = vmul.f32 %v792, %v806
          %v810 = vlaneseq
          %v811 = vshrl.u32 %v810, 7
          %v812 = vsub.s32 0, %v811
          %v813 = vrot.slane %v779, %v812
          %v815 = vmul.f32 %v807, %v813
          %v816 = vmul.f32 %v808, %v813
          %v818 = vlaneseq
          %v819 = vshrl.u32 %v818, 7
          %v820 = vsub.s32 0, %v819
          %v821 = vrot.slane %v780, %v820
          %v823 = vadd.f32 %v815, %v821
          %v824 = vadd.f32 %v816, %v821
          %825 = vst.msk [vmem:[#allocation2] sm:$0xff] %vm781, %v823
          %826 = vst.msk [vmem:[#allocation2 + $0x8] sm:$0xff] %vm781, %v824
          %vm827 = vcmask 254976
          %828 = vst.msk [vmem:[#allocation3] sm:$0x3] %vm827, 0.0
        $region104: #{tpu_custom_call.1} parent=87 // pred_fallthru
          _
        %v829 = vld [vmem:[#allocation2] sm:$0xff]
        %v830 = vld [vmem:[#allocation2 + $0x8] sm:$0xff]
        %v831 = vld [vmem:[%s733] sm:$0xff]
        %v832 = vld [vmem:[%s733 + $0x8] sm:$0xff]
        %v833 = vld [vmem:[%s733 + $0x10] sm:$0xff]
        %v834 = vld [vmem:[%s733 + $0x18] sm:$0xff]
        %v835 = vld [vmem:[%s736] sm:$0x1]
        %v837 = vlaneseq
        %v838 = vshrl.u32 %v837, 7
        %v839 = vsub.s32 0, %v838
        %v840 = vrot.slane %v835, %v839
        %vm842 = vcmask 261120
        %v844 = vsel %vm842, %v829, 0
        %v847 = vsel %vm842, %v830, 0
        %849 = vmatprep.subr.mxu0 0.0
        %850 = vmatpush1.msra.mxu0 %v831
        %851 = vmatprep.subr.mxu0 0.0
        %852 = vmatpush1.msra.mxu0 %v832
        %853 = vmatprep.subr.mxu0 0.0
        %854 = vmatpush1.msra.mxu0 %v833
        %855 = vmatprep.subr.mxu0 0.0
        %856 = vmatpush1.msra.mxu0 %v834
        %857 = vmatprep.subr.mxu0 0.0
        %858 = vmatpush1.msra.mxu0 0.0
        %859 = vmatprep.subr.mxu0 0.0
        %860 = vmatpush1.msra.mxu0 0.0
        %861 = vmatprep.subr.mxu0 0.0
        %862 = vmatpush1.msra.mxu0 0.0
        %863 = vmatprep.subr.mxu0 0.0
        %864 = vmatpush1.msra.mxu0 0.0
        %865 = vmatprep.subr.mxu0 0.0
        %866 = vmatpush1.msra.mxu0 0.0
        %867 = vmatprep.subr.mxu0 0.0
        %868 = vmatpush1.msra.mxu0 0.0
        %869 = vmatprep.subr.mxu0 0.0
        %870 = vmatpush1.msra.mxu0 0.0
        %871 = vmatprep.subr.mxu0 0.0
        %872 = vmatpush1.msra.mxu0 0.0
        %873 = vmatprep.subr.mxu0 0.0
        %874 = vmatpush1.msra.mxu0 0.0
        %875 = vmatprep.subr.mxu0 0.0
        %876 = vmatpush1.msra.mxu0 0.0
        %877 = vmatprep.subr.mxu0 0.0
        %878 = vmatpush1.msra.mxu0 0.0
        %879 = vmatprep.subr.mxu0 0.0
        %880 = vmatpush1.msra.mxu0 0.0
        %881 = vmatprep.subr.mxu0 0.0
        %882 = vmatpush1.msra.mxu0 0.0
        %883 = vmatprep.subr.mxu0 0.0
        %884 = vmatpush1.msra.mxu0 0.0
        %885 = vmatprep.subr.mxu0 0.0
        %886 = vmatpush1.msra.mxu0 0.0
        %887 = vmatprep.subr.mxu0 0.0
        %888 = vmatpush1.msra.mxu0 0.0
        %889 = vmatprep.subr.mxu0 0.0
        %890 = vmatpush1.msra.mxu0 0.0
        %891 = vmatprep.subr.mxu0 0.0
        %892 = vmatpush1.msra.mxu0 0.0
        %893 = vmatprep.subr.mxu0 0.0
        %894 = vmatpush1.msra.mxu0 0.0
        %895 = vmatprep.subr.mxu0 0.0
        %896 = vmatpush1.msra.mxu0 0.0
        %897 = vmatprep.subr.mxu0 0.0
        %898 = vmatpush1.msra.mxu0 0.0
        %899 = vmatprep.subr.mxu0 0.0
        %900 = vmatpush1.msra.mxu0 0.0
        %901 = vmatprep.subr.mxu0 0.0
        %902 = vmatpush1.msra.mxu0 0.0
        %903 = vmatprep.subr.mxu0 0.0
        %904 = vmatpush1.msra.mxu0 0.0
        %905 = vmatprep.subr.mxu0 0.0
        %906 = vmatpush1.msra.mxu0 0.0
        %907 = vmatprep.subr.mxu0 0.0
        %908 = vmatpush1.msra.mxu0 0.0
        %909 = vmatprep.subr.mxu0 0.0
        %910 = vmatpush1.msra.mxu0 0.0
        %911 = vmatprep.subr.mxu0 0.0
        %912 = vmatpush1.msra.mxu0 0.0
        %913 = vmatprep.mubr.f32.mxu0 0.0
        %914 = vmatmul.mubr.f32.gmra.mrb[0].mxu0 %v844
        %v915 = vpop.f32.mrb[0].mxu0
        %v916 = vadd.f32 %v840, %v915
        %v917 = vpop.f32.mrb[0].mxu0
        %918 = vmatprep.mubr.f32.mxu0 0.0
        %919 = vmatmul.mubr.f32.gmra.mrb[0].mxu0 %v847
        %v920 = vpop.f32.mrb[0].mxu0
        %v921 = vadd.f32 %v840, %v920
        %v922 = vpop.f32.mrb[0].mxu0
        %923 = vdwg.mxu0
        %v924 = vld [vmem:[%s1] sm:$0x3]
        %v927 = vunpack.c.l.s4 1966171168
        %v928 = vunpack.c.0.s8 %v927
        %v929 = vlaneseq
        %v930 = vshrl.u32 %v929, 7
        %v931 = vsub.s32 %v928, %v930
        %v932 = vrot.slane %v924, %v931
        %v933 = vcombine.high %v932, %v932
        %v935 = vunpack.c.l.s4 1966171168
        %v936 = vunpack.c.0.s8 %v935
        %v937 = vlaneseq
        %v938 = vshrl.u32 %v937, 7
        %v939 = vsub.s32 %v936, %v938
        %v940 = vrot.slane %v932, %v939
        %v942 = vunpack.c.l.s4 1966171168
        %v943 = vunpack.c.0.s8 %v942
        %v944 = vlaneseq
        %v945 = vshrl.u32 %v944, 7
        %v946 = vsub.s32 %v943, %v945
        %v947 = vrot.slane %v933, %v946
        %v948 = vld [vmem:[%s741] sm:$0xff]
        %v949 = vld [vmem:[%s741 + $0x8] sm:$0xff]
        %v950 = vld [vmem:[%s741 + $0x10] sm:$0xff]
        %v951 = vld [vmem:[%s741 + $0x18] sm:$0xff]
        %v952 = vld [vmem:[%s744] sm:$0x1]
        %954 = vrot.lane.b32.xlu0 %v916, 96
        %v955 = vpop.permute.xlu0 %954
        %vm956 = vcmask 64512
        %v957 = vsel %vm956, %v916, 0
        %v959 = vsel %vm956, %v955, 0
        %961 = vmatprep.subr.mxu0 0.0
        %962 = vmatpush1.xpose.msra.mxu0 %v959
        %963 = vmatprep.subr.mxu0 0.0
        %964 = vmatpush1.xpose.msra.mxu0 0.0
        %965 = vmatprep.subr.mxu0 0.0
        %966 = vmatpush1.xpose.msra.mxu0 0.0
        %967 = vmatprep.subr.mxu0 0.0
        %968 = vmatpush1.xpose.msra.mxu0 0.0
        %969 = vmatprep.subr.mxu0 0.0
        %970 = vmatpush1.xpose.msra.mxu0 0.0
        %971 = vmatprep.subr.mxu0 0.0
        %972 = vmatpush1.xpose.msra.mxu0 0.0
        %973 = vmatprep.subr.mxu0 0.0
        %974 = vmatpush1.xpose.msra.mxu0 0.0
        %975 = vmatprep.subr.mxu0 0.0
        %976 = vmatpush1.xpose.msra.mxu0 0.0
        %977 = vmatprep.subr.mxu0 0.0
        %978 = vmatpush1.xpose.msra.mxu0 0.0
        %979 = vmatprep.subr.mxu0 0.0
        %980 = vmatpush1.xpose.msra.mxu0 0.0
        %981 = vmatprep.subr.mxu0 0.0
        %982 = vmatpush1.xpose.msra.mxu0 0.0
        %983 = vmatprep.subr.mxu0 0.0
        %984 = vmatpush1.xpose.msra.mxu0 0.0
        %985 = vmatprep.subr.mxu0 0.0
        %986 = vmatpush1.xpose.msra.mxu0 0.0
        %987 = vmatprep.subr.mxu0 0.0
        %988 = vmatpush1.xpose.msra.mxu0 0.0
        %989 = vmatprep.subr.mxu0 0.0
        %990 = vmatpush1.xpose.msra.mxu0 0.0
        %991 = vmatprep.subr.mxu0 0.0
        %992 = vmatpush1.xpose.msra.mxu0 0.0
        %993 = vmatprep.subr.mxu0 0.0
        %994 = vmatpush1.xpose.msra.mxu0 0.0
        %995 = vmatprep.subr.mxu0 0.0
        %996 = vmatpush1.xpose.msra.mxu0 0.0
        %997 = vmatprep.subr.mxu0 0.0
        %998 = vmatpush1.xpose.msra.mxu0 0.0
        %999 = vmatprep.subr.mxu0 0.0
        %1000 = vmatpush1.xpose.msra.mxu0 0.0
        %1001 = vmatprep.subr.mxu0 0.0
        %1002 = vmatpush1.xpose.msra.mxu0 0.0
        %1003 = vmatprep.subr.mxu0 0.0
        %1004 = vmatpush1.xpose.msra.mxu0 0.0
        %1005 = vmatprep.subr.mxu0 0.0
        %1006 = vmatpush1.xpose.msra.mxu0 0.0
        %1007 = vmatprep.subr.mxu0 0.0
        %1008 = vmatpush1.xpose.msra.mxu0 0.0
        %1009 = vmatprep.subr.mxu0 0.0
        %1010 = vmatpush1.xpose.msra.mxu0 0.0
        %1011 = vmatprep.subr.mxu0 0.0
        %1012 = vmatpush1.xpose.msra.mxu0 0.0
        %1013 = vmatprep.subr.mxu0 0.0
        %1014 = vmatpush1.xpose.msra.mxu0 0.0
        %1015 = vmatprep.subr.mxu0 0.0
        %1016 = vmatpush1.xpose.msra.mxu0 0.0
        %1017 = vmatprep.subr.mxu0 0.0
        %1018 = vmatpush1.xpose.msra.mxu0 0.0
        %1019 = vmatprep.subr.mxu0 0.0
        %1020 = vmatpush1.xpose.msra.mxu0 0.0
        %1021 = vmatprep.subr.mxu0 0.0
        %1022 = vmatpush1.xpose.msra.mxu0 0.0
        %1023 = vmatprep.subr.mxu0 0.0
        %1024 = vmatpush1.xpose.msra.mxu0 0.0
        %1025 = vmatprep.mubr.f32.mxu0 0.0
        %1026 = vmatmul.mubr.f32.gmra.mrb[0].mxu0 %v957
        %v1027 = vpop.f32.mrb[0].mxu0
        %v1028 = vadd.f32 0.0, %v1027
        %v1029 = vpop.f32.mrb[0].mxu0
        %1030 = vdwg.mxu0
        %1032 = vrot.lane.b32.xlu0 %v921, 96
        %v1033 = vpop.permute.xlu0 %1032
        %v1034 = vsel %vm956, %v921, 0
        %v1036 = vsel %vm956, %v1033, 0
        %1038 = vmatprep.subr.mxu0 0.0
        %1039 = vmatpush1.xpose.msra.mxu0 %v1036
        %1040 = vmatprep.subr.mxu0 0.0
        %1041 = vmatpush1.xpose.msra.mxu0 0.0
        %1042 = vmatprep.subr.mxu0 0.0
        %1043 = vmatpush1.xpose.msra.mxu0 0.0
        %1044 = vmatprep.subr.mxu0 0.0
        %1045 = vmatpush1.xpose.msra.mxu0 0.0
        %1046 = vmatprep.subr.mxu0 0.0
        %1047 = vmatpush1.xpose.msra.mxu0 0.0
        %1048 = vmatprep.subr.mxu0 0.0
        %1049 = vmatpush1.xpose.msra.mxu0 0.0
        %1050 = vmatprep.subr.mxu0 0.0
        %1051 = vmatpush1.xpose.msra.mxu0 0.0
        %1052 = vmatprep.subr.mxu0 0.0
        %1053 = vmatpush1.xpose.msra.mxu0 0.0
        %1054 = vmatprep.subr.mxu0 0.0
        %1055 = vmatpush1.xpose.msra.mxu0 0.0
        %1056 = vmatprep.subr.mxu0 0.0
        %1057 = vmatpush1.xpose.msra.mxu0 0.0
        %1058 = vmatprep.subr.mxu0 0.0
        %1059 = vmatpush1.xpose.msra.mxu0 0.0
        %1060 = vmatprep.subr.mxu0 0.0
        %1061 = vmatpush1.xpose.msra.mxu0 0.0
        %1062 = vmatprep.subr.mxu0 0.0
        %1063 = vmatpush1.xpose.msra.mxu0 0.0
        %1064 = vmatprep.subr.mxu0 0.0
        %1065 = vmatpush1.xpose.msra.mxu0 0.0
        %1066 = vmatprep.subr.mxu0 0.0
        %1067 = vmatpush1.xpose.msra.mxu0 0.0
        %1068 = vmatprep.subr.mxu0 0.0
        %1069 = vmatpush1.xpose.msra.mxu0 0.0
        %1070 = vmatprep.subr.mxu0 0.0
        %1071 = vmatpush1.xpose.msra.mxu0 0.0
        %1072 = vmatprep.subr.mxu0 0.0
        %1073 = vmatpush1.xpose.msra.mxu0 0.0
        %1074 = vmatprep.subr.mxu0 0.0
        %1075 = vmatpush1.xpose.msra.mxu0 0.0
        %1076 = vmatprep.subr.mxu0 0.0
        %1077 = vmatpush1.xpose.msra.mxu0 0.0
        %1078 = vmatprep.subr.mxu0 0.0
        %1079 = vmatpush1.xpose.msra.mxu0 0.0
        %1080 = vmatprep.subr.mxu0 0.0
        %1081 = vmatpush1.xpose.msra.mxu0 0.0
        %1082 = vmatprep.subr.mxu0 0.0
        %1083 = vmatpush1.xpose.msra.mxu0 0.0
        %1084 = vmatprep.subr.mxu0 0.0
        %1085 = vmatpush1.xpose.msra.mxu0 0.0
        %1086 = vmatprep.subr.mxu0 0.0
        %1087 = vmatpush1.xpose.msra.mxu0 0.0
        %1088 = vmatprep.subr.mxu0 0.0
        %1089 = vmatpush1.xpose.msra.mxu0 0.0
        %1090 = vmatprep.subr.mxu0 0.0
        %1091 = vmatpush1.xpose.msra.mxu0 0.0
        %1092 = vmatprep.subr.mxu0 0.0
        %1093 = vmatpush1.xpose.msra.mxu0 0.0
        %1094 = vmatprep.subr.mxu0 0.0
        %1095 = vmatpush1.xpose.msra.mxu0 0.0
        %1096 = vmatprep.subr.mxu0 0.0
        %1097 = vmatpush1.xpose.msra.mxu0 0.0
        %1098 = vmatprep.subr.mxu0 0.0
        %1099 = vmatpush1.xpose.msra.mxu0 0.0
        %1100 = vmatprep.subr.mxu0 0.0
        %1101 = vmatpush1.xpose.msra.mxu0 0.0
        %1102 = vmatprep.mubr.f32.mxu0 0.0
        %1103 = vmatmul.mubr.f32.gmra.mrb[0].mxu0 %v1034
        %v1104 = vpop.f32.mrb[0].mxu0
        %v1105 = vadd.f32 0.0, %v1104
        %v1106 = vpop.f32.mrb[0].mxu0
        %1107 = vdwg.mxu0
        %v1108 = vmul.f32 %v1028, 0.35355338
        %v1109 = vmul.f32 %v1105, 0.35355338
        %v1110 = vlaneseq
        %v1111 = vshrl.u32 %v1110, 7
        %v1112 = vsub.s32 0, %v1111
        %v1113 = vrot.slane %v940, %v1112
        %v1114 = vlaneseq
        %v1115 = vshrl.u32 %v1114, 7
        %v1116 = vsub.s32 0, %v1115
        %v1117 = vrot.slane %v947, %v1116
        %v1120 = vadd.f32 %v1108, %v1113
        %v1121 = vadd.f32 %v1109, %v1117
        %v1122 = vsel %vm956, %v1120, -inf
        %1123 = vmax.xlane.f32.xlu0 %v1122
        %v1124 = vpop.xlane.xlu0 %1123
        %v1125 = vsel %vm956, %v1121, -inf
        %1126 = vmax.xlane.f32.xlu0 %v1125
        %v1127 = vpop.xlane.xlu0 %1126
        %v1128 = vsub.f32 %v1120, %v1124
        %v1129 = vsub.f32 %v1121, %v1127
        %v1130 = vmul.f32 %v1128, 1.442695
        %v1131 = vpow.pop %v1130
        %v1132 = vmul.f32 %v1129, 1.442695
        %v1133 = vpow.pop %v1132
        %v1134 = vsel %vm956, %v1131, 0.0
        %1135 = vadd.xlane.f32.xlu0 %v1134
        %v1136 = vpop.xlane.xlu0 %1135
        %v1137 = vsel %vm956, %v1133, 0.0
        %1138 = vadd.xlane.f32.xlu0 %v1137
        %v1139 = vpop.xlane.xlu0 %1138
        %v1140 = vrcp.pop %v1136
        %v1141 = vrcp.pop %v1139
        %v1142 = vmul.f32 %v1131, %v1140
        %v1143 = vmul.f32 %v1133, %v1141
        %1144 = vrot.lane.b32.xlu0 %v916, 64
        %v1145 = vpop.permute.xlu0 %1144
        %v1148 = vsel %vm956, %v1142, 0
        %1150 = vmatprep.subr.mxu0 0.0
        %1151 = vmatpush1.msra.mxu0 %v1145
        %1152 = vmatprep.subr.mxu0 0.0
        %1153 = vmatpush1.msra.mxu0 0.0
        %1154 = vmatprep.subr.mxu0 0.0
        %1155 = vmatpush1.msra.mxu0 0.0
        %1156 = vmatprep.subr.mxu0 0.0
        %1157 = vmatpush1.msra.mxu0 0.0
        %1158 = vmatprep.subr.mxu0 0.0
        %1159 = vmatpush1.msra.mxu0 0.0
        %1160 = vmatprep.subr.mxu0 0.0
        %1161 = vmatpush1.msra.mxu0 0.0
        %1162 = vmatprep.subr.mxu0 0.0
        %1163 = vmatpush1.msra.mxu0 0.0
        %1164 = vmatprep.subr.mxu0 0.0
        %1165 = vmatpush1.msra.mxu0 0.0
        %1166 = vmatprep.subr.mxu0 0.0
        %1167 = vmatpush1.msra.mxu0 0.0
        %1168 = vmatprep.subr.mxu0 0.0
        %1169 = vmatpush1.msra.mxu0 0.0
        %1170 = vmatprep.subr.mxu0 0.0
        %1171 = vmatpush1.msra.mxu0 0.0
        %1172 = vmatprep.subr.mxu0 0.0
        %1173 = vmatpush1.msra.mxu0 0.0
        %1174 = vmatprep.subr.mxu0 0.0
        %1175 = vmatpush1.msra.mxu0 0.0
        %1176 = vmatprep.subr.mxu0 0.0
        %1177 = vmatpush1.msra.mxu0 0.0
        %1178 = vmatprep.subr.mxu0 0.0
        %1179 = vmatpush1.msra.mxu0 0.0
        %1180 = vmatprep.subr.mxu0 0.0
        %1181 = vmatpush1.msra.mxu0 0.0
        %1182 = vmatprep.subr.mxu0 0.0
        %1183 = vmatpush1.msra.mxu0 0.0
        %1184 = vmatprep.subr.mxu0 0.0
        %1185 = vmatpush1.msra.mxu0 0.0
        %1186 = vmatprep.subr.mxu0 0.0
        %1187 = vmatpush1.msra.mxu0 0.0
        %1188 = vmatprep.subr.mxu0 0.0
        %1189 = vmatpush1.msra.mxu0 0.0
        %1190 = vmatprep.subr.mxu0 0.0
        %1191 = vmatpush1.msra.mxu0 0.0
        %1192 = vmatprep.subr.mxu0 0.0
        %1193 = vmatpush1.msra.mxu0 0.0
        %1194 = vmatprep.subr.mxu0 0.0
        %1195 = vmatpush1.msra.mxu0 0.0
        %1196 = vmatprep.subr.mxu0 0.0
        %1197 = vmatpush1.msra.mxu0 0.0
        %1198 = vmatprep.subr.mxu0 0.0
        %1199 = vmatpush1.msra.mxu0 0.0
        %1200 = vmatprep.subr.mxu0 0.0
        %1201 = vmatpush1.msra.mxu0 0.0
        %1202 = vmatprep.subr.mxu0 0.0
        %1203 = vmatpush1.msra.mxu0 0.0
        %1204 = vmatprep.subr.mxu0 0.0
        %1205 = vmatpush1.msra.mxu0 0.0
        %1206 = vmatprep.subr.mxu0 0.0
        %1207 = vmatpush1.msra.mxu0 0.0
        %1208 = vmatprep.subr.mxu0 0.0
        %1209 = vmatpush1.msra.mxu0 0.0
        %1210 = vmatprep.subr.mxu0 0.0
        %1211 = vmatpush1.msra.mxu0 0.0
        %1212 = vmatprep.subr.mxu0 0.0
        %1213 = vmatpush1.msra.mxu0 0.0
        %1214 = vmatprep.mubr.f32.mxu0 0.0
        %1215 = vmatmul.mubr.f32.gmra.mrb[0].mxu0 %v1148
        %v1216 = vpop.f32.mrb[0].mxu0
        %v1217 = vadd.f32 0.0, %v1216
        %v1218 = vpop.f32.mrb[0].mxu0
        %1219 = vdwg.mxu0
        %1220 = vrot.lane.b32.xlu0 %v921, 64
        %v1221 = vpop.permute.xlu0 %1220
        %v1224 = vsel %vm956, %v1143, 0
        %1226 = vmatprep.subr.mxu0 0.0
        %1227 = vmatpush1.msra.mxu0 %v1221
        %1228 = vmatprep.subr.mxu0 0.0
        %1229 = vmatpush1.msra.mxu0 0.0
        %1230 = vmatprep.subr.mxu0 0.0
        %1231 = vmatpush1.msra.mxu0 0.0
        %1232 = vmatprep.subr.mxu0 0.0
        %1233 = vmatpush1.msra.mxu0 0.0
        %1234 = vmatprep.subr.mxu0 0.0
        %1235 = vmatpush1.msra.mxu0 0.0
        %1236 = vmatprep.subr.mxu0 0.0
        %1237 = vmatpush1.msra.mxu0 0.0
        %1238 = vmatprep.subr.mxu0 0.0
        %1239 = vmatpush1.msra.mxu0 0.0
        %1240 = vmatprep.subr.mxu0 0.0
        %1241 = vmatpush1.msra.mxu0 0.0
        %1242 = vmatprep.subr.mxu0 0.0
        %1243 = vmatpush1.msra.mxu0 0.0
        %1244 = vmatprep.subr.mxu0 0.0
        %1245 = vmatpush1.msra.mxu0 0.0
        %1246 = vmatprep.subr.mxu0 0.0
        %1247 = vmatpush1.msra.mxu0 0.0
        %1248 = vmatprep.subr.mxu0 0.0
        %1249 = vmatpush1.msra.mxu0 0.0
        %1250 = vmatprep.subr.mxu0 0.0
        %1251 = vmatpush1.msra.mxu0 0.0
        %1252 = vmatprep.subr.mxu0 0.0
        %1253 = vmatpush1.msra.mxu0 0.0
        %1254 = vmatprep.subr.mxu0 0.0
        %1255 = vmatpush1.msra.mxu0 0.0
        %1256 = vmatprep.subr.mxu0 0.0
        %1257 = vmatpush1.msra.mxu0 0.0
        %1258 = vmatprep.subr.mxu0 0.0
        %1259 = vmatpush1.msra.mxu0 0.0
        %1260 = vmatprep.subr.mxu0 0.0
        %1261 = vmatpush1.msra.mxu0 0.0
        %1262 = vmatprep.subr.mxu0 0.0
        %1263 = vmatpush1.msra.mxu0 0.0
        %1264 = vmatprep.subr.mxu0 0.0
        %1265 = vmatpush1.msra.mxu0 0.0
        %1266 = vmatprep.subr.mxu0 0.0
        %1267 = vmatpush1.msra.mxu0 0.0
        %1268 = vmatprep.subr.mxu0 0.0
        %1269 = vmatpush1.msra.mxu0 0.0
        %1270 = vmatprep.subr.mxu0 0.0
        %1271 = vmatpush1.msra.mxu0 0.0
        %1272 = vmatprep.subr.mxu0 0.0
        %1273 = vmatpush1.msra.mxu0 0.0
        %1274 = vmatprep.subr.mxu0 0.0
        %1275 = vmatpush1.msra.mxu0 0.0
        %1276 = vmatprep.subr.mxu0 0.0
        %1277 = vmatpush1.msra.mxu0 0.0
        %1278 = vmatprep.subr.mxu0 0.0
        %1279 = vmatpush1.msra.mxu0 0.0
        %1280 = vmatprep.subr.mxu0 0.0
        %1281 = vmatpush1.msra.mxu0 0.0
        %1282 = vmatprep.subr.mxu0 0.0
        %1283 = vmatpush1.msra.mxu0 0.0
        %1284 = vmatprep.subr.mxu0 0.0
        %1285 = vmatpush1.msra.mxu0 0.0
        %1286 = vmatprep.subr.mxu0 0.0
        %1287 = vmatpush1.msra.mxu0 0.0
        %1288 = vmatprep.subr.mxu0 0.0
        %1289 = vmatpush1.msra.mxu0 0.0
        %1290 = vmatprep.mubr.f32.mxu0 0.0
        %1291 = vmatmul.mubr.f32.gmra.mrb[0].mxu0 %v1224
        %v1292 = vpop.f32.mrb[0].mxu0
        %v1293 = vadd.f32 0.0, %v1292
        %v1294 = vpop.f32.mrb[0].mxu0
        %1295 = vdwg.mxu0
        %v1297 = vsel %vm956, %v1217, 0
        %v1300 = vsel %vm956, %v1293, 0
        %1302 = vmatprep.subr.mxu0 0.0
        %1303 = vmatpush1.msra.mxu0 %v948
        %1304 = vmatprep.subr.mxu0 0.0
        %1305 = vmatpush1.msra.mxu0 0.0
        %1306 = vmatprep.subr.mxu0 0.0
        %1307 = vmatpush1.msra.mxu0 0.0
        %1308 = vmatprep.subr.mxu0 0.0
        %1309 = vmatpush1.msra.mxu0 0.0
        %1310 = vmatprep.subr.mxu0 0.0
        %1311 = vmatpush1.msra.mxu0 0.0
        %1312 = vmatprep.subr.mxu0 0.0
        %1313 = vmatpush1.msra.mxu0 0.0
        %1314 = vmatprep.subr.mxu0 0.0
        %1315 = vmatpush1.msra.mxu0 0.0
        %1316 = vmatprep.subr.mxu0 0.0
        %1317 = vmatpush1.msra.mxu0 0.0
        %1318 = vmatprep.subr.mxu0 0.0
        %1319 = vmatpush1.msra.mxu0 0.0
        %1320 = vmatprep.subr.mxu0 0.0
        %1321 = vmatpush1.msra.mxu0 0.0
        %1322 = vmatprep.subr.mxu0 0.0
        %1323 = vmatpush1.msra.mxu0 0.0
        %1324 = vmatprep.subr.mxu0 0.0
        %1325 = vmatpush1.msra.mxu0 0.0
        %1326 = vmatprep.subr.mxu0 0.0
        %1327 = vmatpush1.msra.mxu0 0.0
        %1328 = vmatprep.subr.mxu0 0.0
        %1329 = vmatpush1.msra.mxu0 0.0
        %1330 = vmatprep.subr.mxu0 0.0
        %1331 = vmatpush1.msra.mxu0 0.0
        %1332 = vmatprep.subr.mxu0 0.0
        %1333 = vmatpush1.msra.mxu0 0.0
        %1334 = vmatprep.subr.mxu0 0.0
        %1335 = vmatpush1.msra.mxu0 0.0
        %1336 = vmatprep.subr.mxu0 0.0
        %1337 = vmatpush1.msra.mxu0 0.0
        %1338 = vmatprep.subr.mxu0 0.0
        %1339 = vmatpush1.msra.mxu0 0.0
        %1340 = vmatprep.subr.mxu0 0.0
        %1341 = vmatpush1.msra.mxu0 0.0
        %1342 = vmatprep.subr.mxu0 0.0
        %1343 = vmatpush1.msra.mxu0 0.0
        %1344 = vmatprep.subr.mxu0 0.0
        %1345 = vmatpush1.msra.mxu0 0.0
        %1346 = vmatprep.subr.mxu0 0.0
        %1347 = vmatpush1.msra.mxu0 0.0
        %1348 = vmatprep.subr.mxu0 0.0
        %1349 = vmatpush1.msra.mxu0 0.0
        %1350 = vmatprep.subr.mxu0 0.0
        %1351 = vmatpush1.msra.mxu0 0.0
        %1352 = vmatprep.subr.mxu0 0.0
        %1353 = vmatpush1.msra.mxu0 0.0
        %1354 = vmatprep.subr.mxu0 0.0
        %1355 = vmatpush1.msra.mxu0 0.0
        %1356 = vmatprep.subr.mxu0 0.0
        %1357 = vmatpush1.msra.mxu0 0.0
        %1358 = vmatprep.subr.mxu0 0.0
        %1359 = vmatpush1.msra.mxu0 0.0
        %1360 = vmatprep.subr.mxu0 0.0
        %1361 = vmatpush1.msra.mxu0 0.0
        %1362 = vmatprep.subr.mxu0 0.0
        %1363 = vmatpush1.msra.mxu0 0.0
        %1364 = vmatprep.subr.mxu0 0.0
        %1365 = vmatpush1.msra.mxu0 0.0
        %1366 = vmatprep.mubr.f32.mxu0 0.0
        %1367 = vmatmul.mubr.f32.gmra.mrb[0].mxu0 %v1297
        %v1368 = vpop.f32.mrb[0].mxu0
        %v1369 = vadd.f32 0.0, %v1368
        %v1370 = vpop.f32.mrb[0].mxu0
        %1371 = vmatprep.mubr.f32.mxu0 0.0
        %1372 = vmatmul.mubr.f32.gmra.mrb[0].mxu0 %v1300
        %v1373 = vpop.f32.mrb[0].mxu0
        %v1374 = vadd.f32 0.0, %v1373
        %v1375 = vpop.f32.mrb[0].mxu0
        %1376 = vdwg.mxu0
        %v1378 = vlaneseq
        %v1379 = vshrl.u32 %v1378, 7
        %v1380 = vsub.s32 0, %v1379
        %v1381 = vrot.slane %v952, %v1380
        %v1383 = vadd.f32 %v1381, %v1369
        %v1384 = vadd.f32 %v1381, %v1374
        %1385 = vrot.lane.b32.xlu0 %v916, 120
        %v1386 = vpop.permute.xlu0 %1385
        %1387 = vrot.lane.b32.xlu0 %v916, 88
        %v1388 = vpop.permute.xlu0 %1387
        %v1389 = vsel %vm956, %v1386, 0
        %v1391 = vsel %vm956, %v1388, 0
        %1393 = vmatprep.subr.mxu0 0.0
        %1394 = vmatpush1.xpose.msra.mxu0 %v1391
        %1395 = vmatprep.subr.mxu0 0.0
        %1396 = vmatpush1.xpose.msra.mxu0 0.0
        %1397 = vmatprep.subr.mxu0 0.0
        %1398 = vmatpush1.xpose.msra.mxu0 0.0
        %1399 = vmatprep.subr.mxu0 0.0
        %1400 = vmatpush1.xpose.msra.mxu0 0.0
        %1401 = vmatprep.subr.mxu0 0.0
        %1402 = vmatpush1.xpose.msra.mxu0 0.0
        %1403 = vmatprep.subr.mxu0 0.0
        %1404 = vmatpush1.xpose.msra.mxu0 0.0
        %1405 = vmatprep.subr.mxu0 0.0
        %1406 = vmatpush1.xpose.msra.mxu0 0.0
        %1407 = vmatprep.subr.mxu0 0.0
        %1408 = vmatpush1.xpose.msra.mxu0 0.0
        %1409 = vmatprep.subr.mxu0 0.0
        %1410 = vmatpush1.xpose.msra.mxu0 0.0
        %1411 = vmatprep.subr.mxu0 0.0
        %1412 = vmatpush1.xpose.msra.mxu0 0.0
        %1413 = vmatprep.subr.mxu0 0.0
        %1414 = vmatpush1.xpose.msra.mxu0 0.0
        %1415 = vmatprep.subr.mxu0 0.0
        %1416 = vmatpush1.xpose.msra.mxu0 0.0
        %1417 = vmatprep.subr.mxu0 0.0
        %1418 = vmatpush1.xpose.msra.mxu0 0.0
        %1419 = vmatprep.subr.mxu0 0.0
        %1420 = vmatpush1.xpose.msra.mxu0 0.0
        %1421 = vmatprep.subr.mxu0 0.0
        %1422 = vmatpush1.xpose.msra.mxu0 0.0
        %1423 = vmatprep.subr.mxu0 0.0
        %1424 = vmatpush1.xpose.msra.mxu0 0.0
        %1425 = vmatprep.subr.mxu0 0.0
        %1426 = vmatpush1.xpose.msra.mxu0 0.0
        %1427 = vmatprep.subr.mxu0 0.0
        %1428 = vmatpush1.xpose.msra.mxu0 0.0
        %1429 = vmatprep.subr.mxu0 0.0
        %1430 = vmatpush1.xpose.msra.mxu0 0.0
        %1431 = vmatprep.subr.mxu0 0.0
        %1432 = vmatpush1.xpose.msra.mxu0 0.0
        %1433 = vmatprep.subr.mxu0 0.0
        %1434 = vmatpush1.xpose.msra.mxu0 0.0
        %1435 = vmatprep.subr.mxu0 0.0
        %1436 = vmatpush1.xpose.msra.mxu0 0.0
        %1437 = vmatprep.subr.mxu0 0.0
        %1438 = vmatpush1.xpose.msra.mxu0 0.0
        %1439 = vmatprep.subr.mxu0 0.0
        %1440 = vmatpush1.xpose.msra.mxu0 0.0
        %1441 = vmatprep.subr.mxu0 0.0
        %1442 = vmatpush1.xpose.msra.mxu0 0.0
        %1443 = vmatprep.subr.mxu0 0.0
        %1444 = vmatpush1.xpose.msra.mxu0 0.0
        %1445 = vmatprep.subr.mxu0 0.0
        %1446 = vmatpush1.xpose.msra.mxu0 0.0
        %1447 = vmatprep.subr.mxu0 0.0
        %1448 = vmatpush1.xpose.msra.mxu0 0.0
        %1449 = vmatprep.subr.mxu0 0.0
        %1450 = vmatpush1.xpose.msra.mxu0 0.0
        %1451 = vmatprep.subr.mxu0 0.0
        %1452 = vmatpush1.xpose.msra.mxu0 0.0
        %1453 = vmatprep.subr.mxu0 0.0
        %1454 = vmatpush1.xpose.msra.mxu0 0.0
        %1455 = vmatprep.subr.mxu0 0.0
        %1456 = vmatpush1.xpose.msra.mxu0 0.0
        %1457 = vmatprep.mubr.f32.mxu0 0.0
        %1458 = vmatmul.mubr.f32.gmra.mrb[0].mxu0 %v1389
        %v1459 = vpop.f32.mrb[0].mxu0
        %v1460 = vadd.f32 0.0, %v1459
        %v1461 = vpop.f32.mrb[0].mxu0
        %1462 = vdwg.mxu0
        %1463 = vrot.lane.b32.xlu0 %v921, 120
        %v1464 = vpop.permute.xlu0 %1463
        %1465 = vrot.lane.b32.xlu0 %v921, 88
        %v1466 = vpop.permute.xlu0 %1465
        %v1467 = vsel %vm956, %v1464, 0
        %v1469 = vsel %vm956, %v1466, 0
        %1471 = vmatprep.subr.mxu0 0.0
        %1472 = vmatpush1.xpose.msra.mxu0 %v1469
        %1473 = vmatprep.subr.mxu0 0.0
        %1474 = vmatpush1.xpose.msra.mxu0 0.0
        %1475 = vmatprep.subr.mxu0 0.0
        %1476 = vmatpush1.xpose.msra.mxu0 0.0
        %1477 = vmatprep.subr.mxu0 0.0
        %1478 = vmatpush1.xpose.msra.mxu0 0.0
        %1479 = vmatprep.subr.mxu0 0.0
        %1480 = vmatpush1.xpose.msra.mxu0 0.0
        %1481 = vmatprep.subr.mxu0 0.0
        %1482 = vmatpush1.xpose.msra.mxu0 0.0
        %1483 = vmatprep.subr.mxu0 0.0
        %1484 = vmatpush1.xpose.msra.mxu0 0.0
        %1485 = vmatprep.subr.mxu0 0.0
        %1486 = vmatpush1.xpose.msra.mxu0 0.0
        %1487 = vmatprep.subr.mxu0 0.0
        %1488 = vmatpush1.xpose.msra.mxu0 0.0
        %1489 = vmatprep.subr.mxu0 0.0
        %1490 = vmatpush1.xpose.msra.mxu0 0.0
        %1491 = vmatprep.subr.mxu0 0.0
        %1492 = vmatpush1.xpose.msra.mxu0 0.0
        %1493 = vmatprep.subr.mxu0 0.0
        %1494 = vmatpush1.xpose.msra.mxu0 0.0
        %1495 = vmatprep.subr.mxu0 0.0
        %1496 = vmatpush1.xpose.msra.mxu0 0.0
        %1497 = vmatprep.subr.mxu0 0.0
        %1498 = vmatpush1.xpose.msra.mxu0 0.0
        %1499 = vmatprep.subr.mxu0 0.0
        %1500 = vmatpush1.xpose.msra.mxu0 0.0
        %1501 = vmatprep.subr.mxu0 0.0
        %1502 = vmatpush1.xpose.msra.mxu0 0.0
        %1503 = vmatprep.subr.mxu0 0.0
        %1504 = vmatpush1.xpose.msra.mxu0 0.0
        %1505 = vmatprep.subr.mxu0 0.0
        %1506 = vmatpush1.xpose.msra.mxu0 0.0
        %1507 = vmatprep.subr.mxu0 0.0
        %1508 = vmatpush1.xpose.msra.mxu0 0.0
        %1509 = vmatprep.subr.mxu0 0.0
        %1510 = vmatpush1.xpose.msra.mxu0 0.0
        %1511 = vmatprep.subr.mxu0 0.0
        %1512 = vmatpush1.xpose.msra.mxu0 0.0
        %1513 = vmatprep.subr.mxu0 0.0
        %1514 = vmatpush1.xpose.msra.mxu0 0.0
        %1515 = vmatprep.subr.mxu0 0.0
        %1516 = vmatpush1.xpose.msra.mxu0 0.0
        %1517 = vmatprep.subr.mxu0 0.0
        %1518 = vmatpush1.xpose.msra.mxu0 0.0
        %1519 = vmatprep.subr.mxu0 0.0
        %1520 = vmatpush1.xpose.msra.mxu0 0.0
        %1521 = vmatprep.subr.mxu0 0.0
        %1522 = vmatpush1.xpose.msra.mxu0 0.0
        %1523 = vmatprep.subr.mxu0 0.0
        %1524 = vmatpush1.xpose.msra.mxu0 0.0
        %1525 = vmatprep.subr.mxu0 0.0
        %1526 = vmatpush1.xpose.msra.mxu0 0.0
        %1527 = vmatprep.subr.mxu0 0.0
        %1528 = vmatpush1.xpose.msra.mxu0 0.0
        %1529 = vmatprep.subr.mxu0 0.0
        %1530 = vmatpush1.xpose.msra.mxu0 0.0
        %1531 = vmatprep.subr.mxu0 0.0
        %1532 = vmatpush1.xpose.msra.mxu0 0.0
        %1533 = vmatprep.subr.mxu0 0.0
        %1534 = vmatpush1.xpose.msra.mxu0 0.0
        %1535 = vmatprep.mubr.f32.mxu0 0.0
        %1536 = vmatmul.mubr.f32.gmra.mrb[0].mxu0 %v1467
        %v1537 = vpop.f32.mrb[0].mxu0
        %v1538 = vadd.f32 0.0, %v1537
        %v1539 = vpop.f32.mrb[0].mxu0
        %1540 = vdwg.mxu0
        %v1541 = vmul.f32 %v1460, 0.35355338
        %v1542 = vmul.f32 %v1538, 0.35355338
        %v1543 = vadd.f32 %v1541, %v1113
        %v1544 = vadd.f32 %v1542, %v1117
        %v1545 = vsel %vm956, %v1543, -inf
        %1546 = vmax.xlane.f32.xlu0 %v1545
        %v1547 = vpop.xlane.xlu0 %1546
        %v1548 = vsel %vm956, %v1544, -inf
        %1549 = vmax.xlane.f32.xlu0 %v1548
        %v1550 = vpop.xlane.xlu0 %1549
        %v1551 = vsub.f32 %v1543, %v1547
        %v1552 = vsub.f32 %v1544, %v1550
        %v1553 = vmul.f32 %v1551, 1.442695
        %v1554 = vpow.pop %v1553
        %v1555 = vmul.f32 %v1552, 1.442695
        %v1556 = vpow.pop %v1555
        %v1557 = vsel %vm956, %v1554, 0.0
        %1558 = vadd.xlane.f32.xlu0 %v1557
        %v1559 = vpop.xlane.xlu0 %1558
        %v1560 = vsel %vm956, %v1556, 0.0
        %1561 = vadd.xlane.f32.xlu0 %v1560
        %v1562 = vpop.xlane.xlu0 %1561
        %v1563 = vrcp.pop %v1559
        %v1564 = vrcp.pop %v1562
        %v1565 = vmul.f32 %v1554, %v1563
        %v1566 = vmul.f32 %v1556, %v1564
        %1567 = vrot.lane.b32.xlu0 %v916, 56
        %v1568 = vpop.permute.xlu0 %1567
        %v1571 = vsel %vm956, %v1565, 0
        %1573 = vmatprep.subr.mxu0 0.0
        %1574 = vmatpush1.msra.mxu0 %v1568
        %1575 = vmatprep.subr.mxu0 0.0
        %1576 = vmatpush1.msra.mxu0 0.0
        %1577 = vmatprep.subr.mxu0 0.0
        %1578 = vmatpush1.msra.mxu0 0.0
        %1579 = vmatprep.subr.mxu0 0.0
        %1580 = vmatpush1.msra.mxu0 0.0
        %1581 = vmatprep.subr.mxu0 0.0
        %1582 = vmatpush1.msra.mxu0 0.0
        %1583 = vmatprep.subr.mxu0 0.0
        %1584 = vmatpush1.msra.mxu0 0.0
        %1585 = vmatprep.subr.mxu0 0.0
        %1586 = vmatpush1.msra.mxu0 0.0
        %1587 = vmatprep.subr.mxu0 0.0
        %1588 = vmatpush1.msra.mxu0 0.0
        %1589 = vmatprep.subr.mxu0 0.0
        %1590 = vmatpush1.msra.mxu0 0.0
        %1591 = vmatprep.subr.mxu0 0.0
        %1592 = vmatpush1.msra.mxu0 0.0
        %1593 = vmatprep.subr.mxu0 0.0
        %1594 = vmatpush1.msra.mxu0 0.0
        %1595 = vmatprep.subr.mxu0 0.0
        %1596 = vmatpush1.msra.mxu0 0.0
        %1597 = vmatprep.subr.mxu0 0.0
        %1598 = vmatpush1.msra.mxu0 0.0
        %1599 = vmatprep.subr.mxu0 0.0
        %1600 = vmatpush1.msra.mxu0 0.0
        %1601 = vmatprep.subr.mxu0 0.0
        %1602 = vmatpush1.msra.mxu0 0.0
        %1603 = vmatprep.subr.mxu0 0.0
        %1604 = vmatpush1.msra.mxu0 0.0
        %1605 = vmatprep.subr.mxu0 0.0
        %1606 = vmatpush1.msra.mxu0 0.0
        %1607 = vmatprep.subr.mxu0 0.0
        %1608 = vmatpush1.msra.mxu0 0.0
        %1609 = vmatprep.subr.mxu0 0.0
        %1610 = vmatpush1.msra.mxu0 0.0
        %1611 = vmatprep.subr.mxu0 0.0
        %1612 = vmatpush1.msra.mxu0 0.0
        %1613 = vmatprep.subr.mxu0 0.0
        %1614 = vmatpush1.msra.mxu0 0.0
        %1615 = vmatprep.subr.mxu0 0.0
        %1616 = vmatpush1.msra.mxu0 0.0
        %1617 = vmatprep.subr.mxu0 0.0
        %1618 = vmatpush1.msra.mxu0 0.0
        %1619 = vmatprep.subr.mxu0 0.0
        %1620 = vmatpush1.msra.mxu0 0.0
        %1621 = vmatprep.subr.mxu0 0.0
        %1622 = vmatpush1.msra.mxu0 0.0
        %1623 = vmatprep.subr.mxu0 0.0
        %1624 = vmatpush1.msra.mxu0 0.0
        %1625 = vmatprep.subr.mxu0 0.0
        %1626 = vmatpush1.msra.mxu0 0.0
        %1627 = vmatprep.subr.mxu0 0.0
        %1628 = vmatpush1.msra.mxu0 0.0
        %1629 = vmatprep.subr.mxu0 0.0
        %1630 = vmatpush1.msra.mxu0 0.0
        %1631 = vmatprep.subr.mxu0 0.0
        %1632 = vmatpush1.msra.mxu0 0.0
        %1633 = vmatprep.subr.mxu0 0.0
        %1634 = vmatpush1.msra.mxu0 0.0
        %1635 = vmatprep.subr.mxu0 0.0
        %1636 = vmatpush1.msra.mxu0 0.0
        %1637 = vmatprep.mubr.f32.mxu0 0.0
        %1638 = vmatmul.mubr.f32.gmra.mrb[0].mxu0 %v1571
        %v1639 = vpop.f32.mrb[0].mxu0
        %v1640 = vadd.f32 0.0, %v1639
        %v1641 = vpop.f32.mrb[0].mxu0
        %1642 = vdwg.mxu0
        %1643 = vrot.lane.b32.xlu0 %v921, 56
        %v1644 = vpop.permute.xlu0 %1643
        %v1647 = vsel %vm956, %v1566, 0
        %1649 = vmatprep.subr.mxu0 0.0
        %1650 = vmatpush1.msra.mxu0 %v1644
        %1651 = vmatprep.subr.mxu0 0.0
        %1652 = vmatpush1.msra.mxu0 0.0
        %1653 = vmatprep.subr.mxu0 0.0
        %1654 = vmatpush1.msra.mxu0 0.0
        %1655 = vmatprep.subr.mxu0 0.0
        %1656 = vmatpush1.msra.mxu0 0.0
        %1657 = vmatprep.subr.mxu0 0.0
        %1658 = vmatpush1.msra.mxu0 0.0
        %1659 = vmatprep.subr.mxu0 0.0
        %1660 = vmatpush1.msra.mxu0 0.0
        %1661 = vmatprep.subr.mxu0 0.0
        %1662 = vmatpush1.msra.mxu0 0.0
        %1663 = vmatprep.subr.mxu0 0.0
        %1664 = vmatpush1.msra.mxu0 0.0
        %1665 = vmatprep.subr.mxu0 0.0
        %1666 = vmatpush1.msra.mxu0 0.0
        %1667 = vmatprep.subr.mxu0 0.0
        %1668 = vmatpush1.msra.mxu0 0.0
        %1669 = vmatprep.subr.mxu0 0.0
        %1670 = vmatpush1.msra.mxu0 0.0
        %1671 = vmatprep.subr.mxu0 0.0
        %1672 = vmatpush1.msra.mxu0 0.0
        %1673 = vmatprep.subr.mxu0 0.0
        %1674 = vmatpush1.msra.mxu0 0.0
        %1675 = vmatprep.subr.mxu0 0.0
        %1676 = vmatpush1.msra.mxu0 0.0
        %1677 = vmatprep.subr.mxu0 0.0
        %1678 = vmatpush1.msra.mxu0 0.0
        %1679 = vmatprep.subr.mxu0 0.0
        %1680 = vmatpush1.msra.mxu0 0.0
        %1681 = vmatprep.subr.mxu0 0.0
        %1682 = vmatpush1.msra.mxu0 0.0
        %1683 = vmatprep.subr.mxu0 0.0
        %1684 = vmatpush1.msra.mxu0 0.0
        %1685 = vmatprep.subr.mxu0 0.0
        %1686 = vmatpush1.msra.mxu0 0.0
        %1687 = vmatprep.subr.mxu0 0.0
        %1688 = vmatpush1.msra.mxu0 0.0
        %1689 = vmatprep.subr.mxu0 0.0
        %1690 = vmatpush1.msra.mxu0 0.0
        %1691 = vmatprep.subr.mxu0 0.0
        %1692 = vmatpush1.msra.mxu0 0.0
        %1693 = vmatprep.subr.mxu0 0.0
        %1694 = vmatpush1.msra.mxu0 0.0
        %1695 = vmatprep.subr.mxu0 0.0
        %1696 = vmatpush1.msra.mxu0 0.0
        %1697 = vmatprep.subr.mxu0 0.0
        %1698 = vmatpush1.msra.mxu0 0.0
        %1699 = vmatprep.subr.mxu0 0.0
        %1700 = vmatpush1.msra.mxu0 0.0
        %1701 = vmatprep.subr.mxu0 0.0
        %1702 = vmatpush1.msra.mxu0 0.0
        %1703 = vmatprep.subr.mxu0 0.0
        %1704 = vmatpush1.msra.mxu0 0.0
        %1705 = vmatprep.subr.mxu0 0.0
        %1706 = vmatpush1.msra.mxu0 0.0
        %1707 = vmatprep.subr.mxu0 0.0
        %1708 = vmatpush1.msra.mxu0 0.0
        %1709 = vmatprep.subr.mxu0 0.0
        %1710 = vmatpush1.msra.mxu0 0.0
        %1711 = vmatprep.subr.mxu0 0.0
        %1712 = vmatpush1.msra.mxu0 0.0
        %1713 = vmatprep.mubr.f32.mxu0 0.0
        %1714 = vmatmul.mubr.f32.gmra.mrb[0].mxu0 %v1647
        %v1715 = vpop.f32.mrb[0].mxu0
        %v1716 = vadd.f32 0.0, %v1715
        %v1717 = vpop.f32.mrb[0].mxu0
        %1718 = vdwg.mxu0
        %v1720 = vsel %vm956, %v1640, 0
        %v1723 = vsel %vm956, %v1716, 0
        %1725 = vmatprep.subr.mxu0 0.0
        %1726 = vmatpush1.msra.mxu0 %v949
        %1727 = vmatprep.subr.mxu0 0.0
        %1728 = vmatpush1.msra.mxu0 0.0
        %1729 = vmatprep.subr.mxu0 0.0
        %1730 = vmatpush1.msra.mxu0 0.0
        %1731 = vmatprep.subr.mxu0 0.0
        %1732 = vmatpush1.msra.mxu0 0.0
        %1733 = vmatprep.subr.mxu0 0.0
        %1734 = vmatpush1.msra.mxu0 0.0
        %1735 = vmatprep.subr.mxu0 0.0
        %1736 = vmatpush1.msra.mxu0 0.0
        %1737 = vmatprep.subr.mxu0 0.0
        %1738 = vmatpush1.msra.mxu0 0.0
        %1739 = vmatprep.subr.mxu0 0.0
        %1740 = vmatpush1.msra.mxu0 0.0
        %1741 = vmatprep.subr.mxu0 0.0
        %1742 = vmatpush1.msra.mxu0 0.0
        %1743 = vmatprep.subr.mxu0 0.0
        %1744 = vmatpush1.msra.mxu0 0.0
        %1745 = vmatprep.subr.mxu0 0.0
        %1746 = vmatpush1.msra.mxu0 0.0
        %1747 = vmatprep.subr.mxu0 0.0
        %1748 = vmatpush1.msra.mxu0 0.0
        %1749 = vmatprep.subr.mxu0 0.0
        %1750 = vmatpush1.msra.mxu0 0.0
        %1751 = vmatprep.subr.mxu0 0.0
        %1752 = vmatpush1.msra.mxu0 0.0
        %1753 = vmatprep.subr.mxu0 0.0
        %1754 = vmatpush1.msra.mxu0 0.0
        %1755 = vmatprep.subr.mxu0 0.0
        %1756 = vmatpush1.msra.mxu0 0.0
        %1757 = vmatprep.subr.mxu0 0.0
        %1758 = vmatpush1.msra.mxu0 0.0
        %1759 = vmatprep.subr.mxu0 0.0
        %1760 = vmatpush1.msra.mxu0 0.0
        %1761 = vmatprep.subr.mxu0 0.0
        %1762 = vmatpush1.msra.mxu0 0.0
        %1763 = vmatprep.subr.mxu0 0.0
        %1764 = vmatpush1.msra.mxu0 0.0
        %1765 = vmatprep.subr.mxu0 0.0
        %1766 = vmatpush1.msra.mxu0 0.0
        %1767 = vmatprep.subr.mxu0 0.0
        %1768 = vmatpush1.msra.mxu0 0.0
        %1769 = vmatprep.subr.mxu0 0.0
        %1770 = vmatpush1.msra.mxu0 0.0
        %1771 = vmatprep.subr.mxu0 0.0
        %1772 = vmatpush1.msra.mxu0 0.0
        %1773 = vmatprep.subr.mxu0 0.0
        %1774 = vmatpush1.msra.mxu0 0.0
        %1775 = vmatprep.subr.mxu0 0.0
        %1776 = vmatpush1.msra.mxu0 0.0
        %1777 = vmatprep.subr.mxu0 0.0
        %1778 = vmatpush1.msra.mxu0 0.0
        %1779 = vmatprep.subr.mxu0 0.0
        %1780 = vmatpush1.msra.mxu0 0.0
        %1781 = vmatprep.subr.mxu0 0.0
        %1782 = vmatpush1.msra.mxu0 0.0
        %1783 = vmatprep.subr.mxu0 0.0
        %1784 = vmatpush1.msra.mxu0 0.0
        %1785 = vmatprep.subr.mxu0 0.0
        %1786 = vmatpush1.msra.mxu0 0.0
        %1787 = vmatprep.subr.mxu0 0.0
        %1788 = vmatpush1.msra.mxu0 0.0
        %1789 = vmatprep.mubr.f32.mxu0 0.0
        %1790 = vmatmul.mubr.f32.gmra.mrb[0].mxu0 %v1720
        %v1791 = vpop.f32.mrb[0].mxu0
        %v1792 = vadd.f32 0.0, %v1791
        %v1793 = vpop.f32.mrb[0].mxu0
        %1794 = vmatprep.mubr.f32.mxu0 0.0
        %1795 = vmatmul.mubr.f32.gmra.mrb[0].mxu0 %v1723
        %v1796 = vpop.f32.mrb[0].mxu0
        %v1797 = vadd.f32 0.0, %v1796
        %v1798 = vpop.f32.mrb[0].mxu0
        %1799 = vdwg.mxu0
        %v1800 = vadd.f32 %v1383, %v1792
        %v1801 = vadd.f32 %v1384, %v1797
        %1802 = vrot.lane.b32.xlu0 %v916, 112
        %v1803 = vpop.permute.xlu0 %1802
        %1804 = vrot.lane.b32.xlu0 %v916, 80
        %v1805 = vpop.permute.xlu0 %1804
        %v1806 = vsel %vm956, %v1803, 0
        %v1808 = vsel %vm956, %v1805, 0
        %1810 = vmatprep.subr.mxu0 0.0
        %1811 = vmatpush1.xpose.msra.mxu0 %v1808
        %1812 = vmatprep.subr.mxu0 0.0
        %1813 = vmatpush1.xpose.msra.mxu0 0.0
        %1814 = vmatprep.subr.mxu0 0.0
        %1815 = vmatpush1.xpose.msra.mxu0 0.0
        %1816 = vmatprep.subr.mxu0 0.0
        %1817 = vmatpush1.xpose.msra.mxu0 0.0
        %1818 = vmatprep.subr.mxu0 0.0
        %1819 = vmatpush1.xpose.msra.mxu0 0.0
        %1820 = vmatprep.subr.mxu0 0.0
        %1821 = vmatpush1.xpose.msra.mxu0 0.0
        %1822 = vmatprep.subr.mxu0 0.0
        %1823 = vmatpush1.xpose.msra.mxu0 0.0
        %1824 = vmatprep.subr.mxu0 0.0
        %1825 = vmatpush1.xpose.msra.mxu0 0.0
        %1826 = vmatprep.subr.mxu0 0.0
        %1827 = vmatpush1.xpose.msra.mxu0 0.0
        %1828 = vmatprep.subr.mxu0 0.0
        %1829 = vmatpush1.xpose.msra.mxu0 0.0
        %1830 = vmatprep.subr.mxu0 0.0
        %1831 = vmatpush1.xpose.msra.mxu0 0.0
        %1832 = vmatprep.subr.mxu0 0.0
        %1833 = vmatpush1.xpose.msra.mxu0 0.0
        %1834 = vmatprep.subr.mxu0 0.0
        %1835 = vmatpush1.xpose.msra.mxu0 0.0
        %1836 = vmatprep.subr.mxu0 0.0
        %1837 = vmatpush1.xpose.msra.mxu0 0.0
        %1838 = vmatprep.subr.mxu0 0.0
        %1839 = vmatpush1.xpose.msra.mxu0 0.0
        %1840 = vmatprep.subr.mxu0 0.0
        %1841 = vmatpush1.xpose.msra.mxu0 0.0
        %1842 = vmatprep.subr.mxu0 0.0
        %1843 = vmatpush1.xpose.msra.mxu0 0.0
        %1844 = vmatprep.subr.mxu0 0.0
        %1845 = vmatpush1.xpose.msra.mxu0 0.0
        %1846 = vmatprep.subr.mxu0 0.0
        %1847 = vmatpush1.xpose.msra.mxu0 0.0
        %1848 = vmatprep.subr.mxu0 0.0
        %1849 = vmatpush1.xpose.msra.mxu0 0.0
        %1850 = vmatprep.subr.mxu0 0.0
        %1851 = vmatpush1.xpose.msra.mxu0 0.0
        %1852 = vmatprep.subr.mxu0 0.0
        %1853 = vmatpush1.xpose.msra.mxu0 0.0
        %1854 = vmatprep.subr.mxu0 0.0
        %1855 = vmatpush1.xpose.msra.mxu0 0.0
        %1856 = vmatprep.subr.mxu0 0.0
        %1857 = vmatpush1.xpose.msra.mxu0 0.0
        %1858 = vmatprep.subr.mxu0 0.0
        %1859 = vmatpush1.xpose.msra.mxu0 0.0
        %1860 = vmatprep.subr.mxu0 0.0
        %1861 = vmatpush1.xpose.msra.mxu0 0.0
        %1862 = vmatprep.subr.mxu0 0.0
        %1863 = vmatpush1.xpose.msra.mxu0 0.0
        %1864 = vmatprep.subr.mxu0 0.0
        %1865 = vmatpush1.xpose.msra.mxu0 0.0
        %1866 = vmatprep.subr.mxu0 0.0
        %1867 = vmatpush1.xpose.msra.mxu0 0.0
        %1868 = vmatprep.subr.mxu0 0.0
        %1869 = vmatpush1.xpose.msra.mxu0 0.0
        %1870 = vmatprep.subr.mxu0 0.0
        %1871 = vmatpush1.xpose.msra.mxu0 0.0
        %1872 = vmatprep.subr.mxu0 0.0
        %1873 = vmatpush1.xpose.msra.mxu0 0.0
        %1874 = vmatprep.mubr.f32.mxu0 0.0
        %1875 = vmatmul.mubr.f32.gmra.mrb[0].mxu0 %v1806
        %v1876 = vpop.f32.mrb[0].mxu0
        %v1877 = vadd.f32 0.0, %v1876
        %v1878 = vpop.f32.mrb[0].mxu0
        %1879 = vdwg.mxu0
        %1880 = vrot.lane.b32.xlu0 %v921, 112
        %v1881 = vpop.permute.xlu0 %1880
        %1882 = vrot.lane.b32.xlu0 %v921, 80
        %v1883 = vpop.permute.xlu0 %1882
        %v1884 = vsel %vm956, %v1881, 0
        %v1886 = vsel %vm956, %v1883, 0
        %1888 = vmatprep.subr.mxu0 0.0
        %1889 = vmatpush1.xpose.msra.mxu0 %v1886
        %1890 = vmatprep.subr.mxu0 0.0
        %1891 = vmatpush1.xpose.msra.mxu0 0.0
        %1892 = vmatprep.subr.mxu0 0.0
        %1893 = vmatpush1.xpose.msra.mxu0 0.0
        %1894 = vmatprep.subr.mxu0 0.0
        %1895 = vmatpush1.xpose.msra.mxu0 0.0
        %1896 = vmatprep.subr.mxu0 0.0
        %1897 = vmatpush1.xpose.msra.mxu0 0.0
        %1898 = vmatprep.subr.mxu0 0.0
        %1899 = vmatpush1.xpose.msra.mxu0 0.0
        %1900 = vmatprep.subr.mxu0 0.0
        %1901 = vmatpush1.xpose.msra.mxu0 0.0
        %1902 = vmatprep.subr.mxu0 0.0
        %1903 = vmatpush1.xpose.msra.mxu0 0.0
        %1904 = vmatprep.subr.mxu0 0.0
        %1905 = vmatpush1.xpose.msra.mxu0 0.0
        %1906 = vmatprep.subr.mxu0 0.0
        %1907 = vmatpush1.xpose.msra.mxu0 0.0
        %1908 = vmatprep.subr.mxu0 0.0
        %1909 = vmatpush1.xpose.msra.mxu0 0.0
        %1910 = vmatprep.subr.mxu0 0.0
        %1911 = vmatpush1.xpose.msra.mxu0 0.0
        %1912 = vmatprep.subr.mxu0 0.0
        %1913 = vmatpush1.xpose.msra.mxu0 0.0
        %1914 = vmatprep.subr.mxu0 0.0
        %1915 = vmatpush1.xpose.msra.mxu0 0.0
        %1916 = vmatprep.subr.mxu0 0.0
        %1917 = vmatpush1.xpose.msra.mxu0 0.0
        %1918 = vmatprep.subr.mxu0 0.0
        %1919 = vmatpush1.xpose.msra.mxu0 0.0
        %1920 = vmatprep.subr.mxu0 0.0
        %1921 = vmatpush1.xpose.msra.mxu0 0.0
        %1922 = vmatprep.subr.mxu0 0.0
        %1923 = vmatpush1.xpose.msra.mxu0 0.0
        %1924 = vmatprep.subr.mxu0 0.0
        %1925 = vmatpush1.xpose.msra.mxu0 0.0
        %1926 = vmatprep.subr.mxu0 0.0
        %1927 = vmatpush1.xpose.msra.mxu0 0.0
        %1928 = vmatprep.subr.mxu0 0.0
        %1929 = vmatpush1.xpose.msra.mxu0 0.0
        %1930 = vmatprep.subr.mxu0 0.0
        %1931 = vmatpush1.xpose.msra.mxu0 0.0
        %1932 = vmatprep.subr.mxu0 0.0
        %1933 = vmatpush1.xpose.msra.mxu0 0.0
        %1934 = vmatprep.subr.mxu0 0.0
        %1935 = vmatpush1.xpose.msra.mxu0 0.0
        %1936 = vmatprep.subr.mxu0 0.0
        %1937 = vmatpush1.xpose.msra.mxu0 0.0
        %1938 = vmatprep.subr.mxu0 0.0
        %1939 = vmatpush1.xpose.msra.mxu0 0.0
        %1940 = vmatprep.subr.mxu0 0.0
        %1941 = vmatpush1.xpose.msra.mxu0 0.0
        %1942 = vmatprep.subr.mxu0 0.0
        %1943 = vmatpush1.xpose.msra.mxu0 0.0
        %1944 = vmatprep.subr.mxu0 0.0
        %1945 = vmatpush1.xpose.msra.mxu0 0.0
        %1946 = vmatprep.subr.mxu0 0.0
        %1947 = vmatpush1.xpose.msra.mxu0 0.0
        %1948 = vmatprep.subr.mxu0 0.0
        %1949 = vmatpush1.xpose.msra.mxu0 0.0
        %1950 = vmatprep.subr.mxu0 0.0
        %1951 = vmatpush1.xpose.msra.mxu0 0.0
        %1952 = vmatprep.mubr.f32.mxu0 0.0
        %1953 = vmatmul.mubr.f32.gmra.mrb[0].mxu0 %v1884
        %v1954 = vpop.f32.mrb[0].mxu0
        %v1955 = vadd.f32 0.0, %v1954
        %v1956 = vpop.f32.mrb[0].mxu0
        %1957 = vdwg.mxu0
        %v1958 = vmul.f32 %v1877, 0.35355338
        %v1959 = vmul.f32 %v1955, 0.35355338
        %v1960 = vadd.f32 %v1958, %v1113
        %v1961 = vadd.f32 %v1959, %v1117
        %v1962 = vsel %vm956, %v1960, -inf
        %1963 = vmax.xlane.f32.xlu0 %v1962
        %v1964 = vpop.xlane.xlu0 %1963
        %v1965 = vsel %vm956, %v1961, -inf
        %1966 = vmax.xlane.f32.xlu0 %v1965
        %v1967 = vpop.xlane.xlu0 %1966
        %v1968 = vsub.f32 %v1960, %v1964
        %v1969 = vsub.f32 %v1961, %v1967
        %v1970 = vmul.f32 %v1968, 1.442695
        %v1971 = vpow.pop %v1970
        %v1972 = vmul.f32 %v1969, 1.442695
        %v1973 = vpow.pop %v1972
        %v1974 = vsel %vm956, %v1971, 0.0
        %1975 = vadd.xlane.f32.xlu0 %v1974
        %v1976 = vpop.xlane.xlu0 %1975
        %v1977 = vsel %vm956, %v1973, 0.0
        %1978 = vadd.xlane.f32.xlu0 %v1977
        %v1979 = vpop.xlane.xlu0 %1978
        %v1980 = vrcp.pop %v1976
        %v1981 = vrcp.pop %v1979
        %v1982 = vmul.f32 %v1971, %v1980
        %v1983 = vmul.f32 %v1973, %v1981
        %1984 = vrot.lane.b32.xlu0 %v916, 48
        %v1985 = vpop.permute.xlu0 %1984
        %v1988 = vsel %vm956, %v1982, 0
        %1990 = vmatprep.subr.mxu0 0.0
        %1991 = vmatpush1.msra.mxu0 %v1985
        %1992 = vmatprep.subr.mxu0 0.0
        %1993 = vmatpush1.msra.mxu0 0.0
        %1994 = vmatprep.subr.mxu0 0.0
        %1995 = vmatpush1.msra.mxu0 0.0
        %1996 = vmatprep.subr.mxu0 0.0
        %1997 = vmatpush1.msra.mxu0 0.0
        %1998 = vmatprep.subr.mxu0 0.0
        %1999 = vmatpush1.msra.mxu0 0.0
        %2000 = vmatprep.subr.mxu0 0.0
        %2001 = vmatpush1.msra.mxu0 0.0
        %2002 = vmatprep.subr.mxu0 0.0
        %2003 = vmatpush1.msra.mxu0 0.0
        %2004 = vmatprep.subr.mxu0 0.0
        %2005 = vmatpush1.msra.mxu0 0.0
        %2006 = vmatprep.subr.mxu0 0.0
        %2007 = vmatpush1.msra.mxu0 0.0
        %2008 = vmatprep.subr.mxu0 0.0
        %2009 = vmatpush1.msra.mxu0 0.0
        %2010 = vmatprep.subr.mxu0 0.0
        %2011 = vmatpush1.msra.mxu0 0.0
        %2012 = vmatprep.subr.mxu0 0.0
        %2013 = vmatpush1.msra.mxu0 0.0
        %2014 = vmatprep.subr.mxu0 0.0
        %2015 = vmatpush1.msra.mxu0 0.0
        %2016 = vmatprep.subr.mxu0 0.0
        %2017 = vmatpush1.msra.mxu0 0.0
        %2018 = vmatprep.subr.mxu0 0.0
        %2019 = vmatpush1.msra.mxu0 0.0
        %2020 = vmatprep.subr.mxu0 0.0
        %2021 = vmatpush1.msra.mxu0 0.0
        %2022 = vmatprep.subr.mxu0 0.0
        %2023 = vmatpush1.msra.mxu0 0.0
        %2024 = vmatprep.subr.mxu0 0.0
        %2025 = vmatpush1.msra.mxu0 0.0
        %2026 = vmatprep.subr.mxu0 0.0
        %2027 = vmatpush1.msra.mxu0 0.0
        %2028 = vmatprep.subr.mxu0 0.0
        %2029 = vmatpush1.msra.mxu0 0.0
        %2030 = vmatprep.subr.mxu0 0.0
        %2031 = vmatpush1.msra.mxu0 0.0
        %2032 = vmatprep.subr.mxu0 0.0
        %2033 = vmatpush1.msra.mxu0 0.0
        %2034 = vmatprep.subr.mxu0 0.0
        %2035 = vmatpush1.msra.mxu0 0.0
        %2036 = vmatprep.subr.mxu0 0.0
        %2037 = vmatpush1.msra.mxu0 0.0
        %2038 = vmatprep.subr.mxu0 0.0
        %2039 = vmatpush1.msra.mxu0 0.0
        %2040 = vmatprep.subr.mxu0 0.0
        %2041 = vmatpush1.msra.mxu0 0.0
        %2042 = vmatprep.subr.mxu0 0.0
        %2043 = vmatpush1.msra.mxu0 0.0
        %2044 = vmatprep.subr.mxu0 0.0
        %2045 = vmatpush1.msra.mxu0 0.0
        %2046 = vmatprep.subr.mxu0 0.0
        %2047 = vmatpush1.msra.mxu0 0.0
        %2048 = vmatprep.subr.mxu0 0.0
        %2049 = vmatpush1.msra.mxu0 0.0
        %2050 = vmatprep.subr.mxu0 0.0
        %2051 = vmatpush1.msra.mxu0 0.0
        %2052 = vmatprep.subr.mxu0 0.0
        %2053 = vmatpush1.msra.mxu0 0.0
        %2054 = vmatprep.mubr.f32.mxu0 0.0
        %2055 = vmatmul.mubr.f32.gmra.mrb[0].mxu0 %v1988
        %v2056 = vpop.f32.mrb[0].mxu0
        %v2057 = vadd.f32 0.0, %v2056
        %v2058 = vpop.f32.mrb[0].mxu0
        %2059 = vdwg.mxu0
        %2060 = vrot.lane.b32.xlu0 %v921, 48
        %v2061 = vpop.permute.xlu0 %2060
        %v2064 = vsel %vm956, %v1983, 0
        %2066 = vmatprep.subr.mxu0 0.0
        %2067 = vmatpush1.msra.mxu0 %v2061
        %2068 = vmatprep.subr.mxu0 0.0
        %2069 = vmatpush1.msra.mxu0 0.0
        %2070 = vmatprep.subr.mxu0 0.0
        %2071 = vmatpush1.msra.mxu0 0.0
        %2072 = vmatprep.subr.mxu0 0.0
        %2073 = vmatpush1.msra.mxu0 0.0
        %2074 = vmatprep.subr.mxu0 0.0
        %2075 = vmatpush1.msra.mxu0 0.0
        %2076 = vmatprep.subr.mxu0 0.0
        %2077 = vmatpush1.msra.mxu0 0.0
        %2078 = vmatprep.subr.mxu0 0.0
        %2079 = vmatpush1.msra.mxu0 0.0
        %2080 = vmatprep.subr.mxu0 0.0
        %2081 = vmatpush1.msra.mxu0 0.0
        %2082 = vmatprep.subr.mxu0 0.0
        %2083 = vmatpush1.msra.mxu0 0.0
        %2084 = vmatprep.subr.mxu0 0.0
        %2085 = vmatpush1.msra.mxu0 0.0
        %2086 = vmatprep.subr.mxu0 0.0
        %2087 = vmatpush1.msra.mxu0 0.0
        %2088 = vmatprep.subr.mxu0 0.0
        %2089 = vmatpush1.msra.mxu0 0.0
        %2090 = vmatprep.subr.mxu0 0.0
        %2091 = vmatpush1.msra.mxu0 0.0
        %2092 = vmatprep.subr.mxu0 0.0
        %2093 = vmatpush1.msra.mxu0 0.0
        %2094 = vmatprep.subr.mxu0 0.0
        %2095 = vmatpush1.msra.mxu0 0.0
        %2096 = vmatprep.subr.mxu0 0.0
        %2097 = vmatpush1.msra.mxu0 0.0
        %2098 = vmatprep.subr.mxu0 0.0
        %2099 = vmatpush1.msra.mxu0 0.0
        %2100 = vmatprep.subr.mxu0 0.0
        %2101 = vmatpush1.msra.mxu0 0.0
        %2102 = vmatprep.subr.mxu0 0.0
        %2103 = vmatpush1.msra.mxu0 0.0
        %2104 = vmatprep.subr.mxu0 0.0
        %2105 = vmatpush1.msra.mxu0 0.0
        %2106 = vmatprep.subr.mxu0 0.0
        %2107 = vmatpush1.msra.mxu0 0.0
        %2108 = vmatprep.subr.mxu0 0.0
        %2109 = vmatpush1.msra.mxu0 0.0
        %2110 = vmatprep.subr.mxu0 0.0
        %2111 = vmatpush1.msra.mxu0 0.0
        %2112 = vmatprep.subr.mxu0 0.0
        %2113 = vmatpush1.msra.mxu0 0.0
        %2114 = vmatprep.subr.mxu0 0.0
        %2115 = vmatpush1.msra.mxu0 0.0
        %2116 = vmatprep.subr.mxu0 0.0
        %2117 = vmatpush1.msra.mxu0 0.0
        %2118 = vmatprep.subr.mxu0 0.0
        %2119 = vmatpush1.msra.mxu0 0.0
        %2120 = vmatprep.subr.mxu0 0.0
        %2121 = vmatpush1.msra.mxu0 0.0
        %2122 = vmatprep.subr.mxu0 0.0
        %2123 = vmatpush1.msra.mxu0 0.0
        %2124 = vmatprep.subr.mxu0 0.0
        %2125 = vmatpush1.msra.mxu0 0.0
        %2126 = vmatprep.subr.mxu0 0.0
        %2127 = vmatpush1.msra.mxu0 0.0
        %2128 = vmatprep.subr.mxu0 0.0
        %2129 = vmatpush1.msra.mxu0 0.0
        %2130 = vmatprep.mubr.f32.mxu0 0.0
        %2131 = vmatmul.mubr.f32.gmra.mrb[0].mxu0 %v2064
        %v2132 = vpop.f32.mrb[0].mxu0
        %v2133 = vadd.f32 0.0, %v2132
        %v2134 = vpop.f32.mrb[0].mxu0
        %2135 = vdwg.mxu0
        %v2137 = vsel %vm956, %v2057, 0
        %v2140 = vsel %vm956, %v2133, 0
        %2142 = vmatprep.subr.mxu0 0.0
        %2143 = vmatpush1.msra.mxu0 %v950
        %2144 = vmatprep.subr.mxu0 0.0
        %2145 = vmatpush1.msra.mxu0 0.0
        %2146 = vmatprep.subr.mxu0 0.0
        %2147 = vmatpush1.msra.mxu0 0.0
        %2148 = vmatprep.subr.mxu0 0.0
        %2149 = vmatpush1.msra.mxu0 0.0
        %2150 = vmatprep.subr.mxu0 0.0
        %2151 = vmatpush1.msra.mxu0 0.0
        %2152 = vmatprep.subr.mxu0 0.0
        %2153 = vmatpush1.msra.mxu0 0.0
        %2154 = vmatprep.subr.mxu0 0.0
        %2155 = vmatpush1.msra.mxu0 0.0
        %2156 = vmatprep.subr.mxu0 0.0
        %2157 = vmatpush1.msra.mxu0 0.0
        %2158 = vmatprep.subr.mxu0 0.0
        %2159 = vmatpush1.msra.mxu0 0.0
        %2160 = vmatprep.subr.mxu0 0.0
        %2161 = vmatpush1.msra.mxu0 0.0
        %2162 = vmatprep.subr.mxu0 0.0
        %2163 = vmatpush1.msra.mxu0 0.0
        %2164 = vmatprep.subr.mxu0 0.0
        %2165 = vmatpush1.msra.mxu0 0.0
        %2166 = vmatprep.subr.mxu0 0.0
        %2167 = vmatpush1.msra.mxu0 0.0
        %2168 = vmatprep.subr.mxu0 0.0
        %2169 = vmatpush1.msra.mxu0 0.0
        %2170 = vmatprep.subr.mxu0 0.0
        %2171 = vmatpush1.msra.mxu0 0.0
        %2172 = vmatprep.subr.mxu0 0.0
        %2173 = vmatpush1.msra.mxu0 0.0
        %2174 = vmatprep.subr.mxu0 0.0
        %2175 = vmatpush1.msra.mxu0 0.0
        %2176 = vmatprep.subr.mxu0 0.0
        %2177 = vmatpush1.msra.mxu0 0.0
        %2178 = vmatprep.subr.mxu0 0.0
        %2179 = vmatpush1.msra.mxu0 0.0
        %2180 = vmatprep.subr.mxu0 0.0
        %2181 = vmatpush1.msra.mxu0 0.0
        %2182 = vmatprep.subr.mxu0 0.0
        %2183 = vmatpush1.msra.mxu0 0.0
        %2184 = vmatprep.subr.mxu0 0.0
        %2185 = vmatpush1.msra.mxu0 0.0
        %2186 = vmatprep.subr.mxu0 0.0
        %2187 = vmatpush1.msra.mxu0 0.0
        %2188 = vmatprep.subr.mxu0 0.0
        %2189 = vmatpush1.msra.mxu0 0.0
        %2190 = vmatprep.subr.mxu0 0.0
        %2191 = vmatpush1.msra.mxu0 0.0
        %2192 = vmatprep.subr.mxu0 0.0
        %2193 = vmatpush1.msra.mxu0 0.0
        %2194 = vmatprep.subr.mxu0 0.0
        %2195 = vmatpush1.msra.mxu0 0.0
        %2196 = vmatprep.subr.mxu0 0.0
        %2197 = vmatpush1.msra.mxu0 0.0
        %2198 = vmatprep.subr.mxu0 0.0
        %2199 = vmatpush1.msra.mxu0 0.0
        %2200 = vmatprep.subr.mxu0 0.0
        %2201 = vmatpush1.msra.mxu0 0.0
        %2202 = vmatprep.subr.mxu0 0.0
        %2203 = vmatpush1.msra.mxu0 0.0
        %2204 = vmatprep.subr.mxu0 0.0
        %2205 = vmatpush1.msra.mxu0 0.0
        %2206 = vmatprep.mubr.f32.mxu0 0.0
        %2207 = vmatmul.mubr.f32.gmra.mrb[0].mxu0 %v2137
        %v2208 = vpop.f32.mrb[0].mxu0
        %v2209 = vadd.f32 0.0, %v2208
        %v2210 = vpop.f32.mrb[0].mxu0
        %2211 = vmatprep.mubr.f32.mxu0 0.0
        %2212 = vmatmul.mubr.f32.gmra.mrb[0].mxu0 %v2140
        %v2213 = vpop.f32.mrb[0].mxu0
        %v2214 = vadd.f32 0.0, %v2213
        %v2215 = vpop.f32.mrb[0].mxu0
        %2216 = vdwg.mxu0
        %v2217 = vadd.f32 %v1800, %v2209
        %v2218 = vadd.f32 %v1801, %v2214
        %2219 = vrot.lane.b32.xlu0 %v916, 104
        %v2220 = vpop.permute.xlu0 %2219
        %2221 = vrot.lane.b32.xlu0 %v916, 72
        %v2222 = vpop.permute.xlu0 %2221
        %v2223 = vsel %vm956, %v2220, 0
        %v2225 = vsel %vm956, %v2222, 0
        %2227 = vmatprep.subr.mxu0 0.0
        %2228 = vmatpush1.xpose.msra.mxu0 %v2225
        %2229 = vmatprep.subr.mxu0 0.0
        %2230 = vmatpush1.xpose.msra.mxu0 0.0
        %2231 = vmatprep.subr.mxu0 0.0
        %2232 = vmatpush1.xpose.msra.mxu0 0.0
        %2233 = vmatprep.subr.mxu0 0.0
        %2234 = vmatpush1.xpose.msra.mxu0 0.0
        %2235 = vmatprep.subr.mxu0 0.0
        %2236 = vmatpush1.xpose.msra.mxu0 0.0
        %2237 = vmatprep.subr.mxu0 0.0
        %2238 = vmatpush1.xpose.msra.mxu0 0.0
        %2239 = vmatprep.subr.mxu0 0.0
        %2240 = vmatpush1.xpose.msra.mxu0 0.0
        %2241 = vmatprep.subr.mxu0 0.0
        %2242 = vmatpush1.xpose.msra.mxu0 0.0
        %2243 = vmatprep.subr.mxu0 0.0
        %2244 = vmatpush1.xpose.msra.mxu0 0.0
        %2245 = vmatprep.subr.mxu0 0.0
        %2246 = vmatpush1.xpose.msra.mxu0 0.0
        %2247 = vmatprep.subr.mxu0 0.0
        %2248 = vmatpush1.xpose.msra.mxu0 0.0
        %2249 = vmatprep.subr.mxu0 0.0
        %2250 = vmatpush1.xpose.msra.mxu0 0.0
        %2251 = vmatprep.subr.mxu0 0.0
        %2252 = vmatpush1.xpose.msra.mxu0 0.0
        %2253 = vmatprep.subr.mxu0 0.0
        %2254 = vmatpush1.xpose.msra.mxu0 0.0
        %2255 = vmatprep.subr.mxu0 0.0
        %2256 = vmatpush1.xpose.msra.mxu0 0.0
        %2257 = vmatprep.subr.mxu0 0.0
        %2258 = vmatpush1.xpose.msra.mxu0 0.0
        %2259 = vmatprep.subr.mxu0 0.0
        %2260 = vmatpush1.xpose.msra.mxu0 0.0
        %2261 = vmatprep.subr.mxu0 0.0
        %2262 = vmatpush1.xpose.msra.mxu0 0.0
        %2263 = vmatprep.subr.mxu0 0.0
        %2264 = vmatpush1.xpose.msra.mxu0 0.0
        %2265 = vmatprep.subr.mxu0 0.0
        %2266 = vmatpush1.xpose.msra.mxu0 0.0
        %2267 = vmatprep.subr.mxu0 0.0
        %2268 = vmatpush1.xpose.msra.mxu0 0.0
        %2269 = vmatprep.subr.mxu0 0.0
        %2270 = vmatpush1.xpose.msra.mxu0 0.0
        %2271 = vmatprep.subr.mxu0 0.0
        %2272 = vmatpush1.xpose.msra.mxu0 0.0
        %2273 = vmatprep.subr.mxu0 0.0
        %2274 = vmatpush1.xpose.msra.mxu0 0.0
        %2275 = vmatprep.subr.mxu0 0.0
        %2276 = vmatpush1.xpose.msra.mxu0 0.0
        %2277 = vmatprep.subr.mxu0 0.0
        %2278 = vmatpush1.xpose.msra.mxu0 0.0
        %2279 = vmatprep.subr.mxu0 0.0
        %2280 = vmatpush1.xpose.msra.mxu0 0.0
        %2281 = vmatprep.subr.mxu0 0.0
        %2282 = vmatpush1.xpose.msra.mxu0 0.0
        %2283 = vmatprep.subr.mxu0 0.0
        %2284 = vmatpush1.xpose.msra.mxu0 0.0
        %2285 = vmatprep.subr.mxu0 0.0
        %2286 = vmatpush1.xpose.msra.mxu0 0.0
        %2287 = vmatprep.subr.mxu0 0.0
        %2288 = vmatpush1.xpose.msra.mxu0 0.0
        %2289 = vmatprep.subr.mxu0 0.0
        %2290 = vmatpush1.xpose.msra.mxu0 0.0
        %2291 = vmatprep.mubr.f32.mxu0 0.0
        %2292 = vmatmul.mubr.f32.gmra.mrb[0].mxu0 %v2223
        %v2293 = vpop.f32.mrb[0].mxu0
        %v2294 = vadd.f32 0.0, %v2293
        %v2295 = vpop.f32.mrb[0].mxu0
        %2296 = vdwg.mxu0
        %2297 = vrot.lane.b32.xlu0 %v921, 104
        %v2298 = vpop.permute.xlu0 %2297
        %2299 = vrot.lane.b32.xlu0 %v921, 72
        %v2300 = vpop.permute.xlu0 %2299
        %v2301 = vsel %vm956, %v2298, 0
        %v2303 = vsel %vm956, %v2300, 0
        %2305 = vmatprep.subr.mxu0 0.0
        %2306 = vmatpush1.xpose.msra.mxu0 %v2303
        %2307 = vmatprep.subr.mxu0 0.0
        %2308 = vmatpush1.xpose.msra.mxu0 0.0
        %2309 = vmatprep.subr.mxu0 0.0
        %2310 = vmatpush1.xpose.msra.mxu0 0.0
        %2311 = vmatprep.subr.mxu0 0.0
        %2312 = vmatpush1.xpose.msra.mxu0 0.0
        %2313 = vmatprep.subr.mxu0 0.0
        %2314 = vmatpush1.xpose.msra.mxu0 0.0
        %2315 = vmatprep.subr.mxu0 0.0
        %2316 = vmatpush1.xpose.msra.mxu0 0.0
        %2317 = vmatprep.subr.mxu0 0.0
        %2318 = vmatpush1.xpose.msra.mxu0 0.0
        %2319 = vmatprep.subr.mxu0 0.0
        %2320 = vmatpush1.xpose.msra.mxu0 0.0
        %2321 = vmatprep.subr.mxu0 0.0
        %2322 = vmatpush1.xpose.msra.mxu0 0.0
        %2323 = vmatprep.subr.mxu0 0.0
        %2324 = vmatpush1.xpose.msra.mxu0 0.0
        %2325 = vmatprep.subr.mxu0 0.0
        %2326 = vmatpush1.xpose.msra.mxu0 0.0
        %2327 = vmatprep.subr.mxu0 0.0
        %2328 = vmatpush1.xpose.msra.mxu0 0.0
        %2329 = vmatprep.subr.mxu0 0.0
        %2330 = vmatpush1.xpose.msra.mxu0 0.0
        %2331 = vmatprep.subr.mxu0 0.0
        %2332 = vmatpush1.xpose.msra.mxu0 0.0
        %2333 = vmatprep.subr.mxu0 0.0
        %2334 = vmatpush1.xpose.msra.mxu0 0.0
        %2335 = vmatprep.subr.mxu0 0.0
        %2336 = vmatpush1.xpose.msra.mxu0 0.0
        %2337 = vmatprep.subr.mxu0 0.0
        %2338 = vmatpush1.xpose.msra.mxu0 0.0
        %2339 = vmatprep.subr.mxu0 0.0
        %2340 = vmatpush1.xpose.msra.mxu0 0.0
        %2341 = vmatprep.subr.mxu0 0.0
        %2342 = vmatpush1.xpose.msra.mxu0 0.0
        %2343 = vmatprep.subr.mxu0 0.0
        %2344 = vmatpush1.xpose.msra.mxu0 0.0
        %2345 = vmatprep.subr.mxu0 0.0
        %2346 = vmatpush1.xpose.msra.mxu0 0.0
        %2347 = vmatprep.subr.mxu0 0.0
        %2348 = vmatpush1.xpose.msra.mxu0 0.0
        %2349 = vmatprep.subr.mxu0 0.0
        %2350 = vmatpush1.xpose.msra.mxu0 0.0
        %2351 = vmatprep.subr.mxu0 0.0
        %2352 = vmatpush1.xpose.msra.mxu0 0.0
        %2353 = vmatprep.subr.mxu0 0.0
        %2354 = vmatpush1.xpose.msra.mxu0 0.0
        %2355 = vmatprep.subr.mxu0 0.0
        %2356 = vmatpush1.xpose.msra.mxu0 0.0
        %2357 = vmatprep.subr.mxu0 0.0
        %2358 = vmatpush1.xpose.msra.mxu0 0.0
        %2359 = vmatprep.subr.mxu0 0.0
        %2360 = vmatpush1.xpose.msra.mxu0 0.0
        %2361 = vmatprep.subr.mxu0 0.0
        %2362 = vmatpush1.xpose.msra.mxu0 0.0
        %2363 = vmatprep.subr.mxu0 0.0
        %2364 = vmatpush1.xpose.msra.mxu0 0.0
        %2365 = vmatprep.subr.mxu0 0.0
        %2366 = vmatpush1.xpose.msra.mxu0 0.0
        %2367 = vmatprep.subr.mxu0 0.0
        %2368 = vmatpush1.xpose.msra.mxu0 0.0
        %2369 = vmatprep.mubr.f32.mxu0 0.0
        %2370 = vmatmul.mubr.f32.gmra.mrb[0].mxu0 %v2301
        %v2371 = vpop.f32.mrb[0].mxu0
        %v2372 = vadd.f32 0.0, %v2371
        %v2373 = vpop.f32.mrb[0].mxu0
        %2374 = vdwg.mxu0
        %v2375 = vmul.f32 %v2294, 0.35355338
        %v2376 = vmul.f32 %v2372, 0.35355338
        %v2377 = vadd.f32 %v2375, %v1113
        %v2378 = vadd.f32 %v2376, %v1117
        %v2379 = vsel %vm956, %v2377, -inf
        %2380 = vmax.xlane.f32.xlu0 %v2379
        %v2381 = vpop.xlane.xlu0 %2380
        %v2382 = vsel %vm956, %v2378, -inf
        %2383 = vmax.xlane.f32.xlu0 %v2382
        %v2384 = vpop.xlane.xlu0 %2383
        %v2385 = vsub.f32 %v2377, %v2381
        %v2386 = vsub.f32 %v2378, %v2384
        %v2387 = vmul.f32 %v2385, 1.442695
        %v2388 = vpow.pop %v2387
        %v2389 = vmul.f32 %v2386, 1.442695
        %v2390 = vpow.pop %v2389
        %v2391 = vsel %vm956, %v2388, 0.0
        %2392 = vadd.xlane.f32.xlu0 %v2391
        %v2393 = vpop.xlane.xlu0 %2392
        %v2394 = vsel %vm956, %v2390, 0.0
        %2395 = vadd.xlane.f32.xlu0 %v2394
        %v2396 = vpop.xlane.xlu0 %2395
        %v2397 = vrcp.pop %v2393
        %v2398 = vrcp.pop %v2396
        %v2399 = vmul.f32 %v2388, %v2397
        %v2400 = vmul.f32 %v2390, %v2398
        %2401 = vrot.lane.b32.xlu0 %v916, 40
        %v2402 = vpop.permute.xlu0 %2401
        %v2405 = vsel %vm956, %v2399, 0
        %2407 = vmatprep.subr.mxu0 0.0
        %2408 = vmatpush1.msra.mxu0 %v2402
        %2409 = vmatprep.subr.mxu0 0.0
        %2410 = vmatpush1.msra.mxu0 0.0
        %2411 = vmatprep.subr.mxu0 0.0
        %2412 = vmatpush1.msra.mxu0 0.0
        %2413 = vmatprep.subr.mxu0 0.0
        %2414 = vmatpush1.msra.mxu0 0.0
        %2415 = vmatprep.subr.mxu0 0.0
        %2416 = vmatpush1.msra.mxu0 0.0
        %2417 = vmatprep.subr.mxu0 0.0
        %2418 = vmatpush1.msra.mxu0 0.0
        %2419 = vmatprep.subr.mxu0 0.0
        %2420 = vmatpush1.msra.mxu0 0.0
        %2421 = vmatprep.subr.mxu0 0.0
        %2422 = vmatpush1.msra.mxu0 0.0
        %2423 = vmatprep.subr.mxu0 0.0
        %2424 = vmatpush1.msra.mxu0 0.0
        %2425 = vmatprep.subr.mxu0 0.0
        %2426 = vmatpush1.msra.mxu0 0.0
        %2427 = vmatprep.subr.mxu0 0.0
        %2428 = vmatpush1.msra.mxu0 0.0
        %2429 = vmatprep.subr.mxu0 0.0
        %2430 = vmatpush1.msra.mxu0 0.0
        %2431 = vmatprep.subr.mxu0 0.0
        %2432 = vmatpush1.msra.mxu0 0.0
        %2433 = vmatprep.subr.mxu0 0.0
        %2434 = vmatpush1.msra.mxu0 0.0
        %2435 = vmatprep.subr.mxu0 0.0
        %2436 = vmatpush1.msra.mxu0 0.0
        %2437 = vmatprep.subr.mxu0 0.0
        %2438 = vmatpush1.msra.mxu0 0.0
        %2439 = vmatprep.subr.mxu0 0.0
        %2440 = vmatpush1.msra.mxu0 0.0
        %2441 = vmatprep.subr.mxu0 0.0
        %2442 = vmatpush1.msra.mxu0 0.0
        %2443 = vmatprep.subr.mxu0 0.0
        %2444 = vmatpush1.msra.mxu0 0.0
        %2445 = vmatprep.subr.mxu0 0.0
        %2446 = vmatpush1.msra.mxu0 0.0
        %2447 = vmatprep.subr.mxu0 0.0
        %2448 = vmatpush1.msra.mxu0 0.0
        %2449 = vmatprep.subr.mxu0 0.0
        %2450 = vmatpush1.msra.mxu0 0.0
        %2451 = vmatprep.subr.mxu0 0.0
        %2452 = vmatpush1.msra.mxu0 0.0
        %2453 = vmatprep.subr.mxu0 0.0
        %2454 = vmatpush1.msra.mxu0 0.0
        %2455 = vmatprep.subr.mxu0 0.0
        %2456 = vmatpush1.msra.mxu0 0.0
        %2457 = vmatprep.subr.mxu0 0.0
        %2458 = vmatpush1.msra.mxu0 0.0
        %2459 = vmatprep.subr.mxu0 0.0
        %2460 = vmatpush1.msra.mxu0 0.0
        %2461 = vmatprep.subr.mxu0 0.0
        %2462 = vmatpush1.msra.mxu0 0.0
        %2463 = vmatprep.subr.mxu0 0.0
        %2464 = vmatpush1.msra.mxu0 0.0
        %2465 = vmatprep.subr.mxu0 0.0
        %2466 = vmatpush1.msra.mxu0 0.0
        %2467 = vmatprep.subr.mxu0 0.0
        %2468 = vmatpush1.msra.mxu0 0.0
        %2469 = vmatprep.subr.mxu0 0.0
        %2470 = vmatpush1.msra.mxu0 0.0
        %2471 = vmatprep.mubr.f32.mxu0 0.0
        %2472 = vmatmul.mubr.f32.gmra.mrb[0].mxu0 %v2405
        %v2473 = vpop.f32.mrb[0].mxu0
        %v2474 = vadd.f32 0.0, %v2473
        %v2475 = vpop.f32.mrb[0].mxu0
        %2476 = vdwg.mxu0
        %2477 = vrot.lane.b32.xlu0 %v921, 40
        %v2478 = vpop.permute.xlu0 %2477
        %v2481 = vsel %vm956, %v2400, 0
        %2483 = vmatprep.subr.mxu0 0.0
        %2484 = vmatpush1.msra.mxu0 %v2478
        %2485 = vmatprep.subr.mxu0 0.0
        %2486 = vmatpush1.msra.mxu0 0.0
        %2487 = vmatprep.subr.mxu0 0.0
        %2488 = vmatpush1.msra.mxu0 0.0
        %2489 = vmatprep.subr.mxu0 0.0
        %2490 = vmatpush1.msra.mxu0 0.0
        %2491 = vmatprep.subr.mxu0 0.0
        %2492 = vmatpush1.msra.mxu0 0.0
        %2493 = vmatprep.subr.mxu0 0.0
        %2494 = vmatpush1.msra.mxu0 0.0
        %2495 = vmatprep.subr.mxu0 0.0
        %2496 = vmatpush1.msra.mxu0 0.0
        %2497 = vmatprep.subr.mxu0 0.0
        %2498 = vmatpush1.msra.mxu0 0.0
        %2499 = vmatprep.subr.mxu0 0.0
        %2500 = vmatpush1.msra.mxu0 0.0
        %2501 = vmatprep.subr.mxu0 0.0
        %2502 = vmatpush1.msra.mxu0 0.0
        %2503 = vmatprep.subr.mxu0 0.0
        %2504 = vmatpush1.msra.mxu0 0.0
        %2505 = vmatprep.subr.mxu0 0.0
        %2506 = vmatpush1.msra.mxu0 0.0
        %2507 = vmatprep.subr.mxu0 0.0
        %2508 = vmatpush1.msra.mxu0 0.0
        %2509 = vmatprep.subr.mxu0 0.0
        %2510 = vmatpush1.msra.mxu0 0.0
        %2511 = vmatprep.subr.mxu0 0.0
        %2512 = vmatpush1.msra.mxu0 0.0
        %2513 = vmatprep.subr.mxu0 0.0
        %2514 = vmatpush1.msra.mxu0 0.0
        %2515 = vmatprep.subr.mxu0 0.0
        %2516 = vmatpush1.msra.mxu0 0.0
        %2517 = vmatprep.subr.mxu0 0.0
        %2518 = vmatpush1.msra.mxu0 0.0
        %2519 = vmatprep.subr.mxu0 0.0
        %2520 = vmatpush1.msra.mxu0 0.0
        %2521 = vmatprep.subr.mxu0 0.0
        %2522 = vmatpush1.msra.mxu0 0.0
        %2523 = vmatprep.subr.mxu0 0.0
        %2524 = vmatpush1.msra.mxu0 0.0
        %2525 = vmatprep.subr.mxu0 0.0
        %2526 = vmatpush1.msra.mxu0 0.0
        %2527 = vmatprep.subr.mxu0 0.0
        %2528 = vmatpush1.msra.mxu0 0.0
        %2529 = vmatprep.subr.mxu0 0.0
        %2530 = vmatpush1.msra.mxu0 0.0
        %2531 = vmatprep.subr.mxu0 0.0
        %2532 = vmatpush1.msra.mxu0 0.0
        %2533 = vmatprep.subr.mxu0 0.0
        %2534 = vmatpush1.msra.mxu0 0.0
        %2535 = vmatprep.subr.mxu0 0.0
        %2536 = vmatpush1.msra.mxu0 0.0
        %2537 = vmatprep.subr.mxu0 0.0
        %2538 = vmatpush1.msra.mxu0 0.0
        %2539 = vmatprep.subr.mxu0 0.0
        %2540 = vmatpush1.msra.mxu0 0.0
        %2541 = vmatprep.subr.mxu0 0.0
        %2542 = vmatpush1.msra.mxu0 0.0
        %2543 = vmatprep.subr.mxu0 0.0
        %2544 = vmatpush1.msra.mxu0 0.0
        %2545 = vmatprep.subr.mxu0 0.0
        %2546 = vmatpush1.msra.mxu0 0.0
        %2547 = vmatprep.mubr.f32.mxu0 0.0
        %2548 = vmatmul.mubr.f32.gmra.mrb[0].mxu0 %v2481
        %v2549 = vpop.f32.mrb[0].mxu0
        %v2550 = vadd.f32 0.0, %v2549
        %v2551 = vpop.f32.mrb[0].mxu0
        %2552 = vdwg.mxu0
        %v2554 = vsel %vm956, %v2474, 0
        %v2557 = vsel %vm956, %v2550, 0
        %2559 = vmatprep.subr.mxu0 0.0
        %2560 = vmatpush1.msra.mxu0 %v951
        %2561 = vmatprep.subr.mxu0 0.0
        %2562 = vmatpush1.msra.mxu0 0.0
        %2563 = vmatprep.subr.mxu0 0.0
        %2564 = vmatpush1.msra.mxu0 0.0
        %2565 = vmatprep.subr.mxu0 0.0
        %2566 = vmatpush1.msra.mxu0 0.0
        %2567 = vmatprep.subr.mxu0 0.0
        %2568 = vmatpush1.msra.mxu0 0.0
        %2569 = vmatprep.subr.mxu0 0.0
        %2570 = vmatpush1.msra.mxu0 0.0
        %2571 = vmatprep.subr.mxu0 0.0
        %2572 = vmatpush1.msra.mxu0 0.0
        %2573 = vmatprep.subr.mxu0 0.0
        %2574 = vmatpush1.msra.mxu0 0.0
        %2575 = vmatprep.subr.mxu0 0.0
        %2576 = vmatpush1.msra.mxu0 0.0
        %2577 = vmatprep.subr.mxu0 0.0
        %2578 = vmatpush1.msra.mxu0 0.0
        %2579 = vmatprep.subr.mxu0 0.0
        %2580 = vmatpush1.msra.mxu0 0.0
        %2581 = vmatprep.subr.mxu0 0.0
        %2582 = vmatpush1.msra.mxu0 0.0
        %2583 = vmatprep.subr.mxu0 0.0
        %2584 = vmatpush1.msra.mxu0 0.0
        %2585 = vmatprep.subr.mxu0 0.0
        %2586 = vmatpush1.msra.mxu0 0.0
        %2587 = vmatprep.subr.mxu0 0.0
        %2588 = vmatpush1.msra.mxu0 0.0
        %2589 = vmatprep.subr.mxu0 0.0
        %2590 = vmatpush1.msra.mxu0 0.0
        %2591 = vmatprep.subr.mxu0 0.0
        %2592 = vmatpush1.msra.mxu0 0.0
        %2593 = vmatprep.subr.mxu0 0.0
        %2594 = vmatpush1.msra.mxu0 0.0
        %2595 = vmatprep.subr.mxu0 0.0
        %2596 = vmatpush1.msra.mxu0 0.0
        %2597 = vmatprep.subr.mxu0 0.0
        %2598 = vmatpush1.msra.mxu0 0.0
        %2599 = vmatprep.subr.mxu0 0.0
        %2600 = vmatpush1.msra.mxu0 0.0
        %2601 = vmatprep.subr.mxu0 0.0
        %2602 = vmatpush1.msra.mxu0 0.0
        %2603 = vmatprep.subr.mxu0 0.0
        %2604 = vmatpush1.msra.mxu0 0.0
        %2605 = vmatprep.subr.mxu0 0.0
        %2606 = vmatpush1.msra.mxu0 0.0
        %2607 = vmatprep.subr.mxu0 0.0
        %2608 = vmatpush1.msra.mxu0 0.0
        %2609 = vmatprep.subr.mxu0 0.0
        %2610 = vmatpush1.msra.mxu0 0.0
        %2611 = vmatprep.subr.mxu0 0.0
        %2612 = vmatpush1.msra.mxu0 0.0
        %2613 = vmatprep.subr.mxu0 0.0
        %2614 = vmatpush1.msra.mxu0 0.0
        %2615 = vmatprep.subr.mxu0 0.0
        %2616 = vmatpush1.msra.mxu0 0.0
        %2617 = vmatprep.subr.mxu0 0.0
        %2618 = vmatpush1.msra.mxu0 0.0
        %2619 = vmatprep.subr.mxu0 0.0
        %2620 = vmatpush1.msra.mxu0 0.0
        %2621 = vmatprep.subr.mxu0 0.0
        %2622 = vmatpush1.msra.mxu0 0.0
        %2623 = vmatprep.mubr.f32.mxu0 0.0
        %2624 = vmatmul.mubr.f32.gmra.mrb[0].mxu0 %v2554
        %v2625 = vpop.f32.mrb[0].mxu0
        %v2626 = vadd.f32 0.0, %v2625
        %v2627 = vpop.f32.mrb[0].mxu0
        %2628 = vmatprep.mubr.f32.mxu0 0.0
        %2629 = vmatmul.mubr.f32.gmra.mrb[0].mxu0 %v2557
        %v2630 = vpop.f32.mrb[0].mxu0
        %v2631 = vadd.f32 0.0, %v2630
        %v2632 = vpop.f32.mrb[0].mxu0
        %2633 = vdwg.mxu0
        %v2634 = vadd.f32 %v2217, %v2626
        %v2635 = vadd.f32 %v2218, %v2631
        %v2636 = vadd.f32 %v2634, %v829
        %v2637 = vadd.f32 %v2635, %v830
        %v2638 = vld [vmem:[%s747] sm:$0x1]
        %v2639 = vld [vmem:[%s750] sm:$0x1]
        %v2640 = vsel %vm842, %v2636, 0.0
        %2641 = vadd.xlane.f32.xlu0 %v2640
        %v2642 = vpop.xlane.xlu0 %2641
        %v2643 = vsel %vm842, %v2637, 0.0
        %2644 = vadd.xlane.f32.xlu0 %v2643
        %v2645 = vpop.xlane.xlu0 %2644
        %v2646 = vrcp.pop 32.0
        %v2647 = vmul.f32 %v2642, %v2646
        %v2648 = vmul.f32 %v2645, %v2646
        %v2649 = vsub.f32 %v2636, %v2647
        %v2650 = vsub.f32 %v2637, %v2648
        %v2651 = vmul.f32 %v2649, %v2649
        %v2652 = vmul.f32 %v2650, %v2650
        %v2653 = vsel %vm842, %v2651, 0.0
        %2654 = vadd.xlane.f32.xlu0 %v2653
        %v2655 = vpop.xlane.xlu0 %2654
        %v2656 = vsel %vm842, %v2652, 0.0
        %2657 = vadd.xlane.f32.xlu0 %v2656
        %v2658 = vpop.xlane.xlu0 %2657
        %v2659 = vmul.f32 %v2655, %v2646
        %v2660 = vmul.f32 %v2658, %v2646
        %v2661 = vadd.f32 %v2659, 1e-12
        %v2662 = vadd.f32 %v2660, 1e-12
        %v2663 = vrsqrt.pop %v2661
        %v2664 = vrsqrt.pop %v2662
        %v2665 = vmul.f32 %v2649, %v2663
        %v2666 = vmul.f32 %v2650, %v2664
        %v2668 = vlaneseq
        %v2669 = vshrl.u32 %v2668, 7
        %v2670 = vsub.s32 0, %v2669
        %v2671 = vrot.slane %v2638, %v2670
        %v2673 = vmul.f32 %v2665, %v2671
        %v2674 = vmul.f32 %v2666, %v2671
        %v2676 = vlaneseq
        %v2677 = vshrl.u32 %v2676, 7
        %v2678 = vsub.s32 0, %v2677
        %v2679 = vrot.slane %v2639, %v2678
        %v2681 = vadd.f32 %v2673, %v2679
        %v2682 = vadd.f32 %v2674, %v2679
        %v2683 = vld [vmem:[%s755] sm:$0xff]
        %v2684 = vld [vmem:[%s755 + $0x8] sm:$0xff]
        %v2685 = vld [vmem:[%s755 + $0x10] sm:$0xff]
        %v2686 = vld [vmem:[%s755 + $0x18] sm:$0xff]
        %v2687 = vld [vmem:[%s758] sm:$0x1]
        %v2689 = vlaneseq
        %v2690 = vshrl.u32 %v2689, 7
        %v2691 = vsub.s32 0, %v2690
        %v2692 = vrot.slane %v2687, %v2691
        %v2695 = vsel %vm842, %v2681, 0
        %v2698 = vsel %vm842, %v2682, 0
        %2700 = vmatprep.subr.mxu0 0.0
        %2701 = vmatpush1.msra.mxu0 %v2683
        %2702 = vmatprep.subr.mxu0 0.0
        %2703 = vmatpush1.msra.mxu0 %v2684
        %2704 = vmatprep.subr.mxu0 0.0
        %2705 = vmatpush1.msra.mxu0 %v2685
        %2706 = vmatprep.subr.mxu0 0.0
        %2707 = vmatpush1.msra.mxu0 %v2686
        %2708 = vmatprep.subr.mxu0 0.0
        %2709 = vmatpush1.msra.mxu0 0.0
        %2710 = vmatprep.subr.mxu0 0.0
        %2711 = vmatpush1.msra.mxu0 0.0
        %2712 = vmatprep.subr.mxu0 0.0
        %2713 = vmatpush1.msra.mxu0 0.0
        %2714 = vmatprep.subr.mxu0 0.0
        %2715 = vmatpush1.msra.mxu0 0.0
        %2716 = vmatprep.subr.mxu0 0.0
        %2717 = vmatpush1.msra.mxu0 0.0
        %2718 = vmatprep.subr.mxu0 0.0
        %2719 = vmatpush1.msra.mxu0 0.0
        %2720 = vmatprep.subr.mxu0 0.0
        %2721 = vmatpush1.msra.mxu0 0.0
        %2722 = vmatprep.subr.mxu0 0.0
        %2723 = vmatpush1.msra.mxu0 0.0
        %2724 = vmatprep.subr.mxu0 0.0
        %2725 = vmatpush1.msra.mxu0 0.0
        %2726 = vmatprep.subr.mxu0 0.0
        %2727 = vmatpush1.msra.mxu0 0.0
        %2728 = vmatprep.subr.mxu0 0.0
        %2729 = vmatpush1.msra.mxu0 0.0
        %2730 = vmatprep.subr.mxu0 0.0
        %2731 = vmatpush1.msra.mxu0 0.0
        %2732 = vmatprep.subr.mxu0 0.0
        %2733 = vmatpush1.msra.mxu0 0.0
        %2734 = vmatprep.subr.mxu0 0.0
        %2735 = vmatpush1.msra.mxu0 0.0
        %2736 = vmatprep.subr.mxu0 0.0
        %2737 = vmatpush1.msra.mxu0 0.0
        %2738 = vmatprep.subr.mxu0 0.0
        %2739 = vmatpush1.msra.mxu0 0.0
        %2740 = vmatprep.subr.mxu0 0.0
        %2741 = vmatpush1.msra.mxu0 0.0
        %2742 = vmatprep.subr.mxu0 0.0
        %2743 = vmatpush1.msra.mxu0 0.0
        %2744 = vmatprep.subr.mxu0 0.0
        %2745 = vmatpush1.msra.mxu0 0.0
        %2746 = vmatprep.subr.mxu0 0.0
        %2747 = vmatpush1.msra.mxu0 0.0
        %2748 = vmatprep.subr.mxu0 0.0
        %2749 = vmatpush1.msra.mxu0 0.0
        %2750 = vmatprep.subr.mxu0 0.0
        %2751 = vmatpush1.msra.mxu0 0.0
        %2752 = vmatprep.subr.mxu0 0.0
        %2753 = vmatpush1.msra.mxu0 0.0
        %2754 = vmatprep.subr.mxu0 0.0
        %2755 = vmatpush1.msra.mxu0 0.0
        %2756 = vmatprep.subr.mxu0 0.0
        %2757 = vmatpush1.msra.mxu0 0.0
        %2758 = vmatprep.subr.mxu0 0.0
        %2759 = vmatpush1.msra.mxu0 0.0
        %2760 = vmatprep.subr.mxu0 0.0
        %2761 = vmatpush1.msra.mxu0 0.0
        %2762 = vmatprep.subr.mxu0 0.0
        %2763 = vmatpush1.msra.mxu0 0.0
        %2764 = vmatprep.mubr.f32.mxu0 0.0
        %2765 = vmatmul.mubr.f32.gmra.mrb[0].mxu0 %v2695
        %v2766 = vpop.f32.mrb[0].mxu0
        %v2767 = vadd.f32 %v2692, %v2766
        %v2768 = vpop.f32.mrb[0].mxu0
        %2769 = vmatprep.mubr.f32.mxu0 0.0
        %2770 = vmatmul.mubr.f32.gmra.mrb[0].mxu0 %v2698
        %v2771 = vpop.f32.mrb[0].mxu0
        %v2772 = vadd.f32 %v2692, %v2771
        %v2773 = vpop.f32.mrb[0].mxu0
        %2774 = vdwg.mxu0
        %v2775 = vmul.f32 %v2767, %v2767
        %v2776 = vmul.f32 %v2772, %v2772
        %v2777 = vmul.f32 %v2767, %v2775
        %v2778 = vmul.f32 %v2772, %v2776
        %v2779 = vmul.f32 %v2777, 0.044715
        %v2780 = vmul.f32 %v2778, 0.044715
        %v2781 = vadd.f32 %v2767, %v2779
        %v2782 = vadd.f32 %v2772, %v2780
        %v2783 = vmul.f32 %v2781, 0.7978846
        %v2784 = vmul.f32 %v2782, 0.7978846
        %v2785 = vtanh.pop %v2783
        %v2786 = vtanh.pop %v2784
        %v2787 = vadd.f32 %v2785, 1.0
        %v2788 = vadd.f32 %v2786, 1.0
        %v2789 = vmul.f32 %v2787, 0.5
        %v2790 = vmul.f32 %v2788, 0.5
        %v2791 = vmul.f32 %v2767, %v2789
        %v2792 = vmul.f32 %v2772, %v2790
        %v2793 = vld [vmem:[%s763] sm:$0xff]
        %v2794 = vld [vmem:[%s763 + $0x8] sm:$0xff]
        %v2795 = vld [vmem:[%s763 + $0x10] sm:$0xff]
        %v2796 = vld [vmem:[%s763 + $0x18] sm:$0xff]
        %v2797 = vld [vmem:[%s763 + $0x20] sm:$0xff]
        %v2798 = vld [vmem:[%s763 + $0x28] sm:$0xff]
        %v2799 = vld [vmem:[%s763 + $0x30] sm:$0xff]
        %v2800 = vld [vmem:[%s763 + $0x38] sm:$0xff]
        %v2801 = vld [vmem:[%s766] sm:$0x1]
        %v2803 = vlaneseq
        %v2804 = vshrl.u32 %v2803, 7
        %v2805 = vsub.s32 0, %v2804
        %v2806 = vrot.slane %v2801, %v2805
        %vm2808 = vcmask 523264
        %v2810 = vsel %vm2808, %v2791, 0
        %v2813 = vsel %vm2808, %v2792, 0
        %2815 = vmatprep.subr.mxu0 0.0
        %2816 = vmatpush1.msra.mxu0 %v2793
        %2817 = vmatprep.subr.mxu0 0.0
        %2818 = vmatpush1.msra.mxu0 %v2794
        %2819 = vmatprep.subr.mxu0 0.0
        %2820 = vmatpush1.msra.mxu0 %v2795
        %2821 = vmatprep.subr.mxu0 0.0
        %2822 = vmatpush1.msra.mxu0 %v2796
        %2823 = vmatprep.subr.mxu0 0.0
        %2824 = vmatpush1.msra.mxu0 %v2797
        %2825 = vmatprep.subr.mxu0 0.0
        %2826 = vmatpush1.msra.mxu0 %v2798
        %2827 = vmatprep.subr.mxu0 0.0
        %2828 = vmatpush1.msra.mxu0 %v2799
        %2829 = vmatprep.subr.mxu0 0.0
        %2830 = vmatpush1.msra.mxu0 %v2800
        %2831 = vmatprep.subr.mxu0 0.0
        %2832 = vmatpush1.msra.mxu0 0.0
        %2833 = vmatprep.subr.mxu0 0.0
        %2834 = vmatpush1.msra.mxu0 0.0
        %2835 = vmatprep.subr.mxu0 0.0
        %2836 = vmatpush1.msra.mxu0 0.0
        %2837 = vmatprep.subr.mxu0 0.0
        %2838 = vmatpush1.msra.mxu0 0.0
        %2839 = vmatprep.subr.mxu0 0.0
        %2840 = vmatpush1.msra.mxu0 0.0
        %2841 = vmatprep.subr.mxu0 0.0
        %2842 = vmatpush1.msra.mxu0 0.0
        %2843 = vmatprep.subr.mxu0 0.0
        %2844 = vmatpush1.msra.mxu0 0.0
        %2845 = vmatprep.subr.mxu0 0.0
        %2846 = vmatpush1.msra.mxu0 0.0
        %2847 = vmatprep.subr.mxu0 0.0
        %2848 = vmatpush1.msra.mxu0 0.0
        %2849 = vmatprep.subr.mxu0 0.0
        %2850 = vmatpush1.msra.mxu0 0.0
        %2851 = vmatprep.subr.mxu0 0.0
        %2852 = vmatpush1.msra.mxu0 0.0
        %2853 = vmatprep.subr.mxu0 0.0
        %2854 = vmatpush1.msra.mxu0 0.0
        %2855 = vmatprep.subr.mxu0 0.0
        %2856 = vmatpush1.msra.mxu0 0.0
        %2857 = vmatprep.subr.mxu0 0.0
        %2858 = vmatpush1.msra.mxu0 0.0
        %2859 = vmatprep.subr.mxu0 0.0
        %2860 = vmatpush1.msra.mxu0 0.0
        %2861 = vmatprep.subr.mxu0 0.0
        %2862 = vmatpush1.msra.mxu0 0.0
        %2863 = vmatprep.subr.mxu0 0.0
        %2864 = vmatpush1.msra.mxu0 0.0
        %2865 = vmatprep.subr.mxu0 0.0
        %2866 = vmatpush1.msra.mxu0 0.0
        %2867 = vmatprep.subr.mxu0 0.0
        %2868 = vmatpush1.msra.mxu0 0.0
        %2869 = vmatprep.subr.mxu0 0.0
        %2870 = vmatpush1.msra.mxu0 0.0
        %2871 = vmatprep.subr.mxu0 0.0
        %2872 = vmatpush1.msra.mxu0 0.0
        %2873 = vmatprep.subr.mxu0 0.0
        %2874 = vmatpush1.msra.mxu0 0.0
        %2875 = vmatprep.subr.mxu0 0.0
        %2876 = vmatpush1.msra.mxu0 0.0
        %2877 = vmatprep.subr.mxu0 0.0
        %2878 = vmatpush1.msra.mxu0 0.0
        %2879 = vmatprep.mubr.f32.mxu0 0.0
        %2880 = vmatmul.mubr.f32.gmra.mrb[0].mxu0 %v2810
        %v2881 = vpop.f32.mrb[0].mxu0
        %v2882 = vadd.f32 %v2806, %v2881
        %v2883 = vpop.f32.mrb[0].mxu0
        %2884 = vmatprep.mubr.f32.mxu0 0.0
        %2885 = vmatmul.mubr.f32.gmra.mrb[0].mxu0 %v2813
        %v2886 = vpop.f32.mrb[0].mxu0
        %v2887 = vadd.f32 %v2806, %v2886
        %v2888 = vpop.f32.mrb[0].mxu0
        %2889 = vdwg.mxu0
        %v2890 = vadd.f32 %v2882, %v2681
        %v2891 = vadd.f32 %v2887, %v2682
        %v2892 = vld [vmem:[%s769] sm:$0x1]
        %v2893 = vld [vmem:[%s772] sm:$0x1]
        %v2894 = vsel %vm842, %v2890, 0.0
        %2895 = vadd.xlane.f32.xlu0 %v2894
        %v2896 = vpop.xlane.xlu0 %2895
        %v2897 = vsel %vm842, %v2891, 0.0
        %2898 = vadd.xlane.f32.xlu0 %v2897
        %v2899 = vpop.xlane.xlu0 %2898
        %v2900 = vmul.f32 %v2896, %v2646
        %v2901 = vmul.f32 %v2899, %v2646
        %v2902 = vsub.f32 %v2890, %v2900
        %v2903 = vsub.f32 %v2891, %v2901
        %v2904 = vmul.f32 %v2902, %v2902
        %v2905 = vmul.f32 %v2903, %v2903
        %v2906 = vsel %vm842, %v2904, 0.0
        %2907 = vadd.xlane.f32.xlu0 %v2906
        %v2908 = vpop.xlane.xlu0 %2907
        %v2909 = vsel %vm842, %v2905, 0.0
        %2910 = vadd.xlane.f32.xlu0 %v2909
        %v2911 = vpop.xlane.xlu0 %2910
        %v2912 = vmul.f32 %v2908, %v2646
        %v2913 = vmul.f32 %v2911, %v2646
        %v2914 = vadd.f32 %v2912, 1e-12
        %v2915 = vadd.f32 %v2913, 1e-12
        %v2916 = vrsqrt.pop %v2914
        %v2917 = vrsqrt.pop %v2915
        %v2918 = vmul.f32 %v2902, %v2916
        %v2919 = vmul.f32 %v2903, %v2917
        %v2921 = vlaneseq
        %v2922 = vshrl.u32 %v2921, 7
        %v2923 = vsub.s32 0, %v2922
        %v2924 = vrot.slane %v2892, %v2923
        %v2926 = vmul.f32 %v2918, %v2924
        %v2927 = vmul.f32 %v2919, %v2924
        %v2929 = vlaneseq
        %v2930 = vshrl.u32 %v2929, 7
        %v2931 = vsub.s32 0, %v2930
        %v2932 = vrot.slane %v2893, %v2931
        %v2934 = vadd.f32 %v2926, %v2932
        %v2935 = vadd.f32 %v2927, %v2932
        %2936 = vst.msk [vmem:[#allocation2] sm:$0xff] %vm842, %v2934
        %2937 = vst.msk [vmem:[#allocation2 + $0x8] sm:$0xff] %vm842, %v2935
        %v2938 = vld [vmem:[#allocation3] sm:$0x3]
        %v2939 = vld [vmem:[%s2] sm:$0x3]
        %v2940 = vlaneseq
        %v2941 = vshrl.u32 %v2940, 7
        %v2942 = vsub.s32 0, %v2941
        %v2943 = vrot.slane %v2939, %v2942
        %2945 = vbcast.lane.b32.xlu0 %v2943, 256
        %v2946 = vpop.permute.xlu0 %2945
        %v2947 = vlaneseq
        %v2948 = vshrl.u32 %v2947, 7
        %v2949 = vsub.s32 1, %v2948
        %v2950 = vrot.slane %v2939, %v2949
        %2952 = vbcast.lane.b32.xlu0 %v2950, 256
        %v2953 = vpop.permute.xlu0 %2952
        %v2954 = vmul.f32 %v2934, %v2946
        %v2955 = vmul.f32 %v2935, %v2953
        %v2956 = vsel %vm842, %v2954, 0.0
        %v2957 = vrot.slane %v2956, 4
        %v2958 = vadd.f32 %v2956, %v2957
        %v2959 = vrot.slane %v2958, 2
        %v2960 = vadd.f32 %v2958, %v2959
        %v2961 = vrot.slane %v2960, 1
        %v2962 = vadd.f32 %v2960, %v2961
        %v2963 = vsel %vm842, %v2955, 0.0
        %v2964 = vrot.slane %v2963, 4
        %v2965 = vadd.f32 %v2963, %v2964
        %v2966 = vrot.slane %v2965, 2
        %v2967 = vadd.f32 %v2965, %v2966
        %v2968 = vrot.slane %v2967, 1
        %v2969 = vadd.f32 %v2967, %v2968
        %vm2972 = vcmask 1041409
        %v2973 = vsel %vm2972, %v2969, %v2962
        %v2975 = vadd.f32 %v2938, %v2973
        %vm2976 = vcmask 254976
        %2977 = vst.msk [vmem:[#allocation3] sm:$0x3] %vm2976, %v2975
        %p2978 = scmp.eq.s32.totalorder %s34, 1
        // Predicated region
        $region105: #{tpu_custom_call.1} parent=87 // pred_check
          %p2979 = pneg %p2978
        $region106: #{tpu_custom_call.1} parent=87 // pred_check_branch
          %2981 = sbr.rel (%p2979) target = $region108
        $region107: #{tpu_custom_call.1} parent=87 // pred_region
          %2982 = vst.msk [vmem:[#allocation10] sm:$0xff] %vm842, %v2934
          %2983 = vst.msk [vmem:[#allocation10 + $0x8] sm:$0xff] %vm842, %v2935
          %v2984 = vld [vmem:[%s2] sm:$0x3]
          %vm2985 = vcmask 58368
          %v2986 = vsel %vm2985, %v2984, 0.0
          %2987 = vadd.xlane.f32.xlu0 %v2986
          %v2988 = vpop.xlane.xlu0 %2987
          %v2989 = vld [vmem:[#allocation3] sm:$0x3]
          %v2990 = vrcp.pop %v2988
          %v2991 = vmul.f32 %v2989, %v2990
          %2992 = vst.msk [vmem:[#allocation11] sm:$0x3] %vm2976, %v2991
        $region108: #{tpu_custom_call.1} parent=87 // pred_fallthru
          _
        // Predicated region
        $region109: #{tpu_custom_call.1} parent=87 // pred_check
          %p2993 = pneg %p464
        $region110: #{tpu_custom_call.1} parent=87 // pred_check_branch
          %2995 = sbr.rel (%p2993) target = $region112
        $region111: #{tpu_custom_call.1} parent=87 // pred_region
          %s2997 = ssub.s32 256, 256
          %2998 = vsyncadd [#allocation6], %s2997
          %s2999 = sshll.u32 [#allocation10], 4
          %s3000 = int_to_ptr.vmem [resolvable:$true] %s2999
          %3005 = dma.vmem_to_hbm [thread:$0]  %s3000, 256, %s17, [#allocation6], 128, 128, 8
        $region112: #{tpu_custom_call.1} parent=87 // pred_fallthru
          _
        // Predicated region
        $region113: #{tpu_custom_call.1} parent=87 // pred_check
          %p3006 = pneg %p485
        $region114: #{tpu_custom_call.1} parent=87 // pred_check_branch
          %3008 = sbr.rel (%p3006) target = $region116
        $region115: #{tpu_custom_call.1} parent=87 // pred_region
          %s3010 = ssub.s32 32, 32
          %3011 = vsyncadd [#allocation12], %s3010
          %s3013 = sshll.u32 [#allocation11], 4
          %s3014 = int_to_ptr.vmem [resolvable:$true] %s3013
          %3016 = dma.vmem_to_hbm [thread:$0]  %s3014, 32, %s18, [#allocation12]
        $region116: #{tpu_custom_call.1} parent=87 // pred_fallthru
          _
        // Predicated region
        $region117: #{tpu_custom_call.1} parent=87 // pred_check
          %p3017 = pneg %p464
        $region118: #{tpu_custom_call.1} parent=87 // pred_check_branch
          %3019 = sbr.rel (%p3017) target = $region120
        $region119: #{tpu_custom_call.1} parent=87 // pred_region
          %3020 = dma.done [#allocation6], 256
        $region120: #{tpu_custom_call.1} parent=87 // pred_fallthru
          _
        // Predicated region
        $region121: #{tpu_custom_call.1} parent=87 // pred_check
          %p3021 = pneg %p485
        $region122: #{tpu_custom_call.1} parent=87 // pred_check_branch
          %3023 = sbr.rel (%p3021) target = $region124
        $region123: #{tpu_custom_call.1} parent=87 // pred_region
          %3024 = dma.done [#allocation12], 32
        $region124: #{tpu_custom_call.1} parent=87 // pred_fallthru
          _
      $region88: #{tpu_custom_call.1} parent=5 // pred_fallthru
        _
      %p3025 = scmp.le.s32.totalorder 2, %s29
      // Predicated region
      $region125: #{tpu_custom_call.1} parent=5 // pred_check
        %p3026 = pneg %p3025
      $region126: #{tpu_custom_call.1} parent=5 // pred_check_branch
        %3028 = sbr.rel (%p3026) target = $region128
      $region127: #{tpu_custom_call.1} parent=5 // pred_region
        %s3029 = ssub.s32 %s29, 2
      $region128: #{tpu_custom_call.1} parent=5 // pred_fallthru
        _
    $region6: #{tpu_custom_call.1} parent=1 // loop_footer
      %s33 = sadd.s32 1, %s29
    $region7: #{tpu_custom_call.1} parent=1 // loop_footer_branch
      %28 = sbr.rel target = $region3
    $region8: #{tpu_custom_call.1} parent=1 // loop_exit
      _
    %3030 = vsyncpa [#allocation5], 1
    %s3031 = scalar_lea.sflag [#allocation5], 1
    %3032 = vsyncpa %s3031, 1
    %3033 = vsyncpa [#allocation8], 1
    %3034 = vsyncpa [#allocation6], 1
    %s3035 = scalar_lea.sflag [#allocation6], 1
    %3036 = vsyncpa %s3035, 1
    %3037 = vsyncpa [#allocation12], 1

</llo_original>
